<compile_context>
chip_gen: v6e
topology: v6e:2x2x1
jax: 0.10.0
libtpu: 0.0.40
codegen_flags: <defaults>
</compile_context>

<pallas_src>
import functools

import jax
import jax.numpy as jnp
from jax.experimental import pallas as pl
from jax.experimental.pallas import tpu as pltpu

# ------------------------- synthetic ViViT config (small) -------------------------
NUM_FRAMES = 4
IMG = 8
CHANNELS = 3
TUBELET = (2, 4, 4)          # (t, h, w)
HIDDEN = 32
HEADS = 4
HEAD_DIM = HIDDEN // HEADS
LAYERS = 2
INTERMEDIATE = 64
NUM_LABELS = 5
LN_EPS = 1e-6                # VivitConfig.layer_norm_eps


# ------------------------- in-kernel helpers -------------------------
def _layernorm(x, g, b, eps=LN_EPS):
    x = x.astype(jnp.float32)
    mu = jnp.mean(x, axis=-1, keepdims=True)
    var = jnp.mean((x - mu) * (x - mu), axis=-1, keepdims=True)
    return (x - mu) * jax.lax.rsqrt(var + eps) * g + b


def _gelu_fast(x):
    # HF "gelu_fast": 0.5*x*(1+tanh(0.7978845608*x*(1+0.044715*x*x)))
    return 0.5 * x * (1.0 + jnp.tanh(0.7978845608028654 * (x + 0.044715 * x * x * x)))


# ------------------------- fused forward kernel (one batch element per grid step) -------------------------
def _vivit_fused_kernel(patches_ref, patch_w_ref, patch_b_ref, cls_ref, pos_ref,
                        ln1_g_ref, ln1_b_ref, wqkv_ref, bqkv_ref, wo_ref, bo_ref,
                        ln2_g_ref, ln2_b_ref, w1_ref, b1_ref, w2_ref, b2_ref,
                        lnf_g_ref, lnf_b_ref, head_w_ref, head_b_ref,
                        logits_ref, *, seq_len, heads, head_dim, num_layers, hidden):
    f32 = jnp.float32

    # --- tubelet embedding (Conv3d stride==kernel == matmul); row 0 of `patches` is a zero
    #     placeholder that is overwritten with the CLS token below.
    tok = jnp.dot(patches_ref[0].astype(f32), patch_w_ref[...],
                  preferred_element_type=f32) + patch_b_ref[...]           # (S, D)
    row = jax.lax.broadcasted_iota(jnp.int32, (seq_len, hidden), 0)
    cls_bcast = jnp.broadcast_to(cls_ref[...].astype(f32), (seq_len, hidden))
    tok = jnp.where(row == 0, cls_bcast, tok)
    h = tok + pos_ref[...]                                                 # (S, D) resident in VMEM
    # dropout is a no-op in eval mode

    scale = 1.0 / float(head_dim) ** 0.5
    for lyr in range(num_layers):
        # --- self-attention block (pre-LN, fused QKV projection) ---
        x = _layernorm(h, ln1_g_ref[lyr], ln1_b_ref[lyr])
        qkv = jnp.dot(x, wqkv_ref[lyr], preferred_element_type=f32) + bqkv_ref[lyr]   # (S, 3D)
        ctx_heads = []
        for hh in range(heads):
            o = hh * head_dim
            q = qkv[:, o:o + head_dim]                                     # (S, hd)
            k = qkv[:, hidden + o:hidden + o + head_dim]
            v = qkv[:, 2 * hidden + o:2 * hidden + o + head_dim]
            s = jax.lax.dot_general(q, k, (((1,), (1,)), ((), ())),
                                    preferred_element_type=f32) * scale    # (S, S)
            s = s - jnp.max(s, axis=-1, keepdims=True)
            p = jnp.exp(s)
            p = p * pl.reciprocal(jnp.sum(p, axis=-1, keepdims=True), approx=True)
            ctx_heads.append(jnp.dot(p, v, preferred_element_type=f32))    # (S, hd)
        ctx = jnp.concatenate(ctx_heads, axis=-1)                          # (S, D)
        h = jnp.dot(ctx, wo_ref[lyr], preferred_element_type=f32) + bo_ref[lyr] + h
        # --- MLP block (pre-LN, gelu_fast) ---
        x = _layernorm(h, ln2_g_ref[lyr], ln2_b_ref[lyr])
        ff = jnp.dot(x, w1_ref[lyr], preferred_element_type=f32) + b1_ref[lyr]
        ff = _gelu_fast(ff)
        h = jnp.dot(ff, w2_ref[lyr], preferred_element_type=f32) + b2_ref[lyr] + h

    # --- final layernorm + CLS-token classifier head ---
    out = _layernorm(h, lnf_g_ref[...], lnf_b_ref[...])
    cls_tok = out[0:1, :]                                                  # (1, D)
    logits = jnp.dot(cls_tok, head_w_ref[...], preferred_element_type=f32) + head_b_ref[...]
    logits_ref[...] = logits.reshape(1, 1, -1).astype(logits_ref.dtype)


# ------------------------- position-encoding interpolation -------------------------
def interpolate_pos_encoding(pos, nt, nh, nw, dim):
    """interpolate_pos_encoding=True: when the patch grid matches the stored table, HF returns
    it unchanged (fast path); otherwise the spatial grid is resized per temporal slice."""
    num_positions = pos.shape[1] - 1
    if num_positions == nt * nh * nw:
        return pos
    # TODO(synk): HF uses torch.nn.functional.interpolate(mode="bicubic", a=-0.75); jax 'cubic'
    # (Keys a=-0.5) differs slightly — only exercised when the patch grid mismatches.
    cls_pos, patch_pos = pos[:, :1], pos[:, 1:]
    h0 = w0 = int(round(((num_positions // nt)) ** 0.5))
    grid = patch_pos.reshape(1, nt, h0, w0, dim)
    grid = jax.image.resize(grid, (1, nt, nh, nw, dim), method="cubic")
    return jnp.concatenate([cls_pos, grid.reshape(1, nt * nh * nw, dim)], axis=1)


# ------------------------- full forward pass -------------------------
def _const_spec(arr):
    zeros = (0,) * arr.ndim
    return pl.BlockSpec(arr.shape, lambda b, _z=zeros: _z)


@jax.jit
def vivit_forward(params, pixel_values):
    B, T, C, H, W = pixel_values.shape
    tt, th, tw = TUBELET
    nt, nh, nw = T // tt, H // th, W // tw
    N = nt * nh * nw
    S = N + 1
    D = HIDDEN
    P = C * tt * th * tw

    # --- tubelet patch extraction: pure layout glue kept in XLA; the embedding matmul and all
    #     later activations live inside the fused kernel (never round-trip through HBM).
    x = pixel_values.transpose(0, 2, 1, 3, 4)                 # (B, C, T, H, W)
    x = x.reshape(B, C, nt, tt, nh, th, nw, tw)
    x = x.transpose(0, 2, 4, 6, 1, 3, 5, 7)                   # (B, nt, nh, nw, C, tt, th, tw)
    patches = x.reshape(B, N, P)
    # prepend a zero row per batch element: row 0 becomes the CLS slot inside the kernel
    patches = jnp.pad(patches, ((0, 0), (1, 0), (0, 0)))       # (B, S, P)

    pos = interpolate_pos_encoding(params["pos"], nt, nh, nw, D)[0]   # (S, D)

    kernel = functools.partial(
        _vivit_fused_kernel,
        seq_len=S, heads=HEADS, head_dim=HEAD_DIM, num_layers=LAYERS, hidden=D)

    weight_args = (params["patch_w"], params["patch_b"], params["cls"], pos,
                   params["ln1_g"], params["ln1_b"], params["wqkv"], params["bqkv"],
                   params["wo"], params["bo"], params["ln2_g"], params["ln2_b"],
                   params["w1"], params["b1"], params["w2"], params["b2"],
                   params["lnf_g"], params["lnf_b"], params["head_w"], params["head_b"])

    logits = pl.pallas_call(
        kernel,
        out_shape=jax.ShapeDtypeStruct((B, 1, NUM_LABELS), jnp.float32),
        grid=(B,),
        in_specs=[pl.BlockSpec((1, S, P), lambda b: (b, 0, 0))]
                 + [_const_spec(a) for a in weight_args],
        out_specs=pl.BlockSpec((1, 1, NUM_LABELS), lambda b: (b, 0, 0)),
        compiler_params=pltpu.CompilerParams(
            dimension_semantics=("parallel",)),   # shards the batch across v7x's 2 TensorCores
    )(patches, *weight_args)
    return logits.reshape(B, NUM_LABELS)


# ------------------------- deterministic synthetic parameters -------------------------
def init_params(key):
    P = CHANNELS * TUBELET[0] * TUBELET[1] * TUBELET[2]
    nt, nh, nw = NUM_FRAMES // TUBELET[0], IMG // TUBELET[1], IMG // TUBELET[2]
    n_pos = nt * nh * nw + 1
    keys = iter(jax.random.split(key, 8))

    def rnd(shape):
        return (0.02 * jax.random.normal(next(keys), shape)).astype(jnp.float32)

    zeros = lambda s: jnp.zeros(s, jnp.float32)
    ones = lambda s: jnp.ones(s, jnp.float32)

    return dict(
        patch_w=rnd((P, HIDDEN)), patch_b=zeros((1, HIDDEN)),
        cls=rnd((1, HIDDEN)),
        pos=rnd((1, n_pos, HIDDEN)),
        # per-layer weights stacked along a leading layer axis (static in-kernel loop)
        ln1_g=ones((LAYERS, 1, HIDDEN)), ln1_b=zeros((LAYERS, 1, HIDDEN)),
        wqkv=rnd((LAYERS, HIDDEN, 3 * HIDDEN)), bqkv=zeros((LAYERS, 1, 3 * HIDDEN)),
        wo=rnd((LAYERS, HIDDEN, HIDDEN)), bo=zeros((LAYERS, 1, HIDDEN)),
        ln2_g=ones((LAYERS, 1, HIDDEN)), ln2_b=zeros((LAYERS, 1, HIDDEN)),
        w1=rnd((LAYERS, HIDDEN, INTERMEDIATE)), b1=zeros((LAYERS, 1, INTERMEDIATE)),
        w2=rnd((LAYERS, INTERMEDIATE, HIDDEN)), b2=zeros((LAYERS, 1, HIDDEN)),
        lnf_g=ones((1, HIDDEN)), lnf_b=zeros((1, HIDDEN)),
        head_w=rnd((HIDDEN, NUM_LABELS)), head_b=zeros((1, NUM_LABELS)),
    )


if __name__ == "__main__":
    key = jax.random.PRNGKey(0)
    pkey, xkey = jax.random.split(key)
    params = init_params(pkey)
    pixel_values = jax.random.normal(
        xkey, (2, NUM_FRAMES, CHANNELS, IMG, IMG), dtype=jnp.float32)
    logits = vivit_forward(params, pixel_values)
    jax.block_until_ready(logits)
    assert logits.shape == (2, NUM_LABELS), logits.shape
    assert bool(jnp.all(jnp.isfinite(logits)))
    print("KERNEL_OK")
</pallas_src>

<mosaic_0001>
module attributes {stable_mosaic.version = 11 : i64} {
  func.func @_vivit_fused_kernel(%arg0: i32, %arg1: memref<1x9x96xf32, #tpu.memory_space<vmem>>, %arg2: memref<96x32xf32, #tpu.memory_space<vmem>>, %arg3: memref<1x32xf32, #tpu.memory_space<vmem>>, %arg4: memref<1x32xf32, #tpu.memory_space<vmem>>, %arg5: memref<9x32xf32, #tpu.memory_space<vmem>>, %arg6: memref<2x1x32xf32, #tpu.memory_space<vmem>>, %arg7: memref<2x1x32xf32, #tpu.memory_space<vmem>>, %arg8: memref<2x32x96xf32, #tpu.memory_space<vmem>>, %arg9: memref<2x1x96xf32, #tpu.memory_space<vmem>>, %arg10: memref<2x32x32xf32, #tpu.memory_space<vmem>>, %arg11: memref<2x1x32xf32, #tpu.memory_space<vmem>>, %arg12: memref<2x1x32xf32, #tpu.memory_space<vmem>>, %arg13: memref<2x1x32xf32, #tpu.memory_space<vmem>>, %arg14: memref<2x32x64xf32, #tpu.memory_space<vmem>>, %arg15: memref<2x1x64xf32, #tpu.memory_space<vmem>>, %arg16: memref<2x64x32xf32, #tpu.memory_space<vmem>>, %arg17: memref<2x1x32xf32, #tpu.memory_space<vmem>>, %arg18: memref<1x32xf32, #tpu.memory_space<vmem>>, %arg19: memref<1x32xf32, #tpu.memory_space<vmem>>, %arg20: memref<32x5xf32, #tpu.memory_space<vmem>>, %arg21: memref<1x5xf32, #tpu.memory_space<vmem>>, %arg22: memref<1x1x5xf32, #tpu.memory_space<vmem>>) attributes {dimension_semantics = [#tpu.dimension_semantics<parallel>], iteration_bounds = array<i64: 2>, scalar_prefetch = 0 : i64, scratch_operands = 0 : i64, tpu.core_type = #tpu.core_type<tc>, window_params = [{transform_indices = @transform_0, window_bounds = array<i64: 1, 9, 96>}, {pipeline_mode = #tpu.pipeline_mode<synchronous>, transform_indices = @transform_1, window_bounds = array<i64: 96, 32>}, {pipeline_mode = #tpu.pipeline_mode<synchronous>, transform_indices = @transform_2, window_bounds = array<i64: 1, 32>}, {pipeline_mode = #tpu.pipeline_mode<synchronous>, transform_indices = @transform_3, window_bounds = array<i64: 1, 32>}, {pipeline_mode = #tpu.pipeline_mode<synchronous>, transform_indices = @transform_4, window_bounds = array<i64: 9, 32>}, {pipeline_mode = #tpu.pipeline_mode<synchronous>, transform_indices = @transform_5, window_bounds = array<i64: 2, 1, 32>}, {pipeline_mode = #tpu.pipeline_mode<synchronous>, transform_indices = @transform_6, window_bounds = array<i64: 2, 1, 32>}, {pipeline_mode = #tpu.pipeline_mode<synchronous>, transform_indices = @transform_7, window_bounds = array<i64: 2, 32, 96>}, {pipeline_mode = #tpu.pipeline_mode<synchronous>, transform_indices = @transform_8, window_bounds = array<i64: 2, 1, 96>}, {pipeline_mode = #tpu.pipeline_mode<synchronous>, transform_indices = @transform_9, window_bounds = array<i64: 2, 32, 32>}, {pipeline_mode = #tpu.pipeline_mode<synchronous>, transform_indices = @transform_10, window_bounds = array<i64: 2, 1, 32>}, {pipeline_mode = #tpu.pipeline_mode<synchronous>, transform_indices = @transform_11, window_bounds = array<i64: 2, 1, 32>}, {pipeline_mode = #tpu.pipeline_mode<synchronous>, transform_indices = @transform_12, window_bounds = array<i64: 2, 1, 32>}, {pipeline_mode = #tpu.pipeline_mode<synchronous>, transform_indices = @transform_13, window_bounds = array<i64: 2, 32, 64>}, {pipeline_mode = #tpu.pipeline_mode<synchronous>, transform_indices = @transform_14, window_bounds = array<i64: 2, 1, 64>}, {pipeline_mode = #tpu.pipeline_mode<synchronous>, transform_indices = @transform_15, window_bounds = array<i64: 2, 64, 32>}, {pipeline_mode = #tpu.pipeline_mode<synchronous>, transform_indices = @transform_16, window_bounds = array<i64: 2, 1, 32>}, {pipeline_mode = #tpu.pipeline_mode<synchronous>, transform_indices = @transform_17, window_bounds = array<i64: 1, 32>}, {pipeline_mode = #tpu.pipeline_mode<synchronous>, transform_indices = @transform_18, window_bounds = array<i64: 1, 32>}, {pipeline_mode = #tpu.pipeline_mode<synchronous>, transform_indices = @transform_19, window_bounds = array<i64: 32, 5>}, {pipeline_mode = #tpu.pipeline_mode<synchronous>, transform_indices = @transform_20, window_bounds = array<i64: 1, 5>}, {transform_indices = @transform_21, window_bounds = array<i64: 1, 1, 5>}]} {
    %c0 = arith.constant 0 : index
    %c0_0 = arith.constant 0 : index
    %c0_1 = arith.constant 0 : index
    %0 = vector.load %arg1[%c0, %c0_0, %c0_1] : memref<1x9x96xf32, #tpu.memory_space<vmem>>, vector<1x9x96xf32>
    %1 = vector.shape_cast %0 : vector<1x9x96xf32> to vector<9x96xf32>
    %c0_2 = arith.constant 0 : index
    %c0_3 = arith.constant 0 : index
    %2 = vector.load %arg2[%c0_2, %c0_3] : memref<96x32xf32, #tpu.memory_space<vmem>>, vector<96x32xf32>
    %cst = arith.constant dense<0.000000e+00> : vector<9x32xf32>
    %3 = tpu.matmul %1, %2, %cst {dimension_numbers = #tpu.dot_dimension_numbers<[1], [0], [0], [1], [0, 0, 1, 1], [], []>} : vector<9x96xf32>, vector<96x32xf32>, vector<9x32xf32> -> vector<9x32xf32>
    %c0_4 = arith.constant 0 : index
    %c0_5 = arith.constant 0 : index
    %4 = vector.load %arg3[%c0_4, %c0_5] : memref<1x32xf32, #tpu.memory_space<vmem>>, vector<1x32xf32>
    %5 = vector.broadcast %4 : vector<1x32xf32> to vector<9x32xf32>
    %6 = arith.addf %3, %5 : vector<9x32xf32>
    %7 = tpu.iota {dimensions = array<i32: 0>} : vector<9x32xi32>
    %c0_6 = arith.constant 0 : index
    %c0_7 = arith.constant 0 : index
    %8 = vector.load %arg4[%c0_6, %c0_7] : memref<1x32xf32, #tpu.memory_space<vmem>>, vector<1x32xf32>
    %9 = vector.shape_cast %8 : vector<1x32xf32> to vector<1x32xf32>
    %10 = vector.broadcast %9 : vector<1x32xf32> to vector<9x32xf32>
    %c0_i32 = arith.constant 0 : i32
    %11 = vector.broadcast %c0_i32 : i32 to vector<9x32xi32>
    %12 = arith.cmpi eq, %7, %11 : vector<9x32xi32>
    %13 = arith.select %12, %10, %6 : vector<9x32xi1>, vector<9x32xf32>
    %c0_8 = arith.constant 0 : index
    %c0_9 = arith.constant 0 : index
    %14 = vector.load %arg5[%c0_8, %c0_9] : memref<9x32xf32, #tpu.memory_space<vmem>>, vector<9x32xf32>
    %15 = arith.addf %13, %14 : vector<9x32xf32>
    %c0_10 = arith.constant 0 : index
    %c0_11 = arith.constant 0 : index
    %c0_12 = arith.constant 0 : index
    %16 = vector.load %arg6[%c0_10, %c0_11, %c0_12] : memref<2x1x32xf32, #tpu.memory_space<vmem>>, vector<1x1x32xf32>
    %17 = vector.shape_cast %16 : vector<1x1x32xf32> to vector<1x32xf32>
    %c0_13 = arith.constant 0 : index
    %c0_14 = arith.constant 0 : index
    %c0_15 = arith.constant 0 : index
    %18 = vector.load %arg7[%c0_13, %c0_14, %c0_15] : memref<2x1x32xf32, #tpu.memory_space<vmem>>, vector<1x1x32xf32>
    %19 = vector.shape_cast %18 : vector<1x1x32xf32> to vector<1x32xf32>
    %cst_16 = arith.constant dense<0.000000e+00> : vector<9xf32>
    %20 = vector.multi_reduction <add>, %15, %cst_16 [1] : vector<9x32xf32> to vector<9xf32>
    %21 = vector.shape_cast %20 : vector<9xf32> to vector<9x1xf32>
    %cst_17 = arith.constant 3.200000e+01 : f32
    %22 = vector.broadcast %cst_17 : f32 to vector<9x1xf32>
    %23 = arith.divf %21, %22 : vector<9x1xf32>
    %24 = vector.broadcast %23 : vector<9x1xf32> to vector<9x32xf32>
    %25 = arith.subf %15, %24 : vector<9x32xf32>
    %26 = vector.broadcast %23 : vector<9x1xf32> to vector<9x32xf32>
    %27 = arith.subf %15, %26 : vector<9x32xf32>
    %28 = arith.mulf %25, %27 : vector<9x32xf32>
    %cst_18 = arith.constant dense<0.000000e+00> : vector<9xf32>
    %29 = vector.multi_reduction <add>, %28, %cst_18 [1] : vector<9x32xf32> to vector<9xf32>
    %30 = vector.shape_cast %29 : vector<9xf32> to vector<9x1xf32>
    %cst_19 = arith.constant 3.200000e+01 : f32
    %31 = vector.broadcast %cst_19 : f32 to vector<9x1xf32>
    %32 = arith.divf %30, %31 : vector<9x1xf32>
    %33 = vector.broadcast %23 : vector<9x1xf32> to vector<9x32xf32>
    %34 = arith.subf %15, %33 : vector<9x32xf32>
    %cst_20 = arith.constant 9.99999997E-7 : f32
    %35 = vector.broadcast %cst_20 : f32 to vector<9x1xf32>
    %36 = arith.addf %32, %35 : vector<9x1xf32>
    %37 = math.rsqrt %36 : vector<9x1xf32>
    %38 = vector.broadcast %37 : vector<9x1xf32> to vector<9x32xf32>
    %39 = arith.mulf %34, %38 : vector<9x32xf32>
    %40 = vector.broadcast %17 : vector<1x32xf32> to vector<9x32xf32>
    %41 = arith.mulf %39, %40 : vector<9x32xf32>
    %42 = vector.broadcast %19 : vector<1x32xf32> to vector<9x32xf32>
    %43 = arith.addf %41, %42 : vector<9x32xf32>
    %c0_21 = arith.constant 0 : index
    %c0_22 = arith.constant 0 : index
    %c0_23 = arith.constant 0 : index
    %44 = vector.load %arg8[%c0_21, %c0_22, %c0_23] : memref<2x32x96xf32, #tpu.memory_space<vmem>>, vector<1x32x96xf32>
    %45 = vector.shape_cast %44 : vector<1x32x96xf32> to vector<32x96xf32>
    %cst_24 = arith.constant dense<0.000000e+00> : vector<9x96xf32>
    %46 = tpu.matmul %43, %45, %cst_24 {dimension_numbers = #tpu.dot_dimension_numbers<[1], [0], [0], [1], [0, 0, 1, 1], [], []>} : vector<9x32xf32>, vector<32x96xf32>, vector<9x96xf32> -> vector<9x96xf32>
    %c0_25 = arith.constant 0 : index
    %c0_26 = arith.constant 0 : index
    %c0_27 = arith.constant 0 : index
    %47 = vector.load %arg9[%c0_25, %c0_26, %c0_27] : memref<2x1x96xf32, #tpu.memory_space<vmem>>, vector<1x1x96xf32>
    %48 = vector.shape_cast %47 : vector<1x1x96xf32> to vector<1x96xf32>
    %49 = vector.broadcast %48 : vector<1x96xf32> to vector<9x96xf32>
    %50 = arith.addf %46, %49 : vector<9x96xf32>
    %51 = vector.extract_strided_slice %50 {offsets = [0, 0], sizes = [9, 8], strides = [1, 1]} : vector<9x96xf32> to vector<9x8xf32>
    %52 = vector.extract_strided_slice %50 {offsets = [0, 32], sizes = [9, 8], strides = [1, 1]} : vector<9x96xf32> to vector<9x8xf32>
    %53 = vector.extract_strided_slice %50 {offsets = [0, 64], sizes = [9, 8], strides = [1, 1]} : vector<9x96xf32> to vector<9x8xf32>
    %cst_28 = arith.constant dense<0.000000e+00> : vector<9x9xf32>
    %54 = tpu.matmul %51, %52, %cst_28 {dimension_numbers = #tpu.dot_dimension_numbers<[1], [1], [0], [0], [0, 0, 1, 0], [], []>} : vector<9x8xf32>, vector<9x8xf32>, vector<9x9xf32> -> vector<9x9xf32>
    %cst_29 = arith.constant 0.353553385 : f32
    %55 = vector.broadcast %cst_29 : f32 to vector<9x9xf32>
    %56 = arith.mulf %54, %55 : vector<9x9xf32>
    %cst_30 = arith.constant dense<0xFF800000> : vector<9xf32>
    %57 = vector.multi_reduction <maximumf>, %56, %cst_30 [1] : vector<9x9xf32> to vector<9xf32>
    %58 = vector.shape_cast %57 : vector<9xf32> to vector<9x1xf32>
    %59 = vector.broadcast %58 : vector<9x1xf32> to vector<9x9xf32>
    %60 = arith.subf %56, %59 : vector<9x9xf32>
    %61 = math.exp %60 : vector<9x9xf32>
    %cst_31 = arith.constant dense<0.000000e+00> : vector<9xf32>
    %62 = vector.multi_reduction <add>, %61, %cst_31 [1] : vector<9x9xf32> to vector<9xf32>
    %63 = vector.shape_cast %62 : vector<9xf32> to vector<9x1xf32>
    %64 = tpu.reciprocal %63 {approx = true} : vector<9x1xf32> -> vector<9x1xf32>
    %65 = vector.broadcast %64 : vector<9x1xf32> to vector<9x9xf32>
    %66 = arith.mulf %61, %65 : vector<9x9xf32>
    %cst_32 = arith.constant dense<0.000000e+00> : vector<9x8xf32>
    %67 = tpu.matmul %66, %53, %cst_32 {dimension_numbers = #tpu.dot_dimension_numbers<[1], [0], [0], [1], [0, 0, 1, 1], [], []>} : vector<9x9xf32>, vector<9x8xf32>, vector<9x8xf32> -> vector<9x8xf32>
    %68 = vector.extract_strided_slice %50 {offsets = [0, 8], sizes = [9, 8], strides = [1, 1]} : vector<9x96xf32> to vector<9x8xf32>
    %69 = vector.extract_strided_slice %50 {offsets = [0, 40], sizes = [9, 8], strides = [1, 1]} : vector<9x96xf32> to vector<9x8xf32>
    %70 = vector.extract_strided_slice %50 {offsets = [0, 72], sizes = [9, 8], strides = [1, 1]} : vector<9x96xf32> to vector<9x8xf32>
    %cst_33 = arith.constant dense<0.000000e+00> : vector<9x9xf32>
    %71 = tpu.matmul %68, %69, %cst_33 {dimension_numbers = #tpu.dot_dimension_numbers<[1], [1], [0], [0], [0, 0, 1, 0], [], []>} : vector<9x8xf32>, vector<9x8xf32>, vector<9x9xf32> -> vector<9x9xf32>
    %cst_34 = arith.constant 0.353553385 : f32
    %72 = vector.broadcast %cst_34 : f32 to vector<9x9xf32>
    %73 = arith.mulf %71, %72 : vector<9x9xf32>
    %cst_35 = arith.constant dense<0xFF800000> : vector<9xf32>
    %74 = vector.multi_reduction <maximumf>, %73, %cst_35 [1] : vector<9x9xf32> to vector<9xf32>
    %75 = vector.shape_cast %74 : vector<9xf32> to vector<9x1xf32>
    %76 = vector.broadcast %75 : vector<9x1xf32> to vector<9x9xf32>
    %77 = arith.subf %73, %76 : vector<9x9xf32>
    %78 = math.exp %77 : vector<9x9xf32>
    %cst_36 = arith.constant dense<0.000000e+00> : vector<9xf32>
    %79 = vector.multi_reduction <add>, %78, %cst_36 [1] : vector<9x9xf32> to vector<9xf32>
    %80 = vector.shape_cast %79 : vector<9xf32> to vector<9x1xf32>
    %81 = tpu.reciprocal %80 {approx = true} : vector<9x1xf32> -> vector<9x1xf32>
    %82 = vector.broadcast %81 : vector<9x1xf32> to vector<9x9xf32>
    %83 = arith.mulf %78, %82 : vector<9x9xf32>
    %cst_37 = arith.constant dense<0.000000e+00> : vector<9x8xf32>
    %84 = tpu.matmul %83, %70, %cst_37 {dimension_numbers = #tpu.dot_dimension_numbers<[1], [0], [0], [1], [0, 0, 1, 1], [], []>} : vector<9x9xf32>, vector<9x8xf32>, vector<9x8xf32> -> vector<9x8xf32>
    %85 = vector.extract_strided_slice %50 {offsets = [0, 16], sizes = [9, 8], strides = [1, 1]} : vector<9x96xf32> to vector<9x8xf32>
    %86 = vector.extract_strided_slice %50 {offsets = [0, 48], sizes = [9, 8], strides = [1, 1]} : vector<9x96xf32> to vector<9x8xf32>
    %87 = vector.extract_strided_slice %50 {offsets = [0, 80], sizes = [9, 8], strides = [1, 1]} : vector<9x96xf32> to vector<9x8xf32>
    %cst_38 = arith.constant dense<0.000000e+00> : vector<9x9xf32>
    %88 = tpu.matmul %85, %86, %cst_38 {dimension_numbers = #tpu.dot_dimension_numbers<[1], [1], [0], [0], [0, 0, 1, 0], [], []>} : vector<9x8xf32>, vector<9x8xf32>, vector<9x9xf32> -> vector<9x9xf32>
    %cst_39 = arith.constant 0.353553385 : f32
    %89 = vector.broadcast %cst_39 : f32 to vector<9x9xf32>
    %90 = arith.mulf %88, %89 : vector<9x9xf32>
    %cst_40 = arith.constant dense<0xFF800000> : vector<9xf32>
    %91 = vector.multi_reduction <maximumf>, %90, %cst_40 [1] : vector<9x9xf32> to vector<9xf32>
    %92 = vector.shape_cast %91 : vector<9xf32> to vector<9x1xf32>
    %93 = vector.broadcast %92 : vector<9x1xf32> to vector<9x9xf32>
    %94 = arith.subf %90, %93 : vector<9x9xf32>
    %95 = math.exp %94 : vector<9x9xf32>
    %cst_41 = arith.constant dense<0.000000e+00> : vector<9xf32>
    %96 = vector.multi_reduction <add>, %95, %cst_41 [1] : vector<9x9xf32> to vector<9xf32>
    %97 = vector.shape_cast %96 : vector<9xf32> to vector<9x1xf32>
    %98 = tpu.reciprocal %97 {approx = true} : vector<9x1xf32> -> vector<9x1xf32>
    %99 = vector.broadcast %98 : vector<9x1xf32> to vector<9x9xf32>
    %100 = arith.mulf %95, %99 : vector<9x9xf32>
    %cst_42 = arith.constant dense<0.000000e+00> : vector<9x8xf32>
    %101 = tpu.matmul %100, %87, %cst_42 {dimension_numbers = #tpu.dot_dimension_numbers<[1], [0], [0], [1], [0, 0, 1, 1], [], []>} : vector<9x9xf32>, vector<9x8xf32>, vector<9x8xf32> -> vector<9x8xf32>
    %102 = vector.extract_strided_slice %50 {offsets = [0, 24], sizes = [9, 8], strides = [1, 1]} : vector<9x96xf32> to vector<9x8xf32>
    %103 = vector.extract_strided_slice %50 {offsets = [0, 56], sizes = [9, 8], strides = [1, 1]} : vector<9x96xf32> to vector<9x8xf32>
    %104 = vector.extract_strided_slice %50 {offsets = [0, 88], sizes = [9, 8], strides = [1, 1]} : vector<9x96xf32> to vector<9x8xf32>
    %cst_43 = arith.constant dense<0.000000e+00> : vector<9x9xf32>
    %105 = tpu.matmul %102, %103, %cst_43 {dimension_numbers = #tpu.dot_dimension_numbers<[1], [1], [0], [0], [0, 0, 1, 0], [], []>} : vector<9x8xf32>, vector<9x8xf32>, vector<9x9xf32> -> vector<9x9xf32>
    %cst_44 = arith.constant 0.353553385 : f32
    %106 = vector.broadcast %cst_44 : f32 to vector<9x9xf32>
    %107 = arith.mulf %105, %106 : vector<9x9xf32>
    %cst_45 = arith.constant dense<0xFF800000> : vector<9xf32>
    %108 = vector.multi_reduction <maximumf>, %107, %cst_45 [1] : vector<9x9xf32> to vector<9xf32>
    %109 = vector.shape_cast %108 : vector<9xf32> to vector<9x1xf32>
    %110 = vector.broadcast %109 : vector<9x1xf32> to vector<9x9xf32>
    %111 = arith.subf %107, %110 : vector<9x9xf32>
    %112 = math.exp %111 : vector<9x9xf32>
    %cst_46 = arith.constant dense<0.000000e+00> : vector<9xf32>
    %113 = vector.multi_reduction <add>, %112, %cst_46 [1] : vector<9x9xf32> to vector<9xf32>
    %114 = vector.shape_cast %113 : vector<9xf32> to vector<9x1xf32>
    %115 = tpu.reciprocal %114 {approx = true} : vector<9x1xf32> -> vector<9x1xf32>
    %116 = vector.broadcast %115 : vector<9x1xf32> to vector<9x9xf32>
    %117 = arith.mulf %112, %116 : vector<9x9xf32>
    %cst_47 = arith.constant dense<0.000000e+00> : vector<9x8xf32>
    %118 = tpu.matmul %117, %104, %cst_47 {dimension_numbers = #tpu.dot_dimension_numbers<[1], [0], [0], [1], [0, 0, 1, 1], [], []>} : vector<9x9xf32>, vector<9x8xf32>, vector<9x8xf32> -> vector<9x8xf32>
    %119 = tpu.concatenate %67, %84, %101, %118 in 1 : vector<9x8xf32>, vector<9x8xf32>, vector<9x8xf32>, vector<9x8xf32> -> vector<9x32xf32>
    %c0_48 = arith.constant 0 : index
    %c0_49 = arith.constant 0 : index
    %c0_50 = arith.constant 0 : index
    %120 = vector.load %arg10[%c0_48, %c0_49, %c0_50] : memref<2x32x32xf32, #tpu.memory_space<vmem>>, vector<1x32x32xf32>
    %121 = vector.shape_cast %120 : vector<1x32x32xf32> to vector<32x32xf32>
    %cst_51 = arith.constant dense<0.000000e+00> : vector<9x32xf32>
    %122 = tpu.matmul %119, %121, %cst_51 {dimension_numbers = #tpu.dot_dimension_numbers<[1], [0], [0], [1], [0, 0, 1, 1], [], []>} : vector<9x32xf32>, vector<32x32xf32>, vector<9x32xf32> -> vector<9x32xf32>
    %c0_52 = arith.constant 0 : index
    %c0_53 = arith.constant 0 : index
    %c0_54 = arith.constant 0 : index
    %123 = vector.load %arg11[%c0_52, %c0_53, %c0_54] : memref<2x1x32xf32, #tpu.memory_space<vmem>>, vector<1x1x32xf32>
    %124 = vector.shape_cast %123 : vector<1x1x32xf32> to vector<1x32xf32>
    %125 = vector.broadcast %124 : vector<1x32xf32> to vector<9x32xf32>
    %126 = arith.addf %122, %125 : vector<9x32xf32>
    %127 = arith.addf %126, %15 : vector<9x32xf32>
    %c0_55 = arith.constant 0 : index
    %c0_56 = arith.constant 0 : index
    %c0_57 = arith.constant 0 : index
    %128 = vector.load %arg12[%c0_55, %c0_56, %c0_57] : memref<2x1x32xf32, #tpu.memory_space<vmem>>, vector<1x1x32xf32>
    %129 = vector.shape_cast %128 : vector<1x1x32xf32> to vector<1x32xf32>
    %c0_58 = arith.constant 0 : index
    %c0_59 = arith.constant 0 : index
    %c0_60 = arith.constant 0 : index
    %130 = vector.load %arg13[%c0_58, %c0_59, %c0_60] : memref<2x1x32xf32, #tpu.memory_space<vmem>>, vector<1x1x32xf32>
    %131 = vector.shape_cast %130 : vector<1x1x32xf32> to vector<1x32xf32>
    %cst_61 = arith.constant dense<0.000000e+00> : vector<9xf32>
    %132 = vector.multi_reduction <add>, %127, %cst_61 [1] : vector<9x32xf32> to vector<9xf32>
    %133 = vector.shape_cast %132 : vector<9xf32> to vector<9x1xf32>
    %cst_62 = arith.constant 3.200000e+01 : f32
    %134 = vector.broadcast %cst_62 : f32 to vector<9x1xf32>
    %135 = arith.divf %133, %134 : vector<9x1xf32>
    %136 = vector.broadcast %135 : vector<9x1xf32> to vector<9x32xf32>
    %137 = arith.subf %127, %136 : vector<9x32xf32>
    %138 = vector.broadcast %135 : vector<9x1xf32> to vector<9x32xf32>
    %139 = arith.subf %127, %138 : vector<9x32xf32>
    %140 = arith.mulf %137, %139 : vector<9x32xf32>
    %cst_63 = arith.constant dense<0.000000e+00> : vector<9xf32>
    %141 = vector.multi_reduction <add>, %140, %cst_63 [1] : vector<9x32xf32> to vector<9xf32>
    %142 = vector.shape_cast %141 : vector<9xf32> to vector<9x1xf32>
    %cst_64 = arith.constant 3.200000e+01 : f32
    %143 = vector.broadcast %cst_64 : f32 to vector<9x1xf32>
    %144 = arith.divf %142, %143 : vector<9x1xf32>
    %145 = vector.broadcast %135 : vector<9x1xf32> to vector<9x32xf32>
    %146 = arith.subf %127, %145 : vector<9x32xf32>
    %cst_65 = arith.constant 9.99999997E-7 : f32
    %147 = vector.broadcast %cst_65 : f32 to vector<9x1xf32>
    %148 = arith.addf %144, %147 : vector<9x1xf32>
    %149 = math.rsqrt %148 : vector<9x1xf32>
    %150 = vector.broadcast %149 : vector<9x1xf32> to vector<9x32xf32>
    %151 = arith.mulf %146, %150 : vector<9x32xf32>
    %152 = vector.broadcast %129 : vector<1x32xf32> to vector<9x32xf32>
    %153 = arith.mulf %151, %152 : vector<9x32xf32>
    %154 = vector.broadcast %131 : vector<1x32xf32> to vector<9x32xf32>
    %155 = arith.addf %153, %154 : vector<9x32xf32>
    %c0_66 = arith.constant 0 : index
    %c0_67 = arith.constant 0 : index
    %c0_68 = arith.constant 0 : index
    %156 = vector.load %arg14[%c0_66, %c0_67, %c0_68] : memref<2x32x64xf32, #tpu.memory_space<vmem>>, vector<1x32x64xf32>
    %157 = vector.shape_cast %156 : vector<1x32x64xf32> to vector<32x64xf32>
    %cst_69 = arith.constant dense<0.000000e+00> : vector<9x64xf32>
    %158 = tpu.matmul %155, %157, %cst_69 {dimension_numbers = #tpu.dot_dimension_numbers<[1], [0], [0], [1], [0, 0, 1, 1], [], []>} : vector<9x32xf32>, vector<32x64xf32>, vector<9x64xf32> -> vector<9x64xf32>
    %c0_70 = arith.constant 0 : index
    %c0_71 = arith.constant 0 : index
    %c0_72 = arith.constant 0 : index
    %159 = vector.load %arg15[%c0_70, %c0_71, %c0_72] : memref<2x1x64xf32, #tpu.memory_space<vmem>>, vector<1x1x64xf32>
    %160 = vector.shape_cast %159 : vector<1x1x64xf32> to vector<1x64xf32>
    %161 = vector.broadcast %160 : vector<1x64xf32> to vector<9x64xf32>
    %162 = arith.addf %158, %161 : vector<9x64xf32>
    %cst_73 = arith.constant 5.000000e-01 : f32
    %163 = vector.broadcast %cst_73 : f32 to vector<9x64xf32>
    %164 = arith.mulf %163, %162 : vector<9x64xf32>
    %cst_74 = arith.constant 4.471500e-02 : f32
    %165 = vector.broadcast %cst_74 : f32 to vector<9x64xf32>
    %166 = arith.mulf %165, %162 : vector<9x64xf32>
    %167 = arith.mulf %166, %162 : vector<9x64xf32>
    %168 = arith.mulf %167, %162 : vector<9x64xf32>
    %169 = arith.addf %162, %168 : vector<9x64xf32>
    %cst_75 = arith.constant 0.797884583 : f32
    %170 = vector.broadcast %cst_75 : f32 to vector<9x64xf32>
    %171 = arith.mulf %170, %169 : vector<9x64xf32>
    %172 = math.tanh %171 : vector<9x64xf32>
    %cst_76 = arith.constant 1.000000e+00 : f32
    %173 = vector.broadcast %cst_76 : f32 to vector<9x64xf32>
    %174 = arith.addf %173, %172 : vector<9x64xf32>
    %175 = arith.mulf %164, %174 : vector<9x64xf32>
    %c0_77 = arith.constant 0 : index
    %c0_78 = arith.constant 0 : index
    %c0_79 = arith.constant 0 : index
    %176 = vector.load %arg16[%c0_77, %c0_78, %c0_79] : memref<2x64x32xf32, #tpu.memory_space<vmem>>, vector<1x64x32xf32>
    %177 = vector.shape_cast %176 : vector<1x64x32xf32> to vector<64x32xf32>
    %cst_80 = arith.constant dense<0.000000e+00> : vector<9x32xf32>
    %178 = tpu.matmul %175, %177, %cst_80 {dimension_numbers = #tpu.dot_dimension_numbers<[1], [0], [0], [1], [0, 0, 1, 1], [], []>} : vector<9x64xf32>, vector<64x32xf32>, vector<9x32xf32> -> vector<9x32xf32>
    %c0_81 = arith.constant 0 : index
    %c0_82 = arith.constant 0 : index
    %c0_83 = arith.constant 0 : index
    %179 = vector.load %arg17[%c0_81, %c0_82, %c0_83] : memref<2x1x32xf32, #tpu.memory_space<vmem>>, vector<1x1x32xf32>
    %180 = vector.shape_cast %179 : vector<1x1x32xf32> to vector<1x32xf32>
    %181 = vector.broadcast %180 : vector<1x32xf32> to vector<9x32xf32>
    %182 = arith.addf %178, %181 : vector<9x32xf32>
    %183 = arith.addf %182, %127 : vector<9x32xf32>
    %c1 = arith.constant 1 : index
    %c0_84 = arith.constant 0 : index
    %c0_85 = arith.constant 0 : index
    %184 = vector.load %arg6[%c1, %c0_84, %c0_85] : memref<2x1x32xf32, #tpu.memory_space<vmem>>, vector<1x1x32xf32>
    %185 = vector.shape_cast %184 : vector<1x1x32xf32> to vector<1x32xf32>
    %c1_86 = arith.constant 1 : index
    %c0_87 = arith.constant 0 : index
    %c0_88 = arith.constant 0 : index
    %186 = vector.load %arg7[%c1_86, %c0_87, %c0_88] : memref<2x1x32xf32, #tpu.memory_space<vmem>>, vector<1x1x32xf32>
    %187 = vector.shape_cast %186 : vector<1x1x32xf32> to vector<1x32xf32>
    %cst_89 = arith.constant dense<0.000000e+00> : vector<9xf32>
    %188 = vector.multi_reduction <add>, %183, %cst_89 [1] : vector<9x32xf32> to vector<9xf32>
    %189 = vector.shape_cast %188 : vector<9xf32> to vector<9x1xf32>
    %cst_90 = arith.constant 3.200000e+01 : f32
    %190 = vector.broadcast %cst_90 : f32 to vector<9x1xf32>
    %191 = arith.divf %189, %190 : vector<9x1xf32>
    %192 = vector.broadcast %191 : vector<9x1xf32> to vector<9x32xf32>
    %193 = arith.subf %183, %192 : vector<9x32xf32>
    %194 = vector.broadcast %191 : vector<9x1xf32> to vector<9x32xf32>
    %195 = arith.subf %183, %194 : vector<9x32xf32>
    %196 = arith.mulf %193, %195 : vector<9x32xf32>
    %cst_91 = arith.constant dense<0.000000e+00> : vector<9xf32>
    %197 = vector.multi_reduction <add>, %196, %cst_91 [1] : vector<9x32xf32> to vector<9xf32>
    %198 = vector.shape_cast %197 : vector<9xf32> to vector<9x1xf32>
    %cst_92 = arith.constant 3.200000e+01 : f32
    %199 = vector.broadcast %cst_92 : f32 to vector<9x1xf32>
    %200 = arith.divf %198, %199 : vector<9x1xf32>
    %201 = vector.broadcast %191 : vector<9x1xf32> to vector<9x32xf32>
    %202 = arith.subf %183, %201 : vector<9x32xf32>
    %cst_93 = arith.constant 9.99999997E-7 : f32
    %203 = vector.broadcast %cst_93 : f32 to vector<9x1xf32>
    %204 = arith.addf %200, %203 : vector<9x1xf32>
    %205 = math.rsqrt %204 : vector<9x1xf32>
    %206 = vector.broadcast %205 : vector<9x1xf32> to vector<9x32xf32>
    %207 = arith.mulf %202, %206 : vector<9x32xf32>
    %208 = vector.broadcast %185 : vector<1x32xf32> to vector<9x32xf32>
    %209 = arith.mulf %207, %208 : vector<9x32xf32>
    %210 = vector.broadcast %187 : vector<1x32xf32> to vector<9x32xf32>
    %211 = arith.addf %209, %210 : vector<9x32xf32>
    %c1_94 = arith.constant 1 : index
    %c0_95 = arith.constant 0 : index
    %c0_96 = arith.constant 0 : index
    %212 = vector.load %arg8[%c1_94, %c0_95, %c0_96] : memref<2x32x96xf32, #tpu.memory_space<vmem>>, vector<1x32x96xf32>
    %213 = vector.shape_cast %212 : vector<1x32x96xf32> to vector<32x96xf32>
    %cst_97 = arith.constant dense<0.000000e+00> : vector<9x96xf32>
    %214 = tpu.matmul %211, %213, %cst_97 {dimension_numbers = #tpu.dot_dimension_numbers<[1], [0], [0], [1], [0, 0, 1, 1], [], []>} : vector<9x32xf32>, vector<32x96xf32>, vector<9x96xf32> -> vector<9x96xf32>
    %c1_98 = arith.constant 1 : index
    %c0_99 = arith.constant 0 : index
    %c0_100 = arith.constant 0 : index
    %215 = vector.load %arg9[%c1_98, %c0_99, %c0_100] : memref<2x1x96xf32, #tpu.memory_space<vmem>>, vector<1x1x96xf32>
    %216 = vector.shape_cast %215 : vector<1x1x96xf32> to vector<1x96xf32>
    %217 = vector.broadcast %216 : vector<1x96xf32> to vector<9x96xf32>
    %218 = arith.addf %214, %217 : vector<9x96xf32>
    %219 = vector.extract_strided_slice %218 {offsets = [0, 0], sizes = [9, 8], strides = [1, 1]} : vector<9x96xf32> to vector<9x8xf32>
    %220 = vector.extract_strided_slice %218 {offsets = [0, 32], sizes = [9, 8], strides = [1, 1]} : vector<9x96xf32> to vector<9x8xf32>
    %221 = vector.extract_strided_slice %218 {offsets = [0, 64], sizes = [9, 8], strides = [1, 1]} : vector<9x96xf32> to vector<9x8xf32>
    %cst_101 = arith.constant dense<0.000000e+00> : vector<9x9xf32>
    %222 = tpu.matmul %219, %220, %cst_101 {dimension_numbers = #tpu.dot_dimension_numbers<[1], [1], [0], [0], [0, 0, 1, 0], [], []>} : vector<9x8xf32>, vector<9x8xf32>, vector<9x9xf32> -> vector<9x9xf32>
    %cst_102 = arith.constant 0.353553385 : f32
    %223 = vector.broadcast %cst_102 : f32 to vector<9x9xf32>
    %224 = arith.mulf %222, %223 : vector<9x9xf32>
    %cst_103 = arith.constant dense<0xFF800000> : vector<9xf32>
    %225 = vector.multi_reduction <maximumf>, %224, %cst_103 [1] : vector<9x9xf32> to vector<9xf32>
    %226 = vector.shape_cast %225 : vector<9xf32> to vector<9x1xf32>
    %227 = vector.broadcast %226 : vector<9x1xf32> to vector<9x9xf32>
    %228 = arith.subf %224, %227 : vector<9x9xf32>
    %229 = math.exp %228 : vector<9x9xf32>
    %cst_104 = arith.constant dense<0.000000e+00> : vector<9xf32>
    %230 = vector.multi_reduction <add>, %229, %cst_104 [1] : vector<9x9xf32> to vector<9xf32>
    %231 = vector.shape_cast %230 : vector<9xf32> to vector<9x1xf32>
    %232 = tpu.reciprocal %231 {approx = true} : vector<9x1xf32> -> vector<9x1xf32>
    %233 = vector.broadcast %232 : vector<9x1xf32> to vector<9x9xf32>
    %234 = arith.mulf %229, %233 : vector<9x9xf32>
    %cst_105 = arith.constant dense<0.000000e+00> : vector<9x8xf32>
    %235 = tpu.matmul %234, %221, %cst_105 {dimension_numbers = #tpu.dot_dimension_numbers<[1], [0], [0], [1], [0, 0, 1, 1], [], []>} : vector<9x9xf32>, vector<9x8xf32>, vector<9x8xf32> -> vector<9x8xf32>
    %236 = vector.extract_strided_slice %218 {offsets = [0, 8], sizes = [9, 8], strides = [1, 1]} : vector<9x96xf32> to vector<9x8xf32>
    %237 = vector.extract_strided_slice %218 {offsets = [0, 40], sizes = [9, 8], strides = [1, 1]} : vector<9x96xf32> to vector<9x8xf32>
    %238 = vector.extract_strided_slice %218 {offsets = [0, 72], sizes = [9, 8], strides = [1, 1]} : vector<9x96xf32> to vector<9x8xf32>
    %cst_106 = arith.constant dense<0.000000e+00> : vector<9x9xf32>
    %239 = tpu.matmul %236, %237, %cst_106 {dimension_numbers = #tpu.dot_dimension_numbers<[1], [1], [0], [0], [0, 0, 1, 0], [], []>} : vector<9x8xf32>, vector<9x8xf32>, vector<9x9xf32> -> vector<9x9xf32>
    %cst_107 = arith.constant 0.353553385 : f32
    %240 = vector.broadcast %cst_107 : f32 to vector<9x9xf32>
    %241 = arith.mulf %239, %240 : vector<9x9xf32>
    %cst_108 = arith.constant dense<0xFF800000> : vector<9xf32>
    %242 = vector.multi_reduction <maximumf>, %241, %cst_108 [1] : vector<9x9xf32> to vector<9xf32>
    %243 = vector.shape_cast %242 : vector<9xf32> to vector<9x1xf32>
    %244 = vector.broadcast %243 : vector<9x1xf32> to vector<9x9xf32>
    %245 = arith.subf %241, %244 : vector<9x9xf32>
    %246 = math.exp %245 : vector<9x9xf32>
    %cst_109 = arith.constant dense<0.000000e+00> : vector<9xf32>
    %247 = vector.multi_reduction <add>, %246, %cst_109 [1] : vector<9x9xf32> to vector<9xf32>
    %248 = vector.shape_cast %247 : vector<9xf32> to vector<9x1xf32>
    %249 = tpu.reciprocal %248 {approx = true} : vector<9x1xf32> -> vector<9x1xf32>
    %250 = vector.broadcast %249 : vector<9x1xf32> to vector<9x9xf32>
    %251 = arith.mulf %246, %250 : vector<9x9xf32>
    %cst_110 = arith.constant dense<0.000000e+00> : vector<9x8xf32>
    %252 = tpu.matmul %251, %238, %cst_110 {dimension_numbers = #tpu.dot_dimension_numbers<[1], [0], [0], [1], [0, 0, 1, 1], [], []>} : vector<9x9xf32>, vector<9x8xf32>, vector<9x8xf32> -> vector<9x8xf32>
    %253 = vector.extract_strided_slice %218 {offsets = [0, 16], sizes = [9, 8], strides = [1, 1]} : vector<9x96xf32> to vector<9x8xf32>
    %254 = vector.extract_strided_slice %218 {offsets = [0, 48], sizes = [9, 8], strides = [1, 1]} : vector<9x96xf32> to vector<9x8xf32>
    %255 = vector.extract_strided_slice %218 {offsets = [0, 80], sizes = [9, 8], strides = [1, 1]} : vector<9x96xf32> to vector<9x8xf32>
    %cst_111 = arith.constant dense<0.000000e+00> : vector<9x9xf32>
    %256 = tpu.matmul %253, %254, %cst_111 {dimension_numbers = #tpu.dot_dimension_numbers<[1], [1], [0], [0], [0, 0, 1, 0], [], []>} : vector<9x8xf32>, vector<9x8xf32>, vector<9x9xf32> -> vector<9x9xf32>
    %cst_112 = arith.constant 0.353553385 : f32
    %257 = vector.broadcast %cst_112 : f32 to vector<9x9xf32>
    %258 = arith.mulf %256, %257 : vector<9x9xf32>
    %cst_113 = arith.constant dense<0xFF800000> : vector<9xf32>
    %259 = vector.multi_reduction <maximumf>, %258, %cst_113 [1] : vector<9x9xf32> to vector<9xf32>
    %260 = vector.shape_cast %259 : vector<9xf32> to vector<9x1xf32>
    %261 = vector.broadcast %260 : vector<9x1xf32> to vector<9x9xf32>
    %262 = arith.subf %258, %261 : vector<9x9xf32>
    %263 = math.exp %262 : vector<9x9xf32>
    %cst_114 = arith.constant dense<0.000000e+00> : vector<9xf32>
    %264 = vector.multi_reduction <add>, %263, %cst_114 [1] : vector<9x9xf32> to vector<9xf32>
    %265 = vector.shape_cast %264 : vector<9xf32> to vector<9x1xf32>
    %266 = tpu.reciprocal %265 {approx = true} : vector<9x1xf32> -> vector<9x1xf32>
    %267 = vector.broadcast %266 : vector<9x1xf32> to vector<9x9xf32>
    %268 = arith.mulf %263, %267 : vector<9x9xf32>
    %cst_115 = arith.constant dense<0.000000e+00> : vector<9x8xf32>
    %269 = tpu.matmul %268, %255, %cst_115 {dimension_numbers = #tpu.dot_dimension_numbers<[1], [0], [0], [1], [0, 0, 1, 1], [], []>} : vector<9x9xf32>, vector<9x8xf32>, vector<9x8xf32> -> vector<9x8xf32>
    %270 = vector.extract_strided_slice %218 {offsets = [0, 24], sizes = [9, 8], strides = [1, 1]} : vector<9x96xf32> to vector<9x8xf32>
    %271 = vector.extract_strided_slice %218 {offsets = [0, 56], sizes = [9, 8], strides = [1, 1]} : vector<9x96xf32> to vector<9x8xf32>
    %272 = vector.extract_strided_slice %218 {offsets = [0, 88], sizes = [9, 8], strides = [1, 1]} : vector<9x96xf32> to vector<9x8xf32>
    %cst_116 = arith.constant dense<0.000000e+00> : vector<9x9xf32>
    %273 = tpu.matmul %270, %271, %cst_116 {dimension_numbers = #tpu.dot_dimension_numbers<[1], [1], [0], [0], [0, 0, 1, 0], [], []>} : vector<9x8xf32>, vector<9x8xf32>, vector<9x9xf32> -> vector<9x9xf32>
    %cst_117 = arith.constant 0.353553385 : f32
    %274 = vector.broadcast %cst_117 : f32 to vector<9x9xf32>
    %275 = arith.mulf %273, %274 : vector<9x9xf32>
    %cst_118 = arith.constant dense<0xFF800000> : vector<9xf32>
    %276 = vector.multi_reduction <maximumf>, %275, %cst_118 [1] : vector<9x9xf32> to vector<9xf32>
    %277 = vector.shape_cast %276 : vector<9xf32> to vector<9x1xf32>
    %278 = vector.broadcast %277 : vector<9x1xf32> to vector<9x9xf32>
    %279 = arith.subf %275, %278 : vector<9x9xf32>
    %280 = math.exp %279 : vector<9x9xf32>
    %cst_119 = arith.constant dense<0.000000e+00> : vector<9xf32>
    %281 = vector.multi_reduction <add>, %280, %cst_119 [1] : vector<9x9xf32> to vector<9xf32>
    %282 = vector.shape_cast %281 : vector<9xf32> to vector<9x1xf32>
    %283 = tpu.reciprocal %282 {approx = true} : vector<9x1xf32> -> vector<9x1xf32>
    %284 = vector.broadcast %283 : vector<9x1xf32> to vector<9x9xf32>
    %285 = arith.mulf %280, %284 : vector<9x9xf32>
    %cst_120 = arith.constant dense<0.000000e+00> : vector<9x8xf32>
    %286 = tpu.matmul %285, %272, %cst_120 {dimension_numbers = #tpu.dot_dimension_numbers<[1], [0], [0], [1], [0, 0, 1, 1], [], []>} : vector<9x9xf32>, vector<9x8xf32>, vector<9x8xf32> -> vector<9x8xf32>
    %287 = tpu.concatenate %235, %252, %269, %286 in 1 : vector<9x8xf32>, vector<9x8xf32>, vector<9x8xf32>, vector<9x8xf32> -> vector<9x32xf32>
    %c1_121 = arith.constant 1 : index
    %c0_122 = arith.constant 0 : index
    %c0_123 = arith.constant 0 : index
    %288 = vector.load %arg10[%c1_121, %c0_122, %c0_123] : memref<2x32x32xf32, #tpu.memory_space<vmem>>, vector<1x32x32xf32>
    %289 = vector.shape_cast %288 : vector<1x32x32xf32> to vector<32x32xf32>
    %cst_124 = arith.constant dense<0.000000e+00> : vector<9x32xf32>
    %290 = tpu.matmul %287, %289, %cst_124 {dimension_numbers = #tpu.dot_dimension_numbers<[1], [0], [0], [1], [0, 0, 1, 1], [], []>} : vector<9x32xf32>, vector<32x32xf32>, vector<9x32xf32> -> vector<9x32xf32>
    %c1_125 = arith.constant 1 : index
    %c0_126 = arith.constant 0 : index
    %c0_127 = arith.constant 0 : index
    %291 = vector.load %arg11[%c1_125, %c0_126, %c0_127] : memref<2x1x32xf32, #tpu.memory_space<vmem>>, vector<1x1x32xf32>
    %292 = vector.shape_cast %291 : vector<1x1x32xf32> to vector<1x32xf32>
    %293 = vector.broadcast %292 : vector<1x32xf32> to vector<9x32xf32>
    %294 = arith.addf %290, %293 : vector<9x32xf32>
    %295 = arith.addf %294, %183 : vector<9x32xf32>
    %c1_128 = arith.constant 1 : index
    %c0_129 = arith.constant 0 : index
    %c0_130 = arith.constant 0 : index
    %296 = vector.load %arg12[%c1_128, %c0_129, %c0_130] : memref<2x1x32xf32, #tpu.memory_space<vmem>>, vector<1x1x32xf32>
    %297 = vector.shape_cast %296 : vector<1x1x32xf32> to vector<1x32xf32>
    %c1_131 = arith.constant 1 : index
    %c0_132 = arith.constant 0 : index
    %c0_133 = arith.constant 0 : index
    %298 = vector.load %arg13[%c1_131, %c0_132, %c0_133] : memref<2x1x32xf32, #tpu.memory_space<vmem>>, vector<1x1x32xf32>
    %299 = vector.shape_cast %298 : vector<1x1x32xf32> to vector<1x32xf32>
    %cst_134 = arith.constant dense<0.000000e+00> : vector<9xf32>
    %300 = vector.multi_reduction <add>, %295, %cst_134 [1] : vector<9x32xf32> to vector<9xf32>
    %301 = vector.shape_cast %300 : vector<9xf32> to vector<9x1xf32>
    %cst_135 = arith.constant 3.200000e+01 : f32
    %302 = vector.broadcast %cst_135 : f32 to vector<9x1xf32>
    %303 = arith.divf %301, %302 : vector<9x1xf32>
    %304 = vector.broadcast %303 : vector<9x1xf32> to vector<9x32xf32>
    %305 = arith.subf %295, %304 : vector<9x32xf32>
    %306 = vector.broadcast %303 : vector<9x1xf32> to vector<9x32xf32>
    %307 = arith.subf %295, %306 : vector<9x32xf32>
    %308 = arith.mulf %305, %307 : vector<9x32xf32>
    %cst_136 = arith.constant dense<0.000000e+00> : vector<9xf32>
    %309 = vector.multi_reduction <add>, %308, %cst_136 [1] : vector<9x32xf32> to vector<9xf32>
    %310 = vector.shape_cast %309 : vector<9xf32> to vector<9x1xf32>
    %cst_137 = arith.constant 3.200000e+01 : f32
    %311 = vector.broadcast %cst_137 : f32 to vector<9x1xf32>
    %312 = arith.divf %310, %311 : vector<9x1xf32>
    %313 = vector.broadcast %303 : vector<9x1xf32> to vector<9x32xf32>
    %314 = arith.subf %295, %313 : vector<9x32xf32>
    %cst_138 = arith.constant 9.99999997E-7 : f32
    %315 = vector.broadcast %cst_138 : f32 to vector<9x1xf32>
    %316 = arith.addf %312, %315 : vector<9x1xf32>
    %317 = math.rsqrt %316 : vector<9x1xf32>
    %318 = vector.broadcast %317 : vector<9x1xf32> to vector<9x32xf32>
    %319 = arith.mulf %314, %318 : vector<9x32xf32>
    %320 = vector.broadcast %297 : vector<1x32xf32> to vector<9x32xf32>
    %321 = arith.mulf %319, %320 : vector<9x32xf32>
    %322 = vector.broadcast %299 : vector<1x32xf32> to vector<9x32xf32>
    %323 = arith.addf %321, %322 : vector<9x32xf32>
    %c1_139 = arith.constant 1 : index
    %c0_140 = arith.constant 0 : index
    %c0_141 = arith.constant 0 : index
    %324 = vector.load %arg14[%c1_139, %c0_140, %c0_141] : memref<2x32x64xf32, #tpu.memory_space<vmem>>, vector<1x32x64xf32>
    %325 = vector.shape_cast %324 : vector<1x32x64xf32> to vector<32x64xf32>
    %cst_142 = arith.constant dense<0.000000e+00> : vector<9x64xf32>
    %326 = tpu.matmul %323, %325, %cst_142 {dimension_numbers = #tpu.dot_dimension_numbers<[1], [0], [0], [1], [0, 0, 1, 1], [], []>} : vector<9x32xf32>, vector<32x64xf32>, vector<9x64xf32> -> vector<9x64xf32>
    %c1_143 = arith.constant 1 : index
    %c0_144 = arith.constant 0 : index
    %c0_145 = arith.constant 0 : index
    %327 = vector.load %arg15[%c1_143, %c0_144, %c0_145] : memref<2x1x64xf32, #tpu.memory_space<vmem>>, vector<1x1x64xf32>
    %328 = vector.shape_cast %327 : vector<1x1x64xf32> to vector<1x64xf32>
    %329 = vector.broadcast %328 : vector<1x64xf32> to vector<9x64xf32>
    %330 = arith.addf %326, %329 : vector<9x64xf32>
    %cst_146 = arith.constant 5.000000e-01 : f32
    %331 = vector.broadcast %cst_146 : f32 to vector<9x64xf32>
    %332 = arith.mulf %331, %330 : vector<9x64xf32>
    %cst_147 = arith.constant 4.471500e-02 : f32
    %333 = vector.broadcast %cst_147 : f32 to vector<9x64xf32>
    %334 = arith.mulf %333, %330 : vector<9x64xf32>
    %335 = arith.mulf %334, %330 : vector<9x64xf32>
    %336 = arith.mulf %335, %330 : vector<9x64xf32>
    %337 = arith.addf %330, %336 : vector<9x64xf32>
    %cst_148 = arith.constant 0.797884583 : f32
    %338 = vector.broadcast %cst_148 : f32 to vector<9x64xf32>
    %339 = arith.mulf %338, %337 : vector<9x64xf32>
    %340 = math.tanh %339 : vector<9x64xf32>
    %cst_149 = arith.constant 1.000000e+00 : f32
    %341 = vector.broadcast %cst_149 : f32 to vector<9x64xf32>
    %342 = arith.addf %341, %340 : vector<9x64xf32>
    %343 = arith.mulf %332, %342 : vector<9x64xf32>
    %c1_150 = arith.constant 1 : index
    %c0_151 = arith.constant 0 : index
    %c0_152 = arith.constant 0 : index
    %344 = vector.load %arg16[%c1_150, %c0_151, %c0_152] : memref<2x64x32xf32, #tpu.memory_space<vmem>>, vector<1x64x32xf32>
    %345 = vector.shape_cast %344 : vector<1x64x32xf32> to vector<64x32xf32>
    %cst_153 = arith.constant dense<0.000000e+00> : vector<9x32xf32>
    %346 = tpu.matmul %343, %345, %cst_153 {dimension_numbers = #tpu.dot_dimension_numbers<[1], [0], [0], [1], [0, 0, 1, 1], [], []>} : vector<9x64xf32>, vector<64x32xf32>, vector<9x32xf32> -> vector<9x32xf32>
    %c1_154 = arith.constant 1 : index
    %c0_155 = arith.constant 0 : index
    %c0_156 = arith.constant 0 : index
    %347 = vector.load %arg17[%c1_154, %c0_155, %c0_156] : memref<2x1x32xf32, #tpu.memory_space<vmem>>, vector<1x1x32xf32>
    %348 = vector.shape_cast %347 : vector<1x1x32xf32> to vector<1x32xf32>
    %349 = vector.broadcast %348 : vector<1x32xf32> to vector<9x32xf32>
    %350 = arith.addf %346, %349 : vector<9x32xf32>
    %351 = arith.addf %350, %295 : vector<9x32xf32>
    %c0_157 = arith.constant 0 : index
    %c0_158 = arith.constant 0 : index
    %352 = vector.load %arg18[%c0_157, %c0_158] : memref<1x32xf32, #tpu.memory_space<vmem>>, vector<1x32xf32>
    %c0_159 = arith.constant 0 : index
    %c0_160 = arith.constant 0 : index
    %353 = vector.load %arg19[%c0_159, %c0_160] : memref<1x32xf32, #tpu.memory_space<vmem>>, vector<1x32xf32>
    %cst_161 = arith.constant dense<0.000000e+00> : vector<9xf32>
    %354 = vector.multi_reduction <add>, %351, %cst_161 [1] : vector<9x32xf32> to vector<9xf32>
    %355 = vector.shape_cast %354 : vector<9xf32> to vector<9x1xf32>
    %cst_162 = arith.constant 3.200000e+01 : f32
    %356 = vector.broadcast %cst_162 : f32 to vector<9x1xf32>
    %357 = arith.divf %355, %356 : vector<9x1xf32>
    %358 = vector.broadcast %357 : vector<9x1xf32> to vector<9x32xf32>
    %359 = arith.subf %351, %358 : vector<9x32xf32>
    %360 = vector.broadcast %357 : vector<9x1xf32> to vector<9x32xf32>
    %361 = arith.subf %351, %360 : vector<9x32xf32>
    %362 = arith.mulf %359, %361 : vector<9x32xf32>
    %cst_163 = arith.constant dense<0.000000e+00> : vector<9xf32>
    %363 = vector.multi_reduction <add>, %362, %cst_163 [1] : vector<9x32xf32> to vector<9xf32>
    %364 = vector.shape_cast %363 : vector<9xf32> to vector<9x1xf32>
    %cst_164 = arith.constant 3.200000e+01 : f32
    %365 = vector.broadcast %cst_164 : f32 to vector<9x1xf32>
    %366 = arith.divf %364, %365 : vector<9x1xf32>
    %367 = vector.broadcast %357 : vector<9x1xf32> to vector<9x32xf32>
    %368 = arith.subf %351, %367 : vector<9x32xf32>
    %cst_165 = arith.constant 9.99999997E-7 : f32
    %369 = vector.broadcast %cst_165 : f32 to vector<9x1xf32>
    %370 = arith.addf %366, %369 : vector<9x1xf32>
    %371 = math.rsqrt %370 : vector<9x1xf32>
    %372 = vector.broadcast %371 : vector<9x1xf32> to vector<9x32xf32>
    %373 = arith.mulf %368, %372 : vector<9x32xf32>
    %374 = vector.broadcast %352 : vector<1x32xf32> to vector<9x32xf32>
    %375 = arith.mulf %373, %374 : vector<9x32xf32>
    %376 = vector.broadcast %353 : vector<1x32xf32> to vector<9x32xf32>
    %377 = arith.addf %375, %376 : vector<9x32xf32>
    %378 = vector.extract_strided_slice %377 {offsets = [0, 0], sizes = [1, 32], strides = [1, 1]} : vector<9x32xf32> to vector<1x32xf32>
    %c0_166 = arith.constant 0 : index
    %c0_167 = arith.constant 0 : index
    %379 = vector.load %arg20[%c0_166, %c0_167] : memref<32x5xf32, #tpu.memory_space<vmem>>, vector<32x5xf32>
    %cst_168 = arith.constant dense<0.000000e+00> : vector<1x5xf32>
    %380 = tpu.matmul %378, %379, %cst_168 {dimension_numbers = #tpu.dot_dimension_numbers<[1], [0], [0], [1], [0, 0, 1, 1], [], []>} : vector<1x32xf32>, vector<32x5xf32>, vector<1x5xf32> -> vector<1x5xf32>
    %c0_169 = arith.constant 0 : index
    %c0_170 = arith.constant 0 : index
    %381 = vector.load %arg21[%c0_169, %c0_170] : memref<1x5xf32, #tpu.memory_space<vmem>>, vector<1x5xf32>
    %382 = arith.addf %380, %381 : vector<1x5xf32>
    %383 = vector.shape_cast %382 : vector<1x5xf32> to vector<1x1x5xf32>
    %c0_171 = arith.constant 0 : index
    %c0_172 = arith.constant 0 : index
    %c0_173 = arith.constant 0 : index
    %384 = vector.load %arg22[%c0_171, %c0_172, %c0_173] : memref<1x1x5xf32, #tpu.memory_space<vmem>>, vector<1x1x5xf32>
    tpu.vector_store %arg22[%c0_171, %c0_172, %c0_173], %383 {strides = array<i32>} : memref<1x1x5xf32, #tpu.memory_space<vmem>>, vector<1x1x5xf32>,
    return
  }
  func.func @transform_0(%arg0: i32) -> (i32, i32, i32) {
    %c0_i32 = arith.constant 0 : i32
    %c0_i32_0 = arith.constant 0 : i32
    %c0_i32_1 = arith.constant 0 : i32
    return %arg0, %c0_i32, %c0_i32_0 : i32, i32, i32
  }
  func.func @transform_1(%arg0: i32) -> (i32, i32) {
    %c0_i32 = arith.constant 0 : i32
    %c0_i32_0 = arith.constant 0 : i32
    %c0_i32_1 = arith.constant 0 : i32
    return %c0_i32, %c0_i32_0 : i32, i32
  }
  func.func @transform_2(%arg0: i32) -> (i32, i32) {
    %c0_i32 = arith.constant 0 : i32
    %c0_i32_0 = arith.constant 0 : i32
    %c0_i32_1 = arith.constant 0 : i32
    return %c0_i32, %c0_i32_0 : i32, i32
  }
  func.func @transform_3(%arg0: i32) -> (i32, i32) {
    %c0_i32 = arith.constant 0 : i32
    %c0_i32_0 = arith.constant 0 : i32
    %c0_i32_1 = arith.constant 0 : i32
    return %c0_i32, %c0_i32_0 : i32, i32
  }
  func.func @transform_4(%arg0: i32) -> (i32, i32) {
    %c0_i32 = arith.constant 0 : i32
    %c0_i32_0 = arith.constant 0 : i32
    %c0_i32_1 = arith.constant 0 : i32
    return %c0_i32, %c0_i32_0 : i32, i32
  }
  func.func @transform_5(%arg0: i32) -> (i32, i32, i32) {
    %c0_i32 = arith.constant 0 : i32
    %c0_i32_0 = arith.constant 0 : i32
    %c0_i32_1 = arith.constant 0 : i32
    %c0_i32_2 = arith.constant 0 : i32
    return %c0_i32, %c0_i32_0, %c0_i32_1 : i32, i32, i32
  }
  func.func @transform_6(%arg0: i32) -> (i32, i32, i32) {
    %c0_i32 = arith.constant 0 : i32
    %c0_i32_0 = arith.constant 0 : i32
    %c0_i32_1 = arith.constant 0 : i32
    %c0_i32_2 = arith.constant 0 : i32
    return %c0_i32, %c0_i32_0, %c0_i32_1 : i32, i32, i32
  }
  func.func @transform_7(%arg0: i32) -> (i32, i32, i32) {
    %c0_i32 = arith.constant 0 : i32
    %c0_i32_0 = arith.constant 0 : i32
    %c0_i32_1 = arith.constant 0 : i32
    %c0_i32_2 = arith.constant 0 : i32
    return %c0_i32, %c0_i32_0, %c0_i32_1 : i32, i32, i32
  }
  func.func @transform_8(%arg0: i32) -> (i32, i32, i32) {
    %c0_i32 = arith.constant 0 : i32
    %c0_i32_0 = arith.constant 0 : i32
    %c0_i32_1 = arith.constant 0 : i32
    %c0_i32_2 = arith.constant 0 : i32
    return %c0_i32, %c0_i32_0, %c0_i32_1 : i32, i32, i32
  }
  func.func @transform_9(%arg0: i32) -> (i32, i32, i32) {
    %c0_i32 = arith.constant 0 : i32
    %c0_i32_0 = arith.constant 0 : i32
    %c0_i32_1 = arith.constant 0 : i32
    %c0_i32_2 = arith.constant 0 : i32
    return %c0_i32, %c0_i32_0, %c0_i32_1 : i32, i32, i32
  }
  func.func @transform_10(%arg0: i32) -> (i32, i32, i32) {
    %c0_i32 = arith.constant 0 : i32
    %c0_i32_0 = arith.constant 0 : i32
    %c0_i32_1 = arith.constant 0 : i32
    %c0_i32_2 = arith.constant 0 : i32
    return %c0_i32, %c0_i32_0, %c0_i32_1 : i32, i32, i32
  }
  func.func @transform_11(%arg0: i32) -> (i32, i32, i32) {
    %c0_i32 = arith.constant 0 : i32
    %c0_i32_0 = arith.constant 0 : i32
    %c0_i32_1 = arith.constant 0 : i32
    %c0_i32_2 = arith.constant 0 : i32
    return %c0_i32, %c0_i32_0, %c0_i32_1 : i32, i32, i32
  }
  func.func @transform_12(%arg0: i32) -> (i32, i32, i32) {
    %c0_i32 = arith.constant 0 : i32
    %c0_i32_0 = arith.constant 0 : i32
    %c0_i32_1 = arith.constant 0 : i32
    %c0_i32_2 = arith.constant 0 : i32
    return %c0_i32, %c0_i32_0, %c0_i32_1 : i32, i32, i32
  }
  func.func @transform_13(%arg0: i32) -> (i32, i32, i32) {
    %c0_i32 = arith.constant 0 : i32
    %c0_i32_0 = arith.constant 0 : i32
    %c0_i32_1 = arith.constant 0 : i32
    %c0_i32_2 = arith.constant 0 : i32
    return %c0_i32, %c0_i32_0, %c0_i32_1 : i32, i32, i32
  }
  func.func @transform_14(%arg0: i32) -> (i32, i32, i32) {
    %c0_i32 = arith.constant 0 : i32
    %c0_i32_0 = arith.constant 0 : i32
    %c0_i32_1 = arith.constant 0 : i32
    %c0_i32_2 = arith.constant 0 : i32
    return %c0_i32, %c0_i32_0, %c0_i32_1 : i32, i32, i32
  }
  func.func @transform_15(%arg0: i32) -> (i32, i32, i32) {
    %c0_i32 = arith.constant 0 : i32
    %c0_i32_0 = arith.constant 0 : i32
    %c0_i32_1 = arith.constant 0 : i32
    %c0_i32_2 = arith.constant 0 : i32
    return %c0_i32, %c0_i32_0, %c0_i32_1 : i32, i32, i32
  }
  func.func @transform_16(%arg0: i32) -> (i32, i32, i32) {
    %c0_i32 = arith.constant 0 : i32
    %c0_i32_0 = arith.constant 0 : i32
    %c0_i32_1 = arith.constant 0 : i32
    %c0_i32_2 = arith.constant 0 : i32
    return %c0_i32, %c0_i32_0, %c0_i32_1 : i32, i32, i32
  }
  func.func @transform_17(%arg0: i32) -> (i32, i32) {
    %c0_i32 = arith.constant 0 : i32
    %c0_i32_0 = arith.constant 0 : i32
    %c0_i32_1 = arith.constant 0 : i32
    return %c0_i32, %c0_i32_0 : i32, i32
  }
  func.func @transform_18(%arg0: i32) -> (i32, i32) {
    %c0_i32 = arith.constant 0 : i32
    %c0_i32_0 = arith.constant 0 : i32
    %c0_i32_1 = arith.constant 0 : i32
    return %c0_i32, %c0_i32_0 : i32, i32
  }
  func.func @transform_19(%arg0: i32) -> (i32, i32) {
    %c0_i32 = arith.constant 0 : i32
    %c0_i32_0 = arith.constant 0 : i32
    %c0_i32_1 = arith.constant 0 : i32
    return %c0_i32, %c0_i32_0 : i32, i32
  }
  func.func @transform_20(%arg0: i32) -> (i32, i32) {
    %c0_i32 = arith.constant 0 : i32
    %c0_i32_0 = arith.constant 0 : i32
    %c0_i32_1 = arith.constant 0 : i32
    return %c0_i32, %c0_i32_0 : i32, i32
  }
  func.func @transform_21(%arg0: i32) -> (i32, i32, i32) {
    %c0_i32 = arith.constant 0 : i32
    %c0_i32_0 = arith.constant 0 : i32
    %c0_i32_1 = arith.constant 0 : i32
    return %arg0, %c0_i32, %c0_i32_0 : i32, i32, i32
  }
}

</mosaic_0001>

<llo_original>
// kernel: vivit_forward.1
$region0: #{vivit_forward.1}
  #allocation0 [shape = 'u32[]', space=smem, size = 0x4, offset = 0x4, fixed_abs, tag = 'smem constant byte address 0x4 - core index']
  #allocation1 [shape = 'u32[144,128]{1,0:T(1,128)}', space=vmem, size = 0x12000, scoped, tag = 'internal scratch']
  %s0 = inlined_call_operand.vmem [shape: f32[2,9,96], index: 0, kind: input, shape index: {}]
  %s1 = inlined_call_operand.vmem [shape: f32[96,32], index: 1, kind: input, shape index: {}]
  %s2 = inlined_call_operand.vmem [shape: f32[1,32], index: 2, kind: input, shape index: {}]
  %s3 = inlined_call_operand.vmem [shape: f32[1,32], index: 3, kind: input, shape index: {}]
  %s4 = inlined_call_operand.vmem [shape: f32[9,32], index: 4, kind: input, shape index: {}]
  %s5 = inlined_call_operand.vmem [shape: f32[2,1,32], index: 5, kind: input, shape index: {}]
  %s6 = inlined_call_operand.vmem [shape: f32[2,1,32], index: 6, kind: input, shape index: {}]
  %s7 = inlined_call_operand.vmem [shape: f32[2,32,96], index: 7, kind: input, shape index: {}]
  %s8 = inlined_call_operand.vmem [shape: f32[2,1,96], index: 8, kind: input, shape index: {}]
  %s9 = inlined_call_operand.vmem [shape: f32[2,32,32], index: 9, kind: input, shape index: {}]
  %s10 = inlined_call_operand.vmem [shape: f32[2,1,32], index: 10, kind: input, shape index: {}]
  %s11 = inlined_call_operand.vmem [shape: f32[2,1,32], index: 11, kind: input, shape index: {}]
  %s12 = inlined_call_operand.vmem [shape: f32[2,1,32], index: 12, kind: input, shape index: {}]
  %s13 = inlined_call_operand.vmem [shape: f32[2,32,64], index: 13, kind: input, shape index: {}]
  %s14 = inlined_call_operand.vmem [shape: f32[2,1,64], index: 14, kind: input, shape index: {}]
  %s15 = inlined_call_operand.vmem [shape: f32[2,64,32], index: 15, kind: input, shape index: {}]
  %s16 = inlined_call_operand.vmem [shape: f32[2,1,32], index: 16, kind: input, shape index: {}]
  %s17 = inlined_call_operand.vmem [shape: f32[1,32], index: 17, kind: input, shape index: {}]
  %s18 = inlined_call_operand.vmem [shape: f32[1,32], index: 18, kind: input, shape index: {}]
  %s19 = inlined_call_operand.vmem [shape: f32[32,5], index: 19, kind: input, shape index: {}]
  %s20 = inlined_call_operand.vmem [shape: f32[1,5], index: 20, kind: input, shape index: {}]
  %s21 = inlined_call_operand.hbm [shape: f32[2,1,5], index: 21, kind: output, shape index: {}]
  %s22 = sld [smem:[#allocation0]]
  $region117: #{vivit_forward.1} parent=0
    _
  %s24 = ssub.s32 1, %s22
  %s25 = scalar_select 0, %s24, %s22
  $region1: #{vivit_forward.1} parent=0
    #allocation2 [shape = 'u8[1024]{0}', space=vmem, size = 0x400, scoped, tag = 'output window, operand 0']
    #allocation3 [shape = 's32[2]{0}', space=sflag, size = 0x8, scoped, tag = 'scoped memory for vivit_forward.1']
    %26 = vsyncpa [#allocation3], 0
    %s27 = scalar_lea.sflag [#allocation3], 1
    %28 = vsyncpa %s27, 0
    loop: start=0, step=1, limit=4
    $region2: #{vivit_forward.1} parent=1 // loop_pre_header
      _
    $region3: #{vivit_forward.1} parent=1 // loop_header
      %s30 = sphi 0, %s34
      %p31 = scmp.ge.s32.totalorder %s30, 4
      %s40 = sphi 0, %s42
      %s43 = sphi 0, %s40
      %s44 = sphi 0, %s43
      %s60 = sphi 0, %s44
      %s64 = sphi 0, %s64
      %s66 = sphi 0, %s64
      %s67 = sphi 0, %s66
      %s81 = sphi 0, %s67
      %s85 = sphi 0, %s85
      %s87 = sphi 0, %s85
      %s88 = sphi 0, %s87
      %s102 = sphi 0, %s88
      %s106 = sphi 0, %s106
      %s108 = sphi 0, %s106
      %s109 = sphi 0, %s108
      %s123 = sphi 0, %s109
      %s127 = sphi 0, %s127
      %s129 = sphi 0, %s127
      %s130 = sphi 0, %s129
      %s144 = sphi 0, %s130
      %s148 = sphi 0, %s148
      %s150 = sphi 0, %s148
      %s151 = sphi 0, %s150
      %s165 = sphi 0, %s151
      %s169 = sphi 0, %s169
      %s171 = sphi 0, %s169
      %s172 = sphi 0, %s171
      %s186 = sphi 0, %s172
      %s190 = sphi 0, %s190
      %s192 = sphi 0, %s190
      %s193 = sphi 0, %s192
      %s207 = sphi 0, %s193
      %s211 = sphi 0, %s211
      %s213 = sphi 0, %s211
      %s214 = sphi 0, %s213
      %s228 = sphi 0, %s214
      %s232 = sphi 0, %s232
      %s234 = sphi 0, %s232
      %s235 = sphi 0, %s234
      %s249 = sphi 0, %s235
      %s253 = sphi 0, %s253
      %s255 = sphi 0, %s253
      %s256 = sphi 0, %s255
      %s270 = sphi 0, %s256
      %s274 = sphi 0, %s274
      %s276 = sphi 0, %s274
      %s277 = sphi 0, %s276
      %s291 = sphi 0, %s277
      %s295 = sphi 0, %s295
      %s297 = sphi 0, %s295
      %s298 = sphi 0, %s297
      %s312 = sphi 0, %s298
      %s316 = sphi 0, %s316
      %s318 = sphi 0, %s316
      %s319 = sphi 0, %s318
      %s333 = sphi 0, %s319
      %s337 = sphi 0, %s337
      %s339 = sphi 0, %s337
      %s340 = sphi 0, %s339
      %s354 = sphi 0, %s340
      %s358 = sphi 0, %s358
      %s360 = sphi 0, %s358
      %s361 = sphi 0, %s360
      %s375 = sphi 0, %s361
      %s379 = sphi 0, %s379
      %s381 = sphi 0, %s379
      %s382 = sphi 0, %s381
      %s396 = sphi 0, %s382
      %s400 = sphi 0, %s400
      %s402 = sphi 0, %s400
      %s403 = sphi 0, %s402
      %s417 = sphi 0, %s403
      %s421 = sphi 0, %s421
      %s423 = sphi 0, %s421
      %s424 = sphi 0, %s423
      %s438 = sphi 0, %s424
      %s442 = sphi 0, %s442
      %s444 = sphi 0, %s442
      %s445 = sphi 0, %s444
      %s459 = sphi 0, %s445
      %s463 = sphi 0, %s463
      %s465 = sphi 0, %s463
      %s466 = sphi 0, %s465
      %s480 = sphi 0, %s466
      %s486 = sphi 0, %s488
      %s489 = sphi 0, %s486
      %s490 = sphi 0, %s489
      %s506 = sphi 0, %s490
    $region4: #{vivit_forward.1} parent=1 // loop_header_branch
      %33 = sbr.rel (%p31) target = $region8
    $region5: #{vivit_forward.1} parent=1 // loop_body
      %s35 = ssub.s32 %s30, 1
      %s36 = ssub.s32 %s30, 2
      %s37 = sadd.s32 %s30, 1
      %s38 = ssub.s32 %s30, %s37
      %p39 = scmp.eq.s32.totalorder %s38, 0
      %s41 = sadd.s32 %s40, 1
      %s42 = scalar_select %p39, %s40, %s41
      %p45 = pneg %p39
      %p46 = scmp.eq.s32.totalorder %s30, 1
      %p47 = por %p45, %p46
      %p48 = scmp.ne.s32.totalorder %s40, %s43
      %p49 = scmp.eq.s32.totalorder %s30, 0
      %p50 = por %p48, %p49
      %p51 = scmp.ne.s32.totalorder %s40, %s43
      %p52 = scmp.eq.s32.totalorder %s35, 1
      %p53 = por %p51, %p52
      %p54 = scmp.ne.s32.totalorder %s43, %s44
      %p55 = scmp.eq.s32.totalorder %s35, 0
      %p56 = por %p54, %p55
      %p57 = scmp.ne.s32.totalorder %s43, %s44
      %p58 = scmp.eq.s32.totalorder %s36, 1
      %p59 = por %p57, %p58
      %p61 = scmp.ne.s32.totalorder %s44, %s60
      %p62 = scmp.eq.s32.totalorder %s36, 0
      %p63 = por %p61, %p62
      %s65 = sadd.s32 %s64, 1
      %p68 = scmp.eq.s32.totalorder %s30, 1
      %p69 = scmp.ne.s32.totalorder %s64, %s66
      %p70 = scmp.eq.s32.totalorder %s30, 0
      %p71 = por %p69, %p70
      %p72 = scmp.ne.s32.totalorder %s64, %s66
      %p73 = scmp.eq.s32.totalorder %s35, 1
      %p74 = por %p72, %p73
      %p75 = scmp.ne.s32.totalorder %s66, %s67
      %p76 = scmp.eq.s32.totalorder %s35, 0
      %p77 = por %p75, %p76
      %p78 = scmp.ne.s32.totalorder %s66, %s67
      %p79 = scmp.eq.s32.totalorder %s36, 1
      %p80 = por %p78, %p79
      %p82 = scmp.ne.s32.totalorder %s67, %s81
      %p83 = scmp.eq.s32.totalorder %s36, 0
      %p84 = por %p82, %p83
      %s86 = sadd.s32 %s85, 1
      %p89 = scmp.eq.s32.totalorder %s30, 1
      %p90 = scmp.ne.s32.totalorder %s85, %s87
      %p91 = scmp.eq.s32.totalorder %s30, 0
      %p92 = por %p90, %p91
      %p93 = scmp.ne.s32.totalorder %s85, %s87
      %p94 = scmp.eq.s32.totalorder %s35, 1
      %p95 = por %p93, %p94
      %p96 = scmp.ne.s32.totalorder %s87, %s88
      %p97 = scmp.eq.s32.totalorder %s35, 0
      %p98 = por %p96, %p97
      %p99 = scmp.ne.s32.totalorder %s87, %s88
      %p100 = scmp.eq.s32.totalorder %s36, 1
      %p101 = por %p99, %p100
      %p103 = scmp.ne.s32.totalorder %s88, %s102
      %p104 = scmp.eq.s32.totalorder %s36, 0
      %p105 = por %p103, %p104
      %s107 = sadd.s32 %s106, 1
      %p110 = scmp.eq.s32.totalorder %s30, 1
      %p111 = scmp.ne.s32.totalorder %s106, %s108
      %p112 = scmp.eq.s32.totalorder %s30, 0
      %p113 = por %p111, %p112
      %p114 = scmp.ne.s32.totalorder %s106, %s108
      %p115 = scmp.eq.s32.totalorder %s35, 1
      %p116 = por %p114, %p115
      %p117 = scmp.ne.s32.totalorder %s108, %s109
      %p118 = scmp.eq.s32.totalorder %s35, 0
      %p119 = por %p117, %p118
      %p120 = scmp.ne.s32.totalorder %s108, %s109
      %p121 = scmp.eq.s32.totalorder %s36, 1
      %p122 = por %p120, %p121
      %p124 = scmp.ne.s32.totalorder %s109, %s123
      %p125 = scmp.eq.s32.totalorder %s36, 0
      %p126 = por %p124, %p125
      %s128 = sadd.s32 %s127, 1
      %p131 = scmp.eq.s32.totalorder %s30, 1
      %p132 = scmp.ne.s32.totalorder %s127, %s129
      %p133 = scmp.eq.s32.totalorder %s30, 0
      %p134 = por %p132, %p133
      %p135 = scmp.ne.s32.totalorder %s127, %s129
      %p136 = scmp.eq.s32.totalorder %s35, 1
      %p137 = por %p135, %p136
      %p138 = scmp.ne.s32.totalorder %s129, %s130
      %p139 = scmp.eq.s32.totalorder %s35, 0
      %p140 = por %p138, %p139
      %p141 = scmp.ne.s32.totalorder %s129, %s130
      %p142 = scmp.eq.s32.totalorder %s36, 1
      %p143 = por %p141, %p142
      %p145 = scmp.ne.s32.totalorder %s130, %s144
      %p146 = scmp.eq.s32.totalorder %s36, 0
      %p147 = por %p145, %p146
      %s149 = sadd.s32 %s148, 1
      %p152 = scmp.eq.s32.totalorder %s30, 1
      %p153 = scmp.ne.s32.totalorder %s148, %s150
      %p154 = scmp.eq.s32.totalorder %s30, 0
      %p155 = por %p153, %p154
      %p156 = scmp.ne.s32.totalorder %s148, %s150
      %p157 = scmp.eq.s32.totalorder %s35, 1
      %p158 = por %p156, %p157
      %p159 = scmp.ne.s32.totalorder %s150, %s151
      %p160 = scmp.eq.s32.totalorder %s35, 0
      %p161 = por %p159, %p160
      %p162 = scmp.ne.s32.totalorder %s150, %s151
      %p163 = scmp.eq.s32.totalorder %s36, 1
      %p164 = por %p162, %p163
      %p166 = scmp.ne.s32.totalorder %s151, %s165
      %p167 = scmp.eq.s32.totalorder %s36, 0
      %p168 = por %p166, %p167
      %s170 = sadd.s32 %s169, 1
      %p173 = scmp.eq.s32.totalorder %s30, 1
      %p174 = scmp.ne.s32.totalorder %s169, %s171
      %p175 = scmp.eq.s32.totalorder %s30, 0
      %p176 = por %p174, %p175
      %p177 = scmp.ne.s32.totalorder %s169, %s171
      %p178 = scmp.eq.s32.totalorder %s35, 1
      %p179 = por %p177, %p178
      %p180 = scmp.ne.s32.totalorder %s171, %s172
      %p181 = scmp.eq.s32.totalorder %s35, 0
      %p182 = por %p180, %p181
      %p183 = scmp.ne.s32.totalorder %s171, %s172
      %p184 = scmp.eq.s32.totalorder %s36, 1
      %p185 = por %p183, %p184
      %p187 = scmp.ne.s32.totalorder %s172, %s186
      %p188 = scmp.eq.s32.totalorder %s36, 0
      %p189 = por %p187, %p188
      %s191 = sadd.s32 %s190, 1
      %p194 = scmp.eq.s32.totalorder %s30, 1
      %p195 = scmp.ne.s32.totalorder %s190, %s192
      %p196 = scmp.eq.s32.totalorder %s30, 0
      %p197 = por %p195, %p196
      %p198 = scmp.ne.s32.totalorder %s190, %s192
      %p199 = scmp.eq.s32.totalorder %s35, 1
      %p200 = por %p198, %p199
      %p201 = scmp.ne.s32.totalorder %s192, %s193
      %p202 = scmp.eq.s32.totalorder %s35, 0
      %p203 = por %p201, %p202
      %p204 = scmp.ne.s32.totalorder %s192, %s193
      %p205 = scmp.eq.s32.totalorder %s36, 1
      %p206 = por %p204, %p205
      %p208 = scmp.ne.s32.totalorder %s193, %s207
      %p209 = scmp.eq.s32.totalorder %s36, 0
      %p210 = por %p208, %p209
      %s212 = sadd.s32 %s211, 1
      %p215 = scmp.eq.s32.totalorder %s30, 1
      %p216 = scmp.ne.s32.totalorder %s211, %s213
      %p217 = scmp.eq.s32.totalorder %s30, 0
      %p218 = por %p216, %p217
      %p219 = scmp.ne.s32.totalorder %s211, %s213
      %p220 = scmp.eq.s32.totalorder %s35, 1
      %p221 = por %p219, %p220
      %p222 = scmp.ne.s32.totalorder %s213, %s214
      %p223 = scmp.eq.s32.totalorder %s35, 0
      %p224 = por %p222, %p223
      %p225 = scmp.ne.s32.totalorder %s213, %s214
      %p226 = scmp.eq.s32.totalorder %s36, 1
      %p227 = por %p225, %p226
      %p229 = scmp.ne.s32.totalorder %s214, %s228
      %p230 = scmp.eq.s32.totalorder %s36, 0
      %p231 = por %p229, %p230
      %s233 = sadd.s32 %s232, 1
      %p236 = scmp.eq.s32.totalorder %s30, 1
      %p237 = scmp.ne.s32.totalorder %s232, %s234
      %p238 = scmp.eq.s32.totalorder %s30, 0
      %p239 = por %p237, %p238
      %p240 = scmp.ne.s32.totalorder %s232, %s234
      %p241 = scmp.eq.s32.totalorder %s35, 1
      %p242 = por %p240, %p241
      %p243 = scmp.ne.s32.totalorder %s234, %s235
      %p244 = scmp.eq.s32.totalorder %s35, 0
      %p245 = por %p243, %p244
      %p246 = scmp.ne.s32.totalorder %s234, %s235
      %p247 = scmp.eq.s32.totalorder %s36, 1
      %p248 = por %p246, %p247
      %p250 = scmp.ne.s32.totalorder %s235, %s249
      %p251 = scmp.eq.s32.totalorder %s36, 0
      %p252 = por %p250, %p251
      %s254 = sadd.s32 %s253, 1
      %p257 = scmp.eq.s32.totalorder %s30, 1
      %p258 = scmp.ne.s32.totalorder %s253, %s255
      %p259 = scmp.eq.s32.totalorder %s30, 0
      %p260 = por %p258, %p259
      %p261 = scmp.ne.s32.totalorder %s253, %s255
      %p262 = scmp.eq.s32.totalorder %s35, 1
      %p263 = por %p261, %p262
      %p264 = scmp.ne.s32.totalorder %s255, %s256
      %p265 = scmp.eq.s32.totalorder %s35, 0
      %p266 = por %p264, %p265
      %p267 = scmp.ne.s32.totalorder %s255, %s256
      %p268 = scmp.eq.s32.totalorder %s36, 1
      %p269 = por %p267, %p268
      %p271 = scmp.ne.s32.totalorder %s256, %s270
      %p272 = scmp.eq.s32.totalorder %s36, 0
      %p273 = por %p271, %p272
      %s275 = sadd.s32 %s274, 1
      %p278 = scmp.eq.s32.totalorder %s30, 1
      %p279 = scmp.ne.s32.totalorder %s274, %s276
      %p280 = scmp.eq.s32.totalorder %s30, 0
      %p281 = por %p279, %p280
      %p282 = scmp.ne.s32.totalorder %s274, %s276
      %p283 = scmp.eq.s32.totalorder %s35, 1
      %p284 = por %p282, %p283
      %p285 = scmp.ne.s32.totalorder %s276, %s277
      %p286 = scmp.eq.s32.totalorder %s35, 0
      %p287 = por %p285, %p286
      %p288 = scmp.ne.s32.totalorder %s276, %s277
      %p289 = scmp.eq.s32.totalorder %s36, 1
      %p290 = por %p288, %p289
      %p292 = scmp.ne.s32.totalorder %s277, %s291
      %p293 = scmp.eq.s32.totalorder %s36, 0
      %p294 = por %p292, %p293
      %s296 = sadd.s32 %s295, 1
      %p299 = scmp.eq.s32.totalorder %s30, 1
      %p300 = scmp.ne.s32.totalorder %s295, %s297
      %p301 = scmp.eq.s32.totalorder %s30, 0
      %p302 = por %p300, %p301
      %p303 = scmp.ne.s32.totalorder %s295, %s297
      %p304 = scmp.eq.s32.totalorder %s35, 1
      %p305 = por %p303, %p304
      %p306 = scmp.ne.s32.totalorder %s297, %s298
      %p307 = scmp.eq.s32.totalorder %s35, 0
      %p308 = por %p306, %p307
      %p309 = scmp.ne.s32.totalorder %s297, %s298
      %p310 = scmp.eq.s32.totalorder %s36, 1
      %p311 = por %p309, %p310
      %p313 = scmp.ne.s32.totalorder %s298, %s312
      %p314 = scmp.eq.s32.totalorder %s36, 0
      %p315 = por %p313, %p314
      %s317 = sadd.s32 %s316, 1
      %p320 = scmp.eq.s32.totalorder %s30, 1
      %p321 = scmp.ne.s32.totalorder %s316, %s318
      %p322 = scmp.eq.s32.totalorder %s30, 0
      %p323 = por %p321, %p322
      %p324 = scmp.ne.s32.totalorder %s316, %s318
      %p325 = scmp.eq.s32.totalorder %s35, 1
      %p326 = por %p324, %p325
      %p327 = scmp.ne.s32.totalorder %s318, %s319
      %p328 = scmp.eq.s32.totalorder %s35, 0
      %p329 = por %p327, %p328
      %p330 = scmp.ne.s32.totalorder %s318, %s319
      %p331 = scmp.eq.s32.totalorder %s36, 1
      %p332 = por %p330, %p331
      %p334 = scmp.ne.s32.totalorder %s319, %s333
      %p335 = scmp.eq.s32.totalorder %s36, 0
      %p336 = por %p334, %p335
      %s338 = sadd.s32 %s337, 1
      %p341 = scmp.eq.s32.totalorder %s30, 1
      %p342 = scmp.ne.s32.totalorder %s337, %s339
      %p343 = scmp.eq.s32.totalorder %s30, 0
      %p344 = por %p342, %p343
      %p345 = scmp.ne.s32.totalorder %s337, %s339
      %p346 = scmp.eq.s32.totalorder %s35, 1
      %p347 = por %p345, %p346
      %p348 = scmp.ne.s32.totalorder %s339, %s340
      %p349 = scmp.eq.s32.totalorder %s35, 0
      %p350 = por %p348, %p349
      %p351 = scmp.ne.s32.totalorder %s339, %s340
      %p352 = scmp.eq.s32.totalorder %s36, 1
      %p353 = por %p351, %p352
      %p355 = scmp.ne.s32.totalorder %s340, %s354
      %p356 = scmp.eq.s32.totalorder %s36, 0
      %p357 = por %p355, %p356
      %s359 = sadd.s32 %s358, 1
      %p362 = scmp.eq.s32.totalorder %s30, 1
      %p363 = scmp.ne.s32.totalorder %s358, %s360
      %p364 = scmp.eq.s32.totalorder %s30, 0
      %p365 = por %p363, %p364
      %p366 = scmp.ne.s32.totalorder %s358, %s360
      %p367 = scmp.eq.s32.totalorder %s35, 1
      %p368 = por %p366, %p367
      %p369 = scmp.ne.s32.totalorder %s360, %s361
      %p370 = scmp.eq.s32.totalorder %s35, 0
      %p371 = por %p369, %p370
      %p372 = scmp.ne.s32.totalorder %s360, %s361
      %p373 = scmp.eq.s32.totalorder %s36, 1
      %p374 = por %p372, %p373
      %p376 = scmp.ne.s32.totalorder %s361, %s375
      %p377 = scmp.eq.s32.totalorder %s36, 0
      %p378 = por %p376, %p377
      %s380 = sadd.s32 %s379, 1
      %p383 = scmp.eq.s32.totalorder %s30, 1
      %p384 = scmp.ne.s32.totalorder %s379, %s381
      %p385 = scmp.eq.s32.totalorder %s30, 0
      %p386 = por %p384, %p385
      %p387 = scmp.ne.s32.totalorder %s379, %s381
      %p388 = scmp.eq.s32.totalorder %s35, 1
      %p389 = por %p387, %p388
      %p390 = scmp.ne.s32.totalorder %s381, %s382
      %p391 = scmp.eq.s32.totalorder %s35, 0
      %p392 = por %p390, %p391
      %p393 = scmp.ne.s32.totalorder %s381, %s382
      %p394 = scmp.eq.s32.totalorder %s36, 1
      %p395 = por %p393, %p394
      %p397 = scmp.ne.s32.totalorder %s382, %s396
      %p398 = scmp.eq.s32.totalorder %s36, 0
      %p399 = por %p397, %p398
      %s401 = sadd.s32 %s400, 1
      %p404 = scmp.eq.s32.totalorder %s30, 1
      %p405 = scmp.ne.s32.totalorder %s400, %s402
      %p406 = scmp.eq.s32.totalorder %s30, 0
      %p407 = por %p405, %p406
      %p408 = scmp.ne.s32.totalorder %s400, %s402
      %p409 = scmp.eq.s32.totalorder %s35, 1
      %p410 = por %p408, %p409
      %p411 = scmp.ne.s32.totalorder %s402, %s403
      %p412 = scmp.eq.s32.totalorder %s35, 0
      %p413 = por %p411, %p412
      %p414 = scmp.ne.s32.totalorder %s402, %s403
      %p415 = scmp.eq.s32.totalorder %s36, 1
      %p416 = por %p414, %p415
      %p418 = scmp.ne.s32.totalorder %s403, %s417
      %p419 = scmp.eq.s32.totalorder %s36, 0
      %p420 = por %p418, %p419
      %s422 = sadd.s32 %s421, 1
      %p425 = scmp.eq.s32.totalorder %s30, 1
      %p426 = scmp.ne.s32.totalorder %s421, %s423
      %p427 = scmp.eq.s32.totalorder %s30, 0
      %p428 = por %p426, %p427
      %p429 = scmp.ne.s32.totalorder %s421, %s423
      %p430 = scmp.eq.s32.totalorder %s35, 1
      %p431 = por %p429, %p430
      %p432 = scmp.ne.s32.totalorder %s423, %s424
      %p433 = scmp.eq.s32.totalorder %s35, 0
      %p434 = por %p432, %p433
      %p435 = scmp.ne.s32.totalorder %s423, %s424
      %p436 = scmp.eq.s32.totalorder %s36, 1
      %p437 = por %p435, %p436
      %p439 = scmp.ne.s32.totalorder %s424, %s438
      %p440 = scmp.eq.s32.totalorder %s36, 0
      %p441 = por %p439, %p440
      %s443 = sadd.s32 %s442, 1
      %p446 = scmp.eq.s32.totalorder %s30, 1
      %p447 = scmp.ne.s32.totalorder %s442, %s444
      %p448 = scmp.eq.s32.totalorder %s30, 0
      %p449 = por %p447, %p448
      %p450 = scmp.ne.s32.totalorder %s442, %s444
      %p451 = scmp.eq.s32.totalorder %s35, 1
      %p452 = por %p450, %p451
      %p453 = scmp.ne.s32.totalorder %s444, %s445
      %p454 = scmp.eq.s32.totalorder %s35, 0
      %p455 = por %p453, %p454
      %p456 = scmp.ne.s32.totalorder %s444, %s445
      %p457 = scmp.eq.s32.totalorder %s36, 1
      %p458 = por %p456, %p457
      %p460 = scmp.ne.s32.totalorder %s445, %s459
      %p461 = scmp.eq.s32.totalorder %s36, 0
      %p462 = por %p460, %p461
      %s464 = sadd.s32 %s463, 1
      %p467 = scmp.eq.s32.totalorder %s30, 1
      %p468 = scmp.ne.s32.totalorder %s463, %s465
      %p469 = scmp.eq.s32.totalorder %s30, 0
      %p470 = por %p468, %p469
      %p471 = scmp.ne.s32.totalorder %s463, %s465
      %p472 = scmp.eq.s32.totalorder %s35, 1
      %p473 = por %p471, %p472
      %p474 = scmp.ne.s32.totalorder %s465, %s466
      %p475 = scmp.eq.s32.totalorder %s35, 0
      %p476 = por %p474, %p475
      %p477 = scmp.ne.s32.totalorder %s465, %s466
      %p478 = scmp.eq.s32.totalorder %s36, 1
      %p479 = por %p477, %p478
      %p481 = scmp.ne.s32.totalorder %s466, %s480
      %p482 = scmp.eq.s32.totalorder %s36, 0
      %p483 = por %p481, %p482
      %s484 = ssub.s32 %s30, %s37
      %p485 = scmp.eq.s32.totalorder %s484, 0
      %s487 = sadd.s32 %s486, 1
      %s488 = scalar_select %p485, %s486, %s487
      %p491 = pneg %p485
      %p492 = scmp.eq.s32.totalorder %s30, 1
      %p493 = por %p491, %p492
      %p494 = scmp.ne.s32.totalorder %s486, %s489
      %p495 = scmp.eq.s32.totalorder %s30, 0
      %p496 = por %p494, %p495
      %p497 = scmp.ne.s32.totalorder %s486, %s489
      %p498 = scmp.eq.s32.totalorder %s35, 1
      %p499 = por %p497, %p498
      %p500 = scmp.ne.s32.totalorder %s489, %s490
      %p501 = scmp.eq.s32.totalorder %s35, 0
      %p502 = por %p500, %p501
      %p503 = scmp.ne.s32.totalorder %s489, %s490
      %p504 = scmp.eq.s32.totalorder %s36, 1
      %p505 = por %p503, %p504
      %p507 = scmp.ne.s32.totalorder %s490, %s506
      %p508 = scmp.eq.s32.totalorder %s36, 0
      %p509 = por %p507, %p508
      %p510 = scmp.le.s32.totalorder 1, %s30
      %p511 = scmp.lt.s32.totalorder %s30, 3
      %p512 = pnand %p510, %p511
      %p513 = pneg %p512
      // Predicated region
      $region9: #{vivit_forward.1} parent=5 // pred_check
        _
      $region10: #{vivit_forward.1} parent=5 // pred_check_branch
        %515 = sbr.rel (%p512) target = $region12
      $region11: #{vivit_forward.1} parent=5 // pred_region
        %s516 = ssub.s32 %s30, 1
        // Predicated region
        $region13: #{vivit_forward.1} parent=11 // pred_check
          %p517 = pneg %p77
        $region14: #{vivit_forward.1} parent=11 // pred_check_branch
          %519 = sbr.rel (%p517) target = $region16
        $region15: #{vivit_forward.1} parent=11 // pred_region
          _
        $region16: #{vivit_forward.1} parent=11 // pred_fallthru
          _
        // Predicated region
        $region17: #{vivit_forward.1} parent=11 // pred_check
          %p520 = pneg %p98
        $region18: #{vivit_forward.1} parent=11 // pred_check_branch
          %522 = sbr.rel (%p520) target = $region20
        $region19: #{vivit_forward.1} parent=11 // pred_region
          _
        $region20: #{vivit_forward.1} parent=11 // pred_fallthru
          _
        // Predicated region
        $region21: #{vivit_forward.1} parent=11 // pred_check
          %p523 = pneg %p119
        $region22: #{vivit_forward.1} parent=11 // pred_check_branch
          %525 = sbr.rel (%p523) target = $region24
        $region23: #{vivit_forward.1} parent=11 // pred_region
          _
        $region24: #{vivit_forward.1} parent=11 // pred_fallthru
          _
        // Predicated region
        $region25: #{vivit_forward.1} parent=11 // pred_check
          %p526 = pneg %p140
        $region26: #{vivit_forward.1} parent=11 // pred_check_branch
          %528 = sbr.rel (%p526) target = $region28
        $region27: #{vivit_forward.1} parent=11 // pred_region
          _
        $region28: #{vivit_forward.1} parent=11 // pred_fallthru
          _
        // Predicated region
        $region29: #{vivit_forward.1} parent=11 // pred_check
          %p529 = pneg %p161
        $region30: #{vivit_forward.1} parent=11 // pred_check_branch
          %531 = sbr.rel (%p529) target = $region32
        $region31: #{vivit_forward.1} parent=11 // pred_region
          _
        $region32: #{vivit_forward.1} parent=11 // pred_fallthru
          _
        // Predicated region
        $region33: #{vivit_forward.1} parent=11 // pred_check
          %p532 = pneg %p182
        $region34: #{vivit_forward.1} parent=11 // pred_check_branch
          %534 = sbr.rel (%p532) target = $region36
        $region35: #{vivit_forward.1} parent=11 // pred_region
          _
        $region36: #{vivit_forward.1} parent=11 // pred_fallthru
          _
        // Predicated region
        $region37: #{vivit_forward.1} parent=11 // pred_check
          %p535 = pneg %p203
        $region38: #{vivit_forward.1} parent=11 // pred_check_branch
          %537 = sbr.rel (%p535) target = $region40
        $region39: #{vivit_forward.1} parent=11 // pred_region
          _
        $region40: #{vivit_forward.1} parent=11 // pred_fallthru
          _
        // Predicated region
        $region41: #{vivit_forward.1} parent=11 // pred_check
          %p538 = pneg %p224
        $region42: #{vivit_forward.1} parent=11 // pred_check_branch
          %540 = sbr.rel (%p538) target = $region44
        $region43: #{vivit_forward.1} parent=11 // pred_region
          _
        $region44: #{vivit_forward.1} parent=11 // pred_fallthru
          _
        // Predicated region
        $region45: #{vivit_forward.1} parent=11 // pred_check
          %p541 = pneg %p245
        $region46: #{vivit_forward.1} parent=11 // pred_check_branch
          %543 = sbr.rel (%p541) target = $region48
        $region47: #{vivit_forward.1} parent=11 // pred_region
          _
        $region48: #{vivit_forward.1} parent=11 // pred_fallthru
          _
        // Predicated region
        $region49: #{vivit_forward.1} parent=11 // pred_check
          %p544 = pneg %p266
        $region50: #{vivit_forward.1} parent=11 // pred_check_branch
          %546 = sbr.rel (%p544) target = $region52
        $region51: #{vivit_forward.1} parent=11 // pred_region
          _
        $region52: #{vivit_forward.1} parent=11 // pred_fallthru
          _
        // Predicated region
        $region53: #{vivit_forward.1} parent=11 // pred_check
          %p547 = pneg %p287
        $region54: #{vivit_forward.1} parent=11 // pred_check_branch
          %549 = sbr.rel (%p547) target = $region56
        $region55: #{vivit_forward.1} parent=11 // pred_region
          _
        $region56: #{vivit_forward.1} parent=11 // pred_fallthru
          _
        // Predicated region
        $region57: #{vivit_forward.1} parent=11 // pred_check
          %p550 = pneg %p308
        $region58: #{vivit_forward.1} parent=11 // pred_check_branch
          %552 = sbr.rel (%p550) target = $region60
        $region59: #{vivit_forward.1} parent=11 // pred_region
          _
        $region60: #{vivit_forward.1} parent=11 // pred_fallthru
          _
        // Predicated region
        $region61: #{vivit_forward.1} parent=11 // pred_check
          %p553 = pneg %p329
        $region62: #{vivit_forward.1} parent=11 // pred_check_branch
          %555 = sbr.rel (%p553) target = $region64
        $region63: #{vivit_forward.1} parent=11 // pred_region
          _
        $region64: #{vivit_forward.1} parent=11 // pred_fallthru
          _
        // Predicated region
        $region65: #{vivit_forward.1} parent=11 // pred_check
          %p556 = pneg %p350
        $region66: #{vivit_forward.1} parent=11 // pred_check_branch
          %558 = sbr.rel (%p556) target = $region68
        $region67: #{vivit_forward.1} parent=11 // pred_region
          _
        $region68: #{vivit_forward.1} parent=11 // pred_fallthru
          _
        // Predicated region
        $region69: #{vivit_forward.1} parent=11 // pred_check
          %p559 = pneg %p371
        $region70: #{vivit_forward.1} parent=11 // pred_check_branch
          %561 = sbr.rel (%p559) target = $region72
        $region71: #{vivit_forward.1} parent=11 // pred_region
          _
        $region72: #{vivit_forward.1} parent=11 // pred_fallthru
          _
        // Predicated region
        $region73: #{vivit_forward.1} parent=11 // pred_check
          %p562 = pneg %p392
        $region74: #{vivit_forward.1} parent=11 // pred_check_branch
          %564 = sbr.rel (%p562) target = $region76
        $region75: #{vivit_forward.1} parent=11 // pred_region
          _
        $region76: #{vivit_forward.1} parent=11 // pred_fallthru
          _
        // Predicated region
        $region77: #{vivit_forward.1} parent=11 // pred_check
          %p565 = pneg %p413
        $region78: #{vivit_forward.1} parent=11 // pred_check_branch
          %567 = sbr.rel (%p565) target = $region80
        $region79: #{vivit_forward.1} parent=11 // pred_region
          _
        $region80: #{vivit_forward.1} parent=11 // pred_fallthru
          _
        // Predicated region
        $region81: #{vivit_forward.1} parent=11 // pred_check
          %p568 = pneg %p434
        $region82: #{vivit_forward.1} parent=11 // pred_check_branch
          %570 = sbr.rel (%p568) target = $region84
        $region83: #{vivit_forward.1} parent=11 // pred_region
          _
        $region84: #{vivit_forward.1} parent=11 // pred_fallthru
          _
        // Predicated region
        $region85: #{vivit_forward.1} parent=11 // pred_check
          %p571 = pneg %p455
        $region86: #{vivit_forward.1} parent=11 // pred_check_branch
          %573 = sbr.rel (%p571) target = $region88
        $region87: #{vivit_forward.1} parent=11 // pred_region
          _
        $region88: #{vivit_forward.1} parent=11 // pred_fallthru
          _
        // Predicated region
        $region89: #{vivit_forward.1} parent=11 // pred_check
          %p574 = pneg %p476
        $region90: #{vivit_forward.1} parent=11 // pred_check_branch
          %576 = sbr.rel (%p574) target = $region92
        $region91: #{vivit_forward.1} parent=11 // pred_region
          _
        $region92: #{vivit_forward.1} parent=11 // pred_fallthru
          _
      $region12: #{vivit_forward.1} parent=5 // pred_fallthru
        _
      %p577 = scmp.lt.s32.totalorder %s30, 2
      // Predicated region
      $region93: #{vivit_forward.1} parent=5 // pred_check
        %p578 = pneg %p577
      $region94: #{vivit_forward.1} parent=5 // pred_check_branch
        %580 = sbr.rel (%p578) target = $region96
      $region95: #{vivit_forward.1} parent=5 // pred_region
        // Predicated region
        $region97: #{vivit_forward.1} parent=95 // pred_check
          %p581 = pneg %p50
        $region98: #{vivit_forward.1} parent=95 // pred_check_branch
          %583 = sbr.rel (%p581) target = $region100
        $region99: #{vivit_forward.1} parent=95 // pred_region
          %p584 = scmp.lt.s32.totalorder %s30, 1
          %s585 = scalar_select %p584, %s30, 1
          %s586 = smul.addr %s585, 2
          %s587 = smul.addr %s586, 8
          %s588 = scalar_lea.vmem %s0, %s587
        $region100: #{vivit_forward.1} parent=95 // pred_fallthru
          _
      $region96: #{vivit_forward.1} parent=5 // pred_fallthru
        _
      %p589 = scmp.le.s32.totalorder 1, %s30
      %p590 = scmp.lt.s32.totalorder %s30, 3
      %p591 = pnand %p589, %p590
      %p592 = pneg %p591
      // Predicated region
      $region101: #{vivit_forward.1} parent=5 // pred_check
        _
      $region102: #{vivit_forward.1} parent=5 // pred_check_branch
        %594 = sbr.rel (%p591) target = $region104
      $region103: #{vivit_forward.1} parent=5 // pred_region
        %s595 = ssub.s32 %s30, 1
        %p596 = scmp.lt.s32.totalorder %s35, 1
        %s597 = scalar_select %p596, %s35, 1
        %s598 = smul.addr %s597, 2
        %s599 = smul.addr %s598, 8
        %s600 = scalar_lea.vmem %s0, %s599
        %p601 = pneg %p56
        %p602 = pneg %p53
        %p603 = pneg %p77
        %p604 = pneg %p74
        %p605 = pneg %p98
        %p606 = pneg %p95
        %p607 = pneg %p119
        %p608 = pneg %p116
        %p609 = pneg %p140
        %p610 = pneg %p137
        %p611 = pneg %p161
        %p612 = pneg %p158
        %p613 = pneg %p182
        %p614 = pneg %p179
        %p615 = pneg %p203
        %p616 = pneg %p200
        %p617 = pneg %p224
        %p618 = pneg %p221
        %p619 = pneg %p245
        %p620 = pneg %p242
        %p621 = pneg %p266
        %p622 = pneg %p263
        %p623 = pneg %p287
        %p624 = pneg %p284
        %p625 = pneg %p308
        %p626 = pneg %p305
        %p627 = pneg %p329
        %p628 = pneg %p326
        %p629 = pneg %p350
        %p630 = pneg %p347
        %p631 = pneg %p371
        %p632 = pneg %p368
        %p633 = pneg %p392
        %p634 = pneg %p389
        %p635 = pneg %p413
        %p636 = pneg %p410
        %p637 = pneg %p434
        %p638 = pneg %p431
        %p639 = pneg %p455
        %p640 = pneg %p452
        %p641 = pneg %p476
        %p642 = pneg %p473
        %p643 = pneg %p502
        %p644 = pneg %p499
        %s645 = sand.u32 %s489, 1
        %s646 = scalar_lea.sflag [#allocation3], %s645
        %s647 = sand.u32 %s489, 1
        %s648 = scalar_lea.vmem [#allocation2], %s647
        %p649 = scmp.lt.s32.totalorder %s35, 1
        %s650 = scalar_select %p649, %s35, 1
        %s651 = smul.addr %s650, 2
        %s652 = smul.addr %s651, 8
        %s653 = scalar_lea.vmem %s0, %s652
        %v654 = vld [vmem:[%s653] sm:$0xff]
        %v655 = vld [vmem:[%s653 + $0x8] sm:$0x1]
        %v656 = vld [vmem:[%s1] sm:$0xff]
        %v657 = vld [vmem:[%s1 + $0x8] sm:$0xff]
        %v658 = vld [vmem:[%s1 + $0x10] sm:$0xff]
        %v659 = vld [vmem:[%s1 + $0x18] sm:$0xff]
        %v660 = vld [vmem:[%s1 + $0x20] sm:$0xff]
        %v661 = vld [vmem:[%s1 + $0x28] sm:$0xff]
        %v662 = vld [vmem:[%s1 + $0x30] sm:$0xff]
        %v663 = vld [vmem:[%s1 + $0x38] sm:$0xff]
        %v664 = vld [vmem:[%s1 + $0x40] sm:$0xff]
        %v665 = vld [vmem:[%s1 + $0x48] sm:$0xff]
        %v666 = vld [vmem:[%s1 + $0x50] sm:$0xff]
        %v667 = vld [vmem:[%s1 + $0x58] sm:$0xff]
        %v668 = vld [vmem:[%s2] sm:$0x1]
        %v670 = vlaneseq
        %v671 = vshrl.u32 %v670, 7
        %v672 = vsub.s32 0, %v671
        %v673 = vrot.slane %v668, %v672
        %vm675 = vcmask 785408
        %v677 = vsel %vm675, %v654, 0
        %v680 = vsel %vm675, %v655, 0
        %682 = vmatprep.subr.mxu0 0.0
        %683 = vmatpush1.msra.mxu0 0.0
        %684 = vmatprep.subr.mxu0 0.0
        %685 = vmatpush1.msra.mxu0 0.0
        %686 = vmatprep.subr.mxu0 0.0
        %687 = vmatpush1.msra.mxu0 0.0
        %688 = vmatprep.subr.mxu0 0.0
        %689 = vmatpush1.msra.mxu0 0.0
        %690 = vmatprep.subr.mxu0 0.0
        %691 = vmatpush1.msra.mxu0 %v667
        %692 = vmatprep.subr.mxu0 0.0
        %693 = vmatpush1.msra.mxu0 %v666
        %694 = vmatprep.subr.mxu0 0.0
        %695 = vmatpush1.msra.mxu0 %v665
        %696 = vmatprep.subr.mxu0 0.0
        %697 = vmatpush1.msra.mxu0 %v664
        %698 = vmatprep.subr.mxu0 0.0
        %699 = vmatpush1.msra.mxu0 %v663
        %700 = vmatprep.subr.mxu0 0.0
        %701 = vmatpush1.msra.mxu0 %v662
        %702 = vmatprep.subr.mxu0 0.0
        %703 = vmatpush1.msra.mxu0 %v661
        %704 = vmatprep.subr.mxu0 0.0
        %705 = vmatpush1.msra.mxu0 %v660
        %706 = vmatprep.subr.mxu0 0.0
        %707 = vmatpush1.msra.mxu0 %v659
        %708 = vmatprep.subr.mxu0 0.0
        %709 = vmatpush1.msra.mxu0 %v658
        %710 = vmatprep.subr.mxu0 0.0
        %711 = vmatpush1.msra.mxu0 %v657
        %712 = vmatprep.subr.mxu0 0.0
        %713 = vmatpush1.msra.mxu0 %v656
        %714 = vmatprep.subr.mxu0 0.0
        %715 = vmatpush2.msra.mxu0 0.0
        %716 = vmatprep.subr.mxu0 0.0
        %717 = vmatpush2.msra.mxu0 0.0
        %718 = vmatprep.subr.mxu0 0.0
        %719 = vmatpush2.msra.mxu0 0.0
        %720 = vmatprep.subr.mxu0 0.0
        %721 = vmatpush2.msra.mxu0 0.0
        %722 = vmatprep.subr.mxu0 0.0
        %723 = vmatpush2.msra.mxu0 0.0
        %724 = vmatprep.subr.mxu0 0.0
        %725 = vmatpush2.msra.mxu0 0.0
        %726 = vmatprep.subr.mxu0 0.0
        %727 = vmatpush2.msra.mxu0 0.0
        %728 = vmatprep.subr.mxu0 0.0
        %729 = vmatpush2.msra.mxu0 0.0
        %730 = vmatprep.subr.mxu0 0.0
        %731 = vmatpush2.msra.mxu0 0.0
        %732 = vmatprep.subr.mxu0 0.0
        %733 = vmatpush2.msra.mxu0 0.0
        %734 = vmatprep.subr.mxu0 0.0
        %735 = vmatpush2.msra.mxu0 0.0
        %736 = vmatprep.subr.mxu0 0.0
        %737 = vmatpush2.msra.mxu0 0.0
        %738 = vmatprep.subr.mxu0 0.0
        %739 = vmatpush2.msra.mxu0 0.0
        %740 = vmatprep.subr.mxu0 0.0
        %741 = vmatpush2.msra.mxu0 0.0
        %742 = vmatprep.subr.mxu0 0.0
        %743 = vmatpush2.msra.mxu0 0.0
        %744 = vmatprep.subr.mxu0 0.0
        %745 = vmatpush2.msra.mxu0 0.0
        %746 = vmatprep.mubr.f32.mxu0 0.0
        %747 = vmatmul.mubr.f32.gmra.mxu0 %v677
        %v748 = vpop.f32.mrf.mxu0
        %v749 = vadd.f32 %v673, %v748
        %v750 = vpop.f32.mrf.mxu0
        %751 = vmatprep.mubr.f32.mxu0 0.0
        %752 = vmatmul.mubr.f32.gmra.mxu0 %v680
        %v753 = vpop.f32.mrf.mxu0
        %v754 = vadd.f32 %v673, %v753
        %v755 = vpop.f32.mrf.mxu0
        %756 = vdwg.mxu0
        %v757 = vlaneseq
        %v758 = vshrl.u32 %v757, 7
        %v759 = vadd.s32 %v758, 8
        %v760 = vld [vmem:[%s3] sm:$0x1]
        %v762 = vlaneseq
        %v763 = vshrl.u32 %v762, 7
        %v764 = vsub.s32 0, %v763
        %v765 = vrot.slane %v760, %v764
        %vm767 = vcmp.eq.s32.totalorder %v758, 0
        %vm768 = vcmp.eq.s32.totalorder %v759, 0
        %v769 = vsel %vm767, %v765, %v749
        %v770 = vsel %vm768, %v765, %v754
        %v771 = vld [vmem:[%s4] sm:$0xff]
        %v772 = vld [vmem:[%s4 + $0x8] sm:$0x1]
        %v773 = vadd.f32 %v769, %v771
        %v774 = vadd.f32 %v770, %v772
        %v775 = vld [vmem:[%s5] sm:$0x1]
        %v776 = vld [vmem:[%s6] sm:$0x1]
        %vm777 = vcmask 261120
        %v778 = vsel %vm777, %v773, 0.0
        %779 = vadd.xlane.f32.xlu0 %v778
        %v780 = vpop.xlane.xlu0 %779
        %vm781 = vcmask 253952
        %v782 = vsel %vm781, %v774, 0.0
        %783 = vadd.xlane.f32.xlu0 %v782
        %v784 = vpop.xlane.xlu0 %783
        %v785 = vrcp.pop 32.0
        %v786 = vmul.f32 %v780, %v785
        %v787 = vmul.f32 %v784, %v785
        %v788 = vsub.f32 %v773, %v786
        %v789 = vsub.f32 %v774, %v787
        %v790 = vmul.f32 %v788, %v788
        %v791 = vmul.f32 %v789, %v789
        %v792 = vsel %vm777, %v790, 0.0
        %793 = vadd.xlane.f32.xlu0 %v792
        %v794 = vpop.xlane.xlu0 %793
        %v795 = vsel %vm781, %v791, 0.0
        %796 = vadd.xlane.f32.xlu0 %v795
        %v797 = vpop.xlane.xlu0 %796
        %v798 = vmul.f32 %v794, %v785
        %v799 = vmul.f32 %v797, %v785
        %v800 = vadd.f32 %v798, 1e-06
        %v801 = vadd.f32 %v799, 1e-06
        %v802 = vrsqrt.pop %v800
        %v803 = vrsqrt.pop %v801
        %v804 = vmul.f32 %v788, %v802
        %v805 = vmul.f32 %v789, %v803
        %v807 = vlaneseq
        %v808 = vshrl.u32 %v807, 7
        %v809 = vsub.s32 0, %v808
        %v810 = vrot.slane %v775, %v809
        %v812 = vmul.f32 %v804, %v810
        %v813 = vmul.f32 %v805, %v810
        %v815 = vlaneseq
        %v816 = vshrl.u32 %v815, 7
        %v817 = vsub.s32 0, %v816
        %v818 = vrot.slane %v776, %v817
        %v820 = vadd.f32 %v812, %v818
        %v821 = vadd.f32 %v813, %v818
        %v822 = vld [vmem:[%s7] sm:$0xff]
        %v823 = vld [vmem:[%s7 + $0x8] sm:$0xff]
        %v824 = vld [vmem:[%s7 + $0x10] sm:$0xff]
        %v825 = vld [vmem:[%s7 + $0x18] sm:$0xff]
        %v826 = vld [vmem:[%s8] sm:$0x1]
        %v828 = vlaneseq
        %v829 = vshrl.u32 %v828, 7
        %v830 = vsub.s32 0, %v829
        %v831 = vrot.slane %v826, %v830
        %v834 = vsel %vm777, %v820, 0
        %v837 = vsel %vm777, %v821, 0
        %839 = vmatprep.subr.mxu0 0.0
        %840 = vmatpush1.msra.mxu0 0.0
        %841 = vmatprep.subr.mxu0 0.0
        %842 = vmatpush1.msra.mxu0 0.0
        %843 = vmatprep.subr.mxu0 0.0
        %844 = vmatpush1.msra.mxu0 0.0
        %845 = vmatprep.subr.mxu0 0.0
        %846 = vmatpush1.msra.mxu0 0.0
        %847 = vmatprep.subr.mxu0 0.0
        %848 = vmatpush1.msra.mxu0 0.0
        %849 = vmatprep.subr.mxu0 0.0
        %850 = vmatpush1.msra.mxu0 0.0
        %851 = vmatprep.subr.mxu0 0.0
        %852 = vmatpush1.msra.mxu0 0.0
        %853 = vmatprep.subr.mxu0 0.0
        %854 = vmatpush1.msra.mxu0 0.0
        %855 = vmatprep.subr.mxu0 0.0
        %856 = vmatpush1.msra.mxu0 0.0
        %857 = vmatprep.subr.mxu0 0.0
        %858 = vmatpush1.msra.mxu0 0.0
        %859 = vmatprep.subr.mxu0 0.0
        %860 = vmatpush1.msra.mxu0 0.0
        %861 = vmatprep.subr.mxu0 0.0
        %862 = vmatpush1.msra.mxu0 0.0
        %863 = vmatprep.subr.mxu0 0.0
        %864 = vmatpush1.msra.mxu0 %v825
        %865 = vmatprep.subr.mxu0 0.0
        %866 = vmatpush1.msra.mxu0 %v824
        %867 = vmatprep.subr.mxu0 0.0
        %868 = vmatpush1.msra.mxu0 %v823
        %869 = vmatprep.subr.mxu0 0.0
        %870 = vmatpush1.msra.mxu0 %v822
        %871 = vmatprep.subr.mxu0 0.0
        %872 = vmatpush2.msra.mxu0 0.0
        %873 = vmatprep.subr.mxu0 0.0
        %874 = vmatpush2.msra.mxu0 0.0
        %875 = vmatprep.subr.mxu0 0.0
        %876 = vmatpush2.msra.mxu0 0.0
        %877 = vmatprep.subr.mxu0 0.0
        %878 = vmatpush2.msra.mxu0 0.0
        %879 = vmatprep.subr.mxu0 0.0
        %880 = vmatpush2.msra.mxu0 0.0
        %881 = vmatprep.subr.mxu0 0.0
        %882 = vmatpush2.msra.mxu0 0.0
        %883 = vmatprep.subr.mxu0 0.0
        %884 = vmatpush2.msra.mxu0 0.0
        %885 = vmatprep.subr.mxu0 0.0
        %886 = vmatpush2.msra.mxu0 0.0
        %887 = vmatprep.subr.mxu0 0.0
        %888 = vmatpush2.msra.mxu0 0.0
        %889 = vmatprep.subr.mxu0 0.0
        %890 = vmatpush2.msra.mxu0 0.0
        %891 = vmatprep.subr.mxu0 0.0
        %892 = vmatpush2.msra.mxu0 0.0
        %893 = vmatprep.subr.mxu0 0.0
        %894 = vmatpush2.msra.mxu0 0.0
        %895 = vmatprep.subr.mxu0 0.0
        %896 = vmatpush2.msra.mxu0 0.0
        %897 = vmatprep.subr.mxu0 0.0
        %898 = vmatpush2.msra.mxu0 0.0
        %899 = vmatprep.subr.mxu0 0.0
        %900 = vmatpush2.msra.mxu0 0.0
        %901 = vmatprep.subr.mxu0 0.0
        %902 = vmatpush2.msra.mxu0 0.0
        %903 = vmatprep.mubr.f32.mxu0 0.0
        %904 = vmatmul.mubr.f32.gmra.mxu0 %v834
        %v905 = vpop.f32.mrf.mxu0
        %v906 = vadd.f32 %v831, %v905
        %v907 = vpop.f32.mrf.mxu0
        %908 = vmatprep.mubr.f32.mxu0 0.0
        %909 = vmatmul.mubr.f32.gmra.mxu0 %v837
        %v910 = vpop.f32.mrf.mxu0
        %v911 = vadd.f32 %v831, %v910
        %v912 = vpop.f32.mrf.mxu0
        %913 = vdwg.mxu0
        %916 = vrot.lane.b32.xlu0 %v906, 96
        %v917 = vpop.permute.xlu0 %916
        %918 = vrot.lane.b32.xlu0 %v911, 96
        %v919 = vpop.permute.xlu0 %918
        %vm920 = vcmask 64512
        %v921 = vsel %vm920, %v906, 0
        %v923 = vsel %vm920, %v911, 0
        %v925 = vsel %vm920, %v917, 0
        %v927 = vsel %vm920, %v919, 0
        %929 = vmatprep.subr.mxu0 0.0
        %930 = vmatpush1.xpose.msra.mxu0 0.0
        %931 = vmatprep.subr.mxu0 0.0
        %932 = vmatpush1.xpose.msra.mxu0 0.0
        %933 = vmatprep.subr.mxu0 0.0
        %934 = vmatpush1.xpose.msra.mxu0 0.0
        %935 = vmatprep.subr.mxu0 0.0
        %936 = vmatpush1.xpose.msra.mxu0 0.0
        %937 = vmatprep.subr.mxu0 0.0
        %938 = vmatpush1.xpose.msra.mxu0 0.0
        %939 = vmatprep.subr.mxu0 0.0
        %940 = vmatpush1.xpose.msra.mxu0 0.0
        %941 = vmatprep.subr.mxu0 0.0
        %942 = vmatpush1.xpose.msra.mxu0 0.0
        %943 = vmatprep.subr.mxu0 0.0
        %944 = vmatpush1.xpose.msra.mxu0 0.0
        %945 = vmatprep.subr.mxu0 0.0
        %946 = vmatpush1.xpose.msra.mxu0 0.0
        %947 = vmatprep.subr.mxu0 0.0
        %948 = vmatpush1.xpose.msra.mxu0 0.0
        %949 = vmatprep.subr.mxu0 0.0
        %950 = vmatpush1.xpose.msra.mxu0 0.0
        %951 = vmatprep.subr.mxu0 0.0
        %952 = vmatpush1.xpose.msra.mxu0 0.0
        %953 = vmatprep.subr.mxu0 0.0
        %954 = vmatpush1.xpose.msra.mxu0 0.0
        %955 = vmatprep.subr.mxu0 0.0
        %956 = vmatpush1.xpose.msra.mxu0 0.0
        %957 = vmatprep.subr.mxu0 0.0
        %958 = vmatpush1.xpose.msra.mxu0 %v927
        %959 = vmatprep.subr.mxu0 0.0
        %960 = vmatpush1.xpose.msra.mxu0 %v925
        %961 = vmatprep.subr.mxu0 0.0
        %962 = vmatpush2.xpose.msra.mxu0 0.0
        %963 = vmatprep.subr.mxu0 0.0
        %964 = vmatpush2.xpose.msra.mxu0 0.0
        %965 = vmatprep.subr.mxu0 0.0
        %966 = vmatpush2.xpose.msra.mxu0 0.0
        %967 = vmatprep.subr.mxu0 0.0
        %968 = vmatpush2.xpose.msra.mxu0 0.0
        %969 = vmatprep.subr.mxu0 0.0
        %970 = vmatpush2.xpose.msra.mxu0 0.0
        %971 = vmatprep.subr.mxu0 0.0
        %972 = vmatpush2.xpose.msra.mxu0 0.0
        %973 = vmatprep.subr.mxu0 0.0
        %974 = vmatpush2.xpose.msra.mxu0 0.0
        %975 = vmatprep.subr.mxu0 0.0
        %976 = vmatpush2.xpose.msra.mxu0 0.0
        %977 = vmatprep.subr.mxu0 0.0
        %978 = vmatpush2.xpose.msra.mxu0 0.0
        %979 = vmatprep.subr.mxu0 0.0
        %980 = vmatpush2.xpose.msra.mxu0 0.0
        %981 = vmatprep.subr.mxu0 0.0
        %982 = vmatpush2.xpose.msra.mxu0 0.0
        %983 = vmatprep.subr.mxu0 0.0
        %984 = vmatpush2.xpose.msra.mxu0 0.0
        %985 = vmatprep.subr.mxu0 0.0
        %986 = vmatpush2.xpose.msra.mxu0 0.0
        %987 = vmatprep.subr.mxu0 0.0
        %988 = vmatpush2.xpose.msra.mxu0 0.0
        %989 = vmatprep.subr.mxu0 0.0
        %990 = vmatpush2.xpose.msra.mxu0 0.0
        %991 = vmatprep.subr.mxu0 0.0
        %992 = vmatpush2.xpose.msra.mxu0 0.0
        %993 = vmatprep.mubr.f32.mxu0 0.0
        %994 = vmatmul.mubr.f32.gmra.mxu0 %v921
        %v995 = vpop.f32.mrf.mxu0
        %v996 = vadd.f32 0.0, %v995
        %v997 = vpop.f32.mrf.mxu0
        %998 = vmatprep.mubr.f32.mxu0 0.0
        %999 = vmatmul.mubr.f32.gmra.mxu0 %v923
        %v1000 = vpop.f32.mrf.mxu0
        %v1001 = vadd.f32 0.0, %v1000
        %v1002 = vpop.f32.mrf.mxu0
        %1003 = vdwg.mxu0
        %v1004 = vmul.f32 %v996, 0.35355338
        %v1005 = vmul.f32 %v1001, 0.35355338
        %vm1006 = vcmask 72704
        %v1007 = vsel %vm1006, %v1004, -inf
        %1008 = vmax.xlane.f32.xlu0 %v1007
        %v1009 = vpop.xlane.xlu0 %1008
        %vm1010 = vcmask 65536
        %v1011 = vsel %vm1010, %v1005, -inf
        %1012 = vmax.xlane.f32.xlu0 %v1011
        %v1013 = vpop.xlane.xlu0 %1012
        %v1014 = vsub.f32 %v1004, %v1009
        %v1015 = vsub.f32 %v1005, %v1013
        %v1016 = vmul.f32 %v1014, 1.442695
        %v1017 = vpow.pop %v1016
        %v1018 = vmul.f32 %v1015, 1.442695
        %v1019 = vpow.pop %v1018
        %v1020 = vsel %vm1006, %v1017, 0.0
        %1021 = vadd.xlane.f32.xlu0 %v1020
        %v1022 = vpop.xlane.xlu0 %1021
        %v1023 = vsel %vm1010, %v1019, 0.0
        %1024 = vadd.xlane.f32.xlu0 %v1023
        %v1025 = vpop.xlane.xlu0 %1024
        %v1026 = vrcp.pop %v1022
        %v1027 = vrcp.pop %v1025
        %v1028 = vmul.f32 %v1017, %v1026
        %v1029 = vmul.f32 %v1019, %v1027
        %1030 = vrot.lane.b32.xlu0 %v906, 64
        %v1031 = vpop.permute.xlu0 %1030
        %1032 = vrot.lane.b32.xlu0 %v911, 64
        %v1033 = vpop.permute.xlu0 %1032
        %v1036 = vsel %vm1006, %v1028, 0
        %v1039 = vsel %vm1006, %v1029, 0
        %vm1041 = vcmask 1040384
        %v1042 = vsel %vm1041, %v1033, 0
        %1044 = vmatprep.subr.mxu0 0.0
        %1045 = vmatpush1.msra.mxu0 0.0
        %1046 = vmatprep.subr.mxu0 0.0
        %1047 = vmatpush1.msra.mxu0 0.0
        %1048 = vmatprep.subr.mxu0 0.0
        %1049 = vmatpush1.msra.mxu0 0.0
        %1050 = vmatprep.subr.mxu0 0.0
        %1051 = vmatpush1.msra.mxu0 0.0
        %1052 = vmatprep.subr.mxu0 0.0
        %1053 = vmatpush1.msra.mxu0 0.0
        %1054 = vmatprep.subr.mxu0 0.0
        %1055 = vmatpush1.msra.mxu0 0.0
        %1056 = vmatprep.subr.mxu0 0.0
        %1057 = vmatpush1.msra.mxu0 0.0
        %1058 = vmatprep.subr.mxu0 0.0
        %1059 = vmatpush1.msra.mxu0 0.0
        %1060 = vmatprep.subr.mxu0 0.0
        %1061 = vmatpush1.msra.mxu0 0.0
        %1062 = vmatprep.subr.mxu0 0.0
        %1063 = vmatpush1.msra.mxu0 0.0
        %1064 = vmatprep.subr.mxu0 0.0
        %1065 = vmatpush1.msra.mxu0 0.0
        %1066 = vmatprep.subr.mxu0 0.0
        %1067 = vmatpush1.msra.mxu0 0.0
        %1068 = vmatprep.subr.mxu0 0.0
        %1069 = vmatpush1.msra.mxu0 0.0
        %1070 = vmatprep.subr.mxu0 0.0
        %1071 = vmatpush1.msra.mxu0 0.0
        %1072 = vmatprep.subr.mxu0 0.0
        %1073 = vmatpush1.msra.mxu0 %v1042
        %1074 = vmatprep.subr.mxu0 0.0
        %1075 = vmatpush1.msra.mxu0 %v1031
        %1076 = vmatprep.subr.mxu0 0.0
        %1077 = vmatpush2.msra.mxu0 0.0
        %1078 = vmatprep.subr.mxu0 0.0
        %1079 = vmatpush2.msra.mxu0 0.0
        %1080 = vmatprep.subr.mxu0 0.0
        %1081 = vmatpush2.msra.mxu0 0.0
        %1082 = vmatprep.subr.mxu0 0.0
        %1083 = vmatpush2.msra.mxu0 0.0
        %1084 = vmatprep.subr.mxu0 0.0
        %1085 = vmatpush2.msra.mxu0 0.0
        %1086 = vmatprep.subr.mxu0 0.0
        %1087 = vmatpush2.msra.mxu0 0.0
        %1088 = vmatprep.subr.mxu0 0.0
        %1089 = vmatpush2.msra.mxu0 0.0
        %1090 = vmatprep.subr.mxu0 0.0
        %1091 = vmatpush2.msra.mxu0 0.0
        %1092 = vmatprep.subr.mxu0 0.0
        %1093 = vmatpush2.msra.mxu0 0.0
        %1094 = vmatprep.subr.mxu0 0.0
        %1095 = vmatpush2.msra.mxu0 0.0
        %1096 = vmatprep.subr.mxu0 0.0
        %1097 = vmatpush2.msra.mxu0 0.0
        %1098 = vmatprep.subr.mxu0 0.0
        %1099 = vmatpush2.msra.mxu0 0.0
        %1100 = vmatprep.subr.mxu0 0.0
        %1101 = vmatpush2.msra.mxu0 0.0
        %1102 = vmatprep.subr.mxu0 0.0
        %1103 = vmatpush2.msra.mxu0 0.0
        %1104 = vmatprep.subr.mxu0 0.0
        %1105 = vmatpush2.msra.mxu0 0.0
        %1106 = vmatprep.subr.mxu0 0.0
        %1107 = vmatpush2.msra.mxu0 0.0
        %1108 = vmatprep.mubr.f32.mxu0 0.0
        %1109 = vmatmul.mubr.f32.gmra.mxu0 %v1036
        %v1110 = vpop.f32.mrf.mxu0
        %v1111 = vadd.f32 0.0, %v1110
        %v1112 = vpop.f32.mrf.mxu0
        %1113 = vmatprep.mubr.f32.mxu0 0.0
        %1114 = vmatmul.mubr.f32.gmra.mxu0 %v1039
        %v1115 = vpop.f32.mrf.mxu0
        %v1116 = vadd.f32 0.0, %v1115
        %v1117 = vpop.f32.mrf.mxu0
        %1118 = vdwg.mxu0
        %1119 = vrot.lane.b32.xlu0 %v906, 120
        %v1120 = vpop.permute.xlu0 %1119
        %1121 = vrot.lane.b32.xlu0 %v911, 120
        %v1122 = vpop.permute.xlu0 %1121
        %1123 = vrot.lane.b32.xlu0 %v906, 88
        %v1124 = vpop.permute.xlu0 %1123
        %1125 = vrot.lane.b32.xlu0 %v911, 88
        %v1126 = vpop.permute.xlu0 %1125
        %v1127 = vsel %vm920, %v1120, 0
        %v1129 = vsel %vm920, %v1122, 0
        %v1131 = vsel %vm920, %v1124, 0
        %v1133 = vsel %vm920, %v1126, 0
        %1135 = vmatprep.subr.mxu0 0.0
        %1136 = vmatpush1.xpose.msra.mxu0 0.0
        %1137 = vmatprep.subr.mxu0 0.0
        %1138 = vmatpush1.xpose.msra.mxu0 0.0
        %1139 = vmatprep.subr.mxu0 0.0
        %1140 = vmatpush1.xpose.msra.mxu0 0.0
        %1141 = vmatprep.subr.mxu0 0.0
        %1142 = vmatpush1.xpose.msra.mxu0 0.0
        %1143 = vmatprep.subr.mxu0 0.0
        %1144 = vmatpush1.xpose.msra.mxu0 0.0
        %1145 = vmatprep.subr.mxu0 0.0
        %1146 = vmatpush1.xpose.msra.mxu0 0.0
        %1147 = vmatprep.subr.mxu0 0.0
        %1148 = vmatpush1.xpose.msra.mxu0 0.0
        %1149 = vmatprep.subr.mxu0 0.0
        %1150 = vmatpush1.xpose.msra.mxu0 0.0
        %1151 = vmatprep.subr.mxu0 0.0
        %1152 = vmatpush1.xpose.msra.mxu0 0.0
        %1153 = vmatprep.subr.mxu0 0.0
        %1154 = vmatpush1.xpose.msra.mxu0 0.0
        %1155 = vmatprep.subr.mxu0 0.0
        %1156 = vmatpush1.xpose.msra.mxu0 0.0
        %1157 = vmatprep.subr.mxu0 0.0
        %1158 = vmatpush1.xpose.msra.mxu0 0.0
        %1159 = vmatprep.subr.mxu0 0.0
        %1160 = vmatpush1.xpose.msra.mxu0 0.0
        %1161 = vmatprep.subr.mxu0 0.0
        %1162 = vmatpush1.xpose.msra.mxu0 0.0
        %1163 = vmatprep.subr.mxu0 0.0
        %1164 = vmatpush1.xpose.msra.mxu0 %v1133
        %1165 = vmatprep.subr.mxu0 0.0
        %1166 = vmatpush1.xpose.msra.mxu0 %v1131
        %1167 = vmatprep.subr.mxu0 0.0
        %1168 = vmatpush2.xpose.msra.mxu0 0.0
        %1169 = vmatprep.subr.mxu0 0.0
        %1170 = vmatpush2.xpose.msra.mxu0 0.0
        %1171 = vmatprep.subr.mxu0 0.0
        %1172 = vmatpush2.xpose.msra.mxu0 0.0
        %1173 = vmatprep.subr.mxu0 0.0
        %1174 = vmatpush2.xpose.msra.mxu0 0.0
        %1175 = vmatprep.subr.mxu0 0.0
        %1176 = vmatpush2.xpose.msra.mxu0 0.0
        %1177 = vmatprep.subr.mxu0 0.0
        %1178 = vmatpush2.xpose.msra.mxu0 0.0
        %1179 = vmatprep.subr.mxu0 0.0
        %1180 = vmatpush2.xpose.msra.mxu0 0.0
        %1181 = vmatprep.subr.mxu0 0.0
        %1182 = vmatpush2.xpose.msra.mxu0 0.0
        %1183 = vmatprep.subr.mxu0 0.0
        %1184 = vmatpush2.xpose.msra.mxu0 0.0
        %1185 = vmatprep.subr.mxu0 0.0
        %1186 = vmatpush2.xpose.msra.mxu0 0.0
        %1187 = vmatprep.subr.mxu0 0.0
        %1188 = vmatpush2.xpose.msra.mxu0 0.0
        %1189 = vmatprep.subr.mxu0 0.0
        %1190 = vmatpush2.xpose.msra.mxu0 0.0
        %1191 = vmatprep.subr.mxu0 0.0
        %1192 = vmatpush2.xpose.msra.mxu0 0.0
        %1193 = vmatprep.subr.mxu0 0.0
        %1194 = vmatpush2.xpose.msra.mxu0 0.0
        %1195 = vmatprep.subr.mxu0 0.0
        %1196 = vmatpush2.xpose.msra.mxu0 0.0
        %1197 = vmatprep.subr.mxu0 0.0
        %1198 = vmatpush2.xpose.msra.mxu0 0.0
        %1199 = vmatprep.mubr.f32.mxu0 0.0
        %1200 = vmatmul.mubr.f32.gmra.mxu0 %v1127
        %v1201 = vpop.f32.mrf.mxu0
        %v1202 = vadd.f32 0.0, %v1201
        %v1203 = vpop.f32.mrf.mxu0
        %1204 = vmatprep.mubr.f32.mxu0 0.0
        %1205 = vmatmul.mubr.f32.gmra.mxu0 %v1129
        %v1206 = vpop.f32.mrf.mxu0
        %v1207 = vadd.f32 0.0, %v1206
        %v1208 = vpop.f32.mrf.mxu0
        %1209 = vdwg.mxu0
        %v1210 = vmul.f32 %v1202, 0.35355338
        %v1211 = vmul.f32 %v1207, 0.35355338
        %v1212 = vsel %vm1006, %v1210, -inf
        %1213 = vmax.xlane.f32.xlu0 %v1212
        %v1214 = vpop.xlane.xlu0 %1213
        %v1215 = vsel %vm1010, %v1211, -inf
        %1216 = vmax.xlane.f32.xlu0 %v1215
        %v1217 = vpop.xlane.xlu0 %1216
        %v1218 = vsub.f32 %v1210, %v1214
        %v1219 = vsub.f32 %v1211, %v1217
        %v1220 = vmul.f32 %v1218, 1.442695
        %v1221 = vpow.pop %v1220
        %v1222 = vmul.f32 %v1219, 1.442695
        %v1223 = vpow.pop %v1222
        %v1224 = vsel %vm1006, %v1221, 0.0
        %1225 = vadd.xlane.f32.xlu0 %v1224
        %v1226 = vpop.xlane.xlu0 %1225
        %v1227 = vsel %vm1010, %v1223, 0.0
        %1228 = vadd.xlane.f32.xlu0 %v1227
        %v1229 = vpop.xlane.xlu0 %1228
        %v1230 = vrcp.pop %v1226
        %v1231 = vrcp.pop %v1229
        %v1232 = vmul.f32 %v1221, %v1230
        %v1233 = vmul.f32 %v1223, %v1231
        %1234 = vrot.lane.b32.xlu0 %v906, 56
        %v1235 = vpop.permute.xlu0 %1234
        %1236 = vrot.lane.b32.xlu0 %v911, 56
        %v1237 = vpop.permute.xlu0 %1236
        %v1240 = vsel %vm1006, %v1232, 0
        %v1243 = vsel %vm1006, %v1233, 0
        %v1245 = vsel %vm1041, %v1237, 0
        %1247 = vmatprep.subr.mxu0 0.0
        %1248 = vmatpush1.msra.mxu0 0.0
        %1249 = vmatprep.subr.mxu0 0.0
        %1250 = vmatpush1.msra.mxu0 0.0
        %1251 = vmatprep.subr.mxu0 0.0
        %1252 = vmatpush1.msra.mxu0 0.0
        %1253 = vmatprep.subr.mxu0 0.0
        %1254 = vmatpush1.msra.mxu0 0.0
        %1255 = vmatprep.subr.mxu0 0.0
        %1256 = vmatpush1.msra.mxu0 0.0
        %1257 = vmatprep.subr.mxu0 0.0
        %1258 = vmatpush1.msra.mxu0 0.0
        %1259 = vmatprep.subr.mxu0 0.0
        %1260 = vmatpush1.msra.mxu0 0.0
        %1261 = vmatprep.subr.mxu0 0.0
        %1262 = vmatpush1.msra.mxu0 0.0
        %1263 = vmatprep.subr.mxu0 0.0
        %1264 = vmatpush1.msra.mxu0 0.0
        %1265 = vmatprep.subr.mxu0 0.0
        %1266 = vmatpush1.msra.mxu0 0.0
        %1267 = vmatprep.subr.mxu0 0.0
        %1268 = vmatpush1.msra.mxu0 0.0
        %1269 = vmatprep.subr.mxu0 0.0
        %1270 = vmatpush1.msra.mxu0 0.0
        %1271 = vmatprep.subr.mxu0 0.0
        %1272 = vmatpush1.msra.mxu0 0.0
        %1273 = vmatprep.subr.mxu0 0.0
        %1274 = vmatpush1.msra.mxu0 0.0
        %1275 = vmatprep.subr.mxu0 0.0
        %1276 = vmatpush1.msra.mxu0 %v1245
        %1277 = vmatprep.subr.mxu0 0.0
        %1278 = vmatpush1.msra.mxu0 %v1235
        %1279 = vmatprep.subr.mxu0 0.0
        %1280 = vmatpush2.msra.mxu0 0.0
        %1281 = vmatprep.subr.mxu0 0.0
        %1282 = vmatpush2.msra.mxu0 0.0
        %1283 = vmatprep.subr.mxu0 0.0
        %1284 = vmatpush2.msra.mxu0 0.0
        %1285 = vmatprep.subr.mxu0 0.0
        %1286 = vmatpush2.msra.mxu0 0.0
        %1287 = vmatprep.subr.mxu0 0.0
        %1288 = vmatpush2.msra.mxu0 0.0
        %1289 = vmatprep.subr.mxu0 0.0
        %1290 = vmatpush2.msra.mxu0 0.0
        %1291 = vmatprep.subr.mxu0 0.0
        %1292 = vmatpush2.msra.mxu0 0.0
        %1293 = vmatprep.subr.mxu0 0.0
        %1294 = vmatpush2.msra.mxu0 0.0
        %1295 = vmatprep.subr.mxu0 0.0
        %1296 = vmatpush2.msra.mxu0 0.0
        %1297 = vmatprep.subr.mxu0 0.0
        %1298 = vmatpush2.msra.mxu0 0.0
        %1299 = vmatprep.subr.mxu0 0.0
        %1300 = vmatpush2.msra.mxu0 0.0
        %1301 = vmatprep.subr.mxu0 0.0
        %1302 = vmatpush2.msra.mxu0 0.0
        %1303 = vmatprep.subr.mxu0 0.0
        %1304 = vmatpush2.msra.mxu0 0.0
        %1305 = vmatprep.subr.mxu0 0.0
        %1306 = vmatpush2.msra.mxu0 0.0
        %1307 = vmatprep.subr.mxu0 0.0
        %1308 = vmatpush2.msra.mxu0 0.0
        %1309 = vmatprep.subr.mxu0 0.0
        %1310 = vmatpush2.msra.mxu0 0.0
        %1311 = vmatprep.mubr.f32.mxu0 0.0
        %1312 = vmatmul.mubr.f32.gmra.mxu0 %v1240
        %v1313 = vpop.f32.mrf.mxu0
        %v1314 = vadd.f32 0.0, %v1313
        %v1315 = vpop.f32.mrf.mxu0
        %1316 = vmatprep.mubr.f32.mxu0 0.0
        %1317 = vmatmul.mubr.f32.gmra.mxu0 %v1243
        %v1318 = vpop.f32.mrf.mxu0
        %v1319 = vadd.f32 0.0, %v1318
        %v1320 = vpop.f32.mrf.mxu0
        %1321 = vdwg.mxu0
        %1322 = vrot.lane.b32.xlu0 %v906, 112
        %v1323 = vpop.permute.xlu0 %1322
        %1324 = vrot.lane.b32.xlu0 %v911, 112
        %v1325 = vpop.permute.xlu0 %1324
        %1326 = vrot.lane.b32.xlu0 %v906, 80
        %v1327 = vpop.permute.xlu0 %1326
        %1328 = vrot.lane.b32.xlu0 %v911, 80
        %v1329 = vpop.permute.xlu0 %1328
        %v1330 = vsel %vm920, %v1323, 0
        %v1332 = vsel %vm920, %v1325, 0
        %v1334 = vsel %vm920, %v1327, 0
        %v1336 = vsel %vm920, %v1329, 0
        %1338 = vmatprep.subr.mxu0 0.0
        %1339 = vmatpush1.xpose.msra.mxu0 0.0
        %1340 = vmatprep.subr.mxu0 0.0
        %1341 = vmatpush1.xpose.msra.mxu0 0.0
        %1342 = vmatprep.subr.mxu0 0.0
        %1343 = vmatpush1.xpose.msra.mxu0 0.0
        %1344 = vmatprep.subr.mxu0 0.0
        %1345 = vmatpush1.xpose.msra.mxu0 0.0
        %1346 = vmatprep.subr.mxu0 0.0
        %1347 = vmatpush1.xpose.msra.mxu0 0.0
        %1348 = vmatprep.subr.mxu0 0.0
        %1349 = vmatpush1.xpose.msra.mxu0 0.0
        %1350 = vmatprep.subr.mxu0 0.0
        %1351 = vmatpush1.xpose.msra.mxu0 0.0
        %1352 = vmatprep.subr.mxu0 0.0
        %1353 = vmatpush1.xpose.msra.mxu0 0.0
        %1354 = vmatprep.subr.mxu0 0.0
        %1355 = vmatpush1.xpose.msra.mxu0 0.0
        %1356 = vmatprep.subr.mxu0 0.0
        %1357 = vmatpush1.xpose.msra.mxu0 0.0
        %1358 = vmatprep.subr.mxu0 0.0
        %1359 = vmatpush1.xpose.msra.mxu0 0.0
        %1360 = vmatprep.subr.mxu0 0.0
        %1361 = vmatpush1.xpose.msra.mxu0 0.0
        %1362 = vmatprep.subr.mxu0 0.0
        %1363 = vmatpush1.xpose.msra.mxu0 0.0
        %1364 = vmatprep.subr.mxu0 0.0
        %1365 = vmatpush1.xpose.msra.mxu0 0.0
        %1366 = vmatprep.subr.mxu0 0.0
        %1367 = vmatpush1.xpose.msra.mxu0 %v1336
        %1368 = vmatprep.subr.mxu0 0.0
        %1369 = vmatpush1.xpose.msra.mxu0 %v1334
        %1370 = vmatprep.subr.mxu0 0.0
        %1371 = vmatpush2.xpose.msra.mxu0 0.0
        %1372 = vmatprep.subr.mxu0 0.0
        %1373 = vmatpush2.xpose.msra.mxu0 0.0
        %1374 = vmatprep.subr.mxu0 0.0
        %1375 = vmatpush2.xpose.msra.mxu0 0.0
        %1376 = vmatprep.subr.mxu0 0.0
        %1377 = vmatpush2.xpose.msra.mxu0 0.0
        %1378 = vmatprep.subr.mxu0 0.0
        %1379 = vmatpush2.xpose.msra.mxu0 0.0
        %1380 = vmatprep.subr.mxu0 0.0
        %1381 = vmatpush2.xpose.msra.mxu0 0.0
        %1382 = vmatprep.subr.mxu0 0.0
        %1383 = vmatpush2.xpose.msra.mxu0 0.0
        %1384 = vmatprep.subr.mxu0 0.0
        %1385 = vmatpush2.xpose.msra.mxu0 0.0
        %1386 = vmatprep.subr.mxu0 0.0
        %1387 = vmatpush2.xpose.msra.mxu0 0.0
        %1388 = vmatprep.subr.mxu0 0.0
        %1389 = vmatpush2.xpose.msra.mxu0 0.0
        %1390 = vmatprep.subr.mxu0 0.0
        %1391 = vmatpush2.xpose.msra.mxu0 0.0
        %1392 = vmatprep.subr.mxu0 0.0
        %1393 = vmatpush2.xpose.msra.mxu0 0.0
        %1394 = vmatprep.subr.mxu0 0.0
        %1395 = vmatpush2.xpose.msra.mxu0 0.0
        %1396 = vmatprep.subr.mxu0 0.0
        %1397 = vmatpush2.xpose.msra.mxu0 0.0
        %1398 = vmatprep.subr.mxu0 0.0
        %1399 = vmatpush2.xpose.msra.mxu0 0.0
        %1400 = vmatprep.subr.mxu0 0.0
        %1401 = vmatpush2.xpose.msra.mxu0 0.0
        %1402 = vmatprep.mubr.f32.mxu0 0.0
        %1403 = vmatmul.mubr.f32.gmra.mxu0 %v1330
        %v1404 = vpop.f32.mrf.mxu0
        %v1405 = vadd.f32 0.0, %v1404
        %v1406 = vpop.f32.mrf.mxu0
        %1407 = vmatprep.mubr.f32.mxu0 0.0
        %1408 = vmatmul.mubr.f32.gmra.mxu0 %v1332
        %v1409 = vpop.f32.mrf.mxu0
        %v1410 = vadd.f32 0.0, %v1409
        %v1411 = vpop.f32.mrf.mxu0
        %1412 = vdwg.mxu0
        %v1413 = vmul.f32 %v1405, 0.35355338
        %v1414 = vmul.f32 %v1410, 0.35355338
        %v1415 = vsel %vm1006, %v1413, -inf
        %1416 = vmax.xlane.f32.xlu0 %v1415
        %v1417 = vpop.xlane.xlu0 %1416
        %v1418 = vsel %vm1010, %v1414, -inf
        %1419 = vmax.xlane.f32.xlu0 %v1418
        %v1420 = vpop.xlane.xlu0 %1419
        %v1421 = vsub.f32 %v1413, %v1417
        %v1422 = vsub.f32 %v1414, %v1420
        %v1423 = vmul.f32 %v1421, 1.442695
        %v1424 = vpow.pop %v1423
        %v1425 = vmul.f32 %v1422, 1.442695
        %v1426 = vpow.pop %v1425
        %v1427 = vsel %vm1006, %v1424, 0.0
        %1428 = vadd.xlane.f32.xlu0 %v1427
        %v1429 = vpop.xlane.xlu0 %1428
        %v1430 = vsel %vm1010, %v1426, 0.0
        %1431 = vadd.xlane.f32.xlu0 %v1430
        %v1432 = vpop.xlane.xlu0 %1431
        %v1433 = vrcp.pop %v1429
        %v1434 = vrcp.pop %v1432
        %v1435 = vmul.f32 %v1424, %v1433
        %v1436 = vmul.f32 %v1426, %v1434
        %1437 = vrot.lane.b32.xlu0 %v906, 48
        %v1438 = vpop.permute.xlu0 %1437
        %1439 = vrot.lane.b32.xlu0 %v911, 48
        %v1440 = vpop.permute.xlu0 %1439
        %v1443 = vsel %vm1006, %v1435, 0
        %v1446 = vsel %vm1006, %v1436, 0
        %v1448 = vsel %vm1041, %v1440, 0
        %1450 = vmatprep.subr.mxu0 0.0
        %1451 = vmatpush1.msra.mxu0 0.0
        %1452 = vmatprep.subr.mxu0 0.0
        %1453 = vmatpush1.msra.mxu0 0.0
        %1454 = vmatprep.subr.mxu0 0.0
        %1455 = vmatpush1.msra.mxu0 0.0
        %1456 = vmatprep.subr.mxu0 0.0
        %1457 = vmatpush1.msra.mxu0 0.0
        %1458 = vmatprep.subr.mxu0 0.0
        %1459 = vmatpush1.msra.mxu0 0.0
        %1460 = vmatprep.subr.mxu0 0.0
        %1461 = vmatpush1.msra.mxu0 0.0
        %1462 = vmatprep.subr.mxu0 0.0
        %1463 = vmatpush1.msra.mxu0 0.0
        %1464 = vmatprep.subr.mxu0 0.0
        %1465 = vmatpush1.msra.mxu0 0.0
        %1466 = vmatprep.subr.mxu0 0.0
        %1467 = vmatpush1.msra.mxu0 0.0
        %1468 = vmatprep.subr.mxu0 0.0
        %1469 = vmatpush1.msra.mxu0 0.0
        %1470 = vmatprep.subr.mxu0 0.0
        %1471 = vmatpush1.msra.mxu0 0.0
        %1472 = vmatprep.subr.mxu0 0.0
        %1473 = vmatpush1.msra.mxu0 0.0
        %1474 = vmatprep.subr.mxu0 0.0
        %1475 = vmatpush1.msra.mxu0 0.0
        %1476 = vmatprep.subr.mxu0 0.0
        %1477 = vmatpush1.msra.mxu0 0.0
        %1478 = vmatprep.subr.mxu0 0.0
        %1479 = vmatpush1.msra.mxu0 %v1448
        %1480 = vmatprep.subr.mxu0 0.0
        %1481 = vmatpush1.msra.mxu0 %v1438
        %1482 = vmatprep.subr.mxu0 0.0
        %1483 = vmatpush2.msra.mxu0 0.0
        %1484 = vmatprep.subr.mxu0 0.0
        %1485 = vmatpush2.msra.mxu0 0.0
        %1486 = vmatprep.subr.mxu0 0.0
        %1487 = vmatpush2.msra.mxu0 0.0
        %1488 = vmatprep.subr.mxu0 0.0
        %1489 = vmatpush2.msra.mxu0 0.0
        %1490 = vmatprep.subr.mxu0 0.0
        %1491 = vmatpush2.msra.mxu0 0.0
        %1492 = vmatprep.subr.mxu0 0.0
        %1493 = vmatpush2.msra.mxu0 0.0
        %1494 = vmatprep.subr.mxu0 0.0
        %1495 = vmatpush2.msra.mxu0 0.0
        %1496 = vmatprep.subr.mxu0 0.0
        %1497 = vmatpush2.msra.mxu0 0.0
        %1498 = vmatprep.subr.mxu0 0.0
        %1499 = vmatpush2.msra.mxu0 0.0
        %1500 = vmatprep.subr.mxu0 0.0
        %1501 = vmatpush2.msra.mxu0 0.0
        %1502 = vmatprep.subr.mxu0 0.0
        %1503 = vmatpush2.msra.mxu0 0.0
        %1504 = vmatprep.subr.mxu0 0.0
        %1505 = vmatpush2.msra.mxu0 0.0
        %1506 = vmatprep.subr.mxu0 0.0
        %1507 = vmatpush2.msra.mxu0 0.0
        %1508 = vmatprep.subr.mxu0 0.0
        %1509 = vmatpush2.msra.mxu0 0.0
        %1510 = vmatprep.subr.mxu0 0.0
        %1511 = vmatpush2.msra.mxu0 0.0
        %1512 = vmatprep.subr.mxu0 0.0
        %1513 = vmatpush2.msra.mxu0 0.0
        %1514 = vmatprep.mubr.f32.mxu0 0.0
        %1515 = vmatmul.mubr.f32.gmra.mxu0 %v1443
        %v1516 = vpop.f32.mrf.mxu0
        %v1517 = vadd.f32 0.0, %v1516
        %v1518 = vpop.f32.mrf.mxu0
        %1519 = vmatprep.mubr.f32.mxu0 0.0
        %1520 = vmatmul.mubr.f32.gmra.mxu0 %v1446
        %v1521 = vpop.f32.mrf.mxu0
        %v1522 = vadd.f32 0.0, %v1521
        %v1523 = vpop.f32.mrf.mxu0
        %1524 = vdwg.mxu0
        %1525 = vrot.lane.b32.xlu0 %v906, 104
        %v1526 = vpop.permute.xlu0 %1525
        %1527 = vrot.lane.b32.xlu0 %v911, 104
        %v1528 = vpop.permute.xlu0 %1527
        %1529 = vrot.lane.b32.xlu0 %v906, 72
        %v1530 = vpop.permute.xlu0 %1529
        %1531 = vrot.lane.b32.xlu0 %v911, 72
        %v1532 = vpop.permute.xlu0 %1531
        %v1533 = vsel %vm920, %v1526, 0
        %v1535 = vsel %vm920, %v1528, 0
        %v1537 = vsel %vm920, %v1530, 0
        %v1539 = vsel %vm920, %v1532, 0
        %1541 = vmatprep.subr.mxu0 0.0
        %1542 = vmatpush1.xpose.msra.mxu0 0.0
        %1543 = vmatprep.subr.mxu0 0.0
        %1544 = vmatpush1.xpose.msra.mxu0 0.0
        %1545 = vmatprep.subr.mxu0 0.0
        %1546 = vmatpush1.xpose.msra.mxu0 0.0
        %1547 = vmatprep.subr.mxu0 0.0
        %1548 = vmatpush1.xpose.msra.mxu0 0.0
        %1549 = vmatprep.subr.mxu0 0.0
        %1550 = vmatpush1.xpose.msra.mxu0 0.0
        %1551 = vmatprep.subr.mxu0 0.0
        %1552 = vmatpush1.xpose.msra.mxu0 0.0
        %1553 = vmatprep.subr.mxu0 0.0
        %1554 = vmatpush1.xpose.msra.mxu0 0.0
        %1555 = vmatprep.subr.mxu0 0.0
        %1556 = vmatpush1.xpose.msra.mxu0 0.0
        %1557 = vmatprep.subr.mxu0 0.0
        %1558 = vmatpush1.xpose.msra.mxu0 0.0
        %1559 = vmatprep.subr.mxu0 0.0
        %1560 = vmatpush1.xpose.msra.mxu0 0.0
        %1561 = vmatprep.subr.mxu0 0.0
        %1562 = vmatpush1.xpose.msra.mxu0 0.0
        %1563 = vmatprep.subr.mxu0 0.0
        %1564 = vmatpush1.xpose.msra.mxu0 0.0
        %1565 = vmatprep.subr.mxu0 0.0
        %1566 = vmatpush1.xpose.msra.mxu0 0.0
        %1567 = vmatprep.subr.mxu0 0.0
        %1568 = vmatpush1.xpose.msra.mxu0 0.0
        %1569 = vmatprep.subr.mxu0 0.0
        %1570 = vmatpush1.xpose.msra.mxu0 %v1539
        %1571 = vmatprep.subr.mxu0 0.0
        %1572 = vmatpush1.xpose.msra.mxu0 %v1537
        %1573 = vmatprep.subr.mxu0 0.0
        %1574 = vmatpush2.xpose.msra.mxu0 0.0
        %1575 = vmatprep.subr.mxu0 0.0
        %1576 = vmatpush2.xpose.msra.mxu0 0.0
        %1577 = vmatprep.subr.mxu0 0.0
        %1578 = vmatpush2.xpose.msra.mxu0 0.0
        %1579 = vmatprep.subr.mxu0 0.0
        %1580 = vmatpush2.xpose.msra.mxu0 0.0
        %1581 = vmatprep.subr.mxu0 0.0
        %1582 = vmatpush2.xpose.msra.mxu0 0.0
        %1583 = vmatprep.subr.mxu0 0.0
        %1584 = vmatpush2.xpose.msra.mxu0 0.0
        %1585 = vmatprep.subr.mxu0 0.0
        %1586 = vmatpush2.xpose.msra.mxu0 0.0
        %1587 = vmatprep.subr.mxu0 0.0
        %1588 = vmatpush2.xpose.msra.mxu0 0.0
        %1589 = vmatprep.subr.mxu0 0.0
        %1590 = vmatpush2.xpose.msra.mxu0 0.0
        %1591 = vmatprep.subr.mxu0 0.0
        %1592 = vmatpush2.xpose.msra.mxu0 0.0
        %1593 = vmatprep.subr.mxu0 0.0
        %1594 = vmatpush2.xpose.msra.mxu0 0.0
        %1595 = vmatprep.subr.mxu0 0.0
        %1596 = vmatpush2.xpose.msra.mxu0 0.0
        %1597 = vmatprep.subr.mxu0 0.0
        %1598 = vmatpush2.xpose.msra.mxu0 0.0
        %1599 = vmatprep.subr.mxu0 0.0
        %1600 = vmatpush2.xpose.msra.mxu0 0.0
        %1601 = vmatprep.subr.mxu0 0.0
        %1602 = vmatpush2.xpose.msra.mxu0 0.0
        %1603 = vmatprep.subr.mxu0 0.0
        %1604 = vmatpush2.xpose.msra.mxu0 0.0
        %1605 = vmatprep.mubr.f32.mxu0 0.0
        %1606 = vmatmul.mubr.f32.gmra.mxu0 %v1533
        %v1607 = vpop.f32.mrf.mxu0
        %v1608 = vadd.f32 0.0, %v1607
        %v1609 = vpop.f32.mrf.mxu0
        %1610 = vmatprep.mubr.f32.mxu0 0.0
        %1611 = vmatmul.mubr.f32.gmra.mxu0 %v1535
        %v1612 = vpop.f32.mrf.mxu0
        %v1613 = vadd.f32 0.0, %v1612
        %v1614 = vpop.f32.mrf.mxu0
        %1615 = vdwg.mxu0
        %v1616 = vmul.f32 %v1608, 0.35355338
        %v1617 = vmul.f32 %v1613, 0.35355338
        %v1618 = vsel %vm1006, %v1616, -inf
        %1619 = vmax.xlane.f32.xlu0 %v1618
        %v1620 = vpop.xlane.xlu0 %1619
        %v1621 = vsel %vm1010, %v1617, -inf
        %1622 = vmax.xlane.f32.xlu0 %v1621
        %v1623 = vpop.xlane.xlu0 %1622
        %v1624 = vsub.f32 %v1616, %v1620
        %v1625 = vsub.f32 %v1617, %v1623
        %v1626 = vmul.f32 %v1624, 1.442695
        %v1627 = vpow.pop %v1626
        %v1628 = vmul.f32 %v1625, 1.442695
        %v1629 = vpow.pop %v1628
        %v1630 = vsel %vm1006, %v1627, 0.0
        %1631 = vadd.xlane.f32.xlu0 %v1630
        %v1632 = vpop.xlane.xlu0 %1631
        %v1633 = vsel %vm1010, %v1629, 0.0
        %1634 = vadd.xlane.f32.xlu0 %v1633
        %v1635 = vpop.xlane.xlu0 %1634
        %v1636 = vrcp.pop %v1632
        %v1637 = vrcp.pop %v1635
        %v1638 = vmul.f32 %v1627, %v1636
        %v1639 = vmul.f32 %v1629, %v1637
        %1640 = vrot.lane.b32.xlu0 %v906, 40
        %v1641 = vpop.permute.xlu0 %1640
        %1642 = vrot.lane.b32.xlu0 %v911, 40
        %v1643 = vpop.permute.xlu0 %1642
        %v1646 = vsel %vm1006, %v1638, 0
        %v1649 = vsel %vm1006, %v1639, 0
        %v1651 = vsel %vm1041, %v1643, 0
        %1653 = vmatprep.subr.mxu0 0.0
        %1654 = vmatpush1.msra.mxu0 0.0
        %1655 = vmatprep.subr.mxu0 0.0
        %1656 = vmatpush1.msra.mxu0 0.0
        %1657 = vmatprep.subr.mxu0 0.0
        %1658 = vmatpush1.msra.mxu0 0.0
        %1659 = vmatprep.subr.mxu0 0.0
        %1660 = vmatpush1.msra.mxu0 0.0
        %1661 = vmatprep.subr.mxu0 0.0
        %1662 = vmatpush1.msra.mxu0 0.0
        %1663 = vmatprep.subr.mxu0 0.0
        %1664 = vmatpush1.msra.mxu0 0.0
        %1665 = vmatprep.subr.mxu0 0.0
        %1666 = vmatpush1.msra.mxu0 0.0
        %1667 = vmatprep.subr.mxu0 0.0
        %1668 = vmatpush1.msra.mxu0 0.0
        %1669 = vmatprep.subr.mxu0 0.0
        %1670 = vmatpush1.msra.mxu0 0.0
        %1671 = vmatprep.subr.mxu0 0.0
        %1672 = vmatpush1.msra.mxu0 0.0
        %1673 = vmatprep.subr.mxu0 0.0
        %1674 = vmatpush1.msra.mxu0 0.0
        %1675 = vmatprep.subr.mxu0 0.0
        %1676 = vmatpush1.msra.mxu0 0.0
        %1677 = vmatprep.subr.mxu0 0.0
        %1678 = vmatpush1.msra.mxu0 0.0
        %1679 = vmatprep.subr.mxu0 0.0
        %1680 = vmatpush1.msra.mxu0 0.0
        %1681 = vmatprep.subr.mxu0 0.0
        %1682 = vmatpush1.msra.mxu0 %v1651
        %1683 = vmatprep.subr.mxu0 0.0
        %1684 = vmatpush1.msra.mxu0 %v1641
        %1685 = vmatprep.subr.mxu0 0.0
        %1686 = vmatpush2.msra.mxu0 0.0
        %1687 = vmatprep.subr.mxu0 0.0
        %1688 = vmatpush2.msra.mxu0 0.0
        %1689 = vmatprep.subr.mxu0 0.0
        %1690 = vmatpush2.msra.mxu0 0.0
        %1691 = vmatprep.subr.mxu0 0.0
        %1692 = vmatpush2.msra.mxu0 0.0
        %1693 = vmatprep.subr.mxu0 0.0
        %1694 = vmatpush2.msra.mxu0 0.0
        %1695 = vmatprep.subr.mxu0 0.0
        %1696 = vmatpush2.msra.mxu0 0.0
        %1697 = vmatprep.subr.mxu0 0.0
        %1698 = vmatpush2.msra.mxu0 0.0
        %1699 = vmatprep.subr.mxu0 0.0
        %1700 = vmatpush2.msra.mxu0 0.0
        %1701 = vmatprep.subr.mxu0 0.0
        %1702 = vmatpush2.msra.mxu0 0.0
        %1703 = vmatprep.subr.mxu0 0.0
        %1704 = vmatpush2.msra.mxu0 0.0
        %1705 = vmatprep.subr.mxu0 0.0
        %1706 = vmatpush2.msra.mxu0 0.0
        %1707 = vmatprep.subr.mxu0 0.0
        %1708 = vmatpush2.msra.mxu0 0.0
        %1709 = vmatprep.subr.mxu0 0.0
        %1710 = vmatpush2.msra.mxu0 0.0
        %1711 = vmatprep.subr.mxu0 0.0
        %1712 = vmatpush2.msra.mxu0 0.0
        %1713 = vmatprep.subr.mxu0 0.0
        %1714 = vmatpush2.msra.mxu0 0.0
        %1715 = vmatprep.subr.mxu0 0.0
        %1716 = vmatpush2.msra.mxu0 0.0
        %1717 = vmatprep.mubr.f32.mxu0 0.0
        %1718 = vmatmul.mubr.f32.gmra.mxu0 %v1646
        %v1719 = vpop.f32.mrf.mxu0
        %v1720 = vadd.f32 0.0, %v1719
        %v1721 = vpop.f32.mrf.mxu0
        %1722 = vmatprep.mubr.f32.mxu0 0.0
        %1723 = vmatmul.mubr.f32.gmra.mxu0 %v1649
        %v1724 = vpop.f32.mrf.mxu0
        %v1725 = vadd.f32 0.0, %v1724
        %v1726 = vpop.f32.mrf.mxu0
        %1727 = vdwg.mxu0
        %1730 = vrot.lane.b32.xlu0 %v1314, 8
        %v1731 = vpop.permute.xlu0 %1730
        %1732 = vrot.lane.b32.xlu0 %v1319, 8
        %v1733 = vpop.permute.xlu0 %1732
        %1738 = vrot.lane.b32.xlu0 %v1517, 16
        %v1739 = vpop.permute.xlu0 %1738
        %1740 = vrot.lane.b32.xlu0 %v1522, 16
        %v1741 = vpop.permute.xlu0 %1740
        %1746 = vrot.lane.b32.xlu0 %v1720, 24
        %v1747 = vpop.permute.xlu0 %1746
        %1748 = vrot.lane.b32.xlu0 %v1725, 24
        %v1749 = vpop.permute.xlu0 %1748
        %v1752 = vsel %vm920, %v1111, %v1731
        %v1753 = vsel %vm920, %v1116, %v1733
        %vm1754 = vcmask 130048
        %v1755 = vsel %vm1754, %v1752, %v1739
        %v1756 = vsel %vm1754, %v1753, %v1741
        %vm1757 = vcmask 195584
        %v1758 = vsel %vm1757, %v1755, %v1747
        %v1759 = vsel %vm1757, %v1756, %v1749
        %v1760 = vld [vmem:[%s9] sm:$0xff]
        %v1761 = vld [vmem:[%s9 + $0x8] sm:$0xff]
        %v1762 = vld [vmem:[%s9 + $0x10] sm:$0xff]
        %v1763 = vld [vmem:[%s9 + $0x18] sm:$0xff]
        %v1764 = vld [vmem:[%s10] sm:$0x1]
        %v1766 = vlaneseq
        %v1767 = vshrl.u32 %v1766, 7
        %v1768 = vsub.s32 0, %v1767
        %v1769 = vrot.slane %v1764, %v1768
        %v1772 = vsel %vm777, %v1758, 0
        %v1775 = vsel %vm777, %v1759, 0
        %1777 = vmatprep.subr.mxu0 0.0
        %1778 = vmatpush1.msra.mxu0 0.0
        %1779 = vmatprep.subr.mxu0 0.0
        %1780 = vmatpush1.msra.mxu0 0.0
        %1781 = vmatprep.subr.mxu0 0.0
        %1782 = vmatpush1.msra.mxu0 0.0
        %1783 = vmatprep.subr.mxu0 0.0
        %1784 = vmatpush1.msra.mxu0 0.0
        %1785 = vmatprep.subr.mxu0 0.0
        %1786 = vmatpush1.msra.mxu0 0.0
        %1787 = vmatprep.subr.mxu0 0.0
        %1788 = vmatpush1.msra.mxu0 0.0
        %1789 = vmatprep.subr.mxu0 0.0
        %1790 = vmatpush1.msra.mxu0 0.0
        %1791 = vmatprep.subr.mxu0 0.0
        %1792 = vmatpush1.msra.mxu0 0.0
        %1793 = vmatprep.subr.mxu0 0.0
        %1794 = vmatpush1.msra.mxu0 0.0
        %1795 = vmatprep.subr.mxu0 0.0
        %1796 = vmatpush1.msra.mxu0 0.0
        %1797 = vmatprep.subr.mxu0 0.0
        %1798 = vmatpush1.msra.mxu0 0.0
        %1799 = vmatprep.subr.mxu0 0.0
        %1800 = vmatpush1.msra.mxu0 0.0
        %1801 = vmatprep.subr.mxu0 0.0
        %1802 = vmatpush1.msra.mxu0 %v1763
        %1803 = vmatprep.subr.mxu0 0.0
        %1804 = vmatpush1.msra.mxu0 %v1762
        %1805 = vmatprep.subr.mxu0 0.0
        %1806 = vmatpush1.msra.mxu0 %v1761
        %1807 = vmatprep.subr.mxu0 0.0
        %1808 = vmatpush1.msra.mxu0 %v1760
        %1809 = vmatprep.subr.mxu0 0.0
        %1810 = vmatpush2.msra.mxu0 0.0
        %1811 = vmatprep.subr.mxu0 0.0
        %1812 = vmatpush2.msra.mxu0 0.0
        %1813 = vmatprep.subr.mxu0 0.0
        %1814 = vmatpush2.msra.mxu0 0.0
        %1815 = vmatprep.subr.mxu0 0.0
        %1816 = vmatpush2.msra.mxu0 0.0
        %1817 = vmatprep.subr.mxu0 0.0
        %1818 = vmatpush2.msra.mxu0 0.0
        %1819 = vmatprep.subr.mxu0 0.0
        %1820 = vmatpush2.msra.mxu0 0.0
        %1821 = vmatprep.subr.mxu0 0.0
        %1822 = vmatpush2.msra.mxu0 0.0
        %1823 = vmatprep.subr.mxu0 0.0
        %1824 = vmatpush2.msra.mxu0 0.0
        %1825 = vmatprep.subr.mxu0 0.0
        %1826 = vmatpush2.msra.mxu0 0.0
        %1827 = vmatprep.subr.mxu0 0.0
        %1828 = vmatpush2.msra.mxu0 0.0
        %1829 = vmatprep.subr.mxu0 0.0
        %1830 = vmatpush2.msra.mxu0 0.0
        %1831 = vmatprep.subr.mxu0 0.0
        %1832 = vmatpush2.msra.mxu0 0.0
        %1833 = vmatprep.subr.mxu0 0.0
        %1834 = vmatpush2.msra.mxu0 0.0
        %1835 = vmatprep.subr.mxu0 0.0
        %1836 = vmatpush2.msra.mxu0 0.0
        %1837 = vmatprep.subr.mxu0 0.0
        %1838 = vmatpush2.msra.mxu0 0.0
        %1839 = vmatprep.subr.mxu0 0.0
        %1840 = vmatpush2.msra.mxu0 0.0
        %1841 = vmatprep.mubr.f32.mxu0 0.0
        %1842 = vmatmul.mubr.f32.gmra.mxu0 %v1772
        %v1843 = vpop.f32.mrf.mxu0
        %v1844 = vadd.f32 %v1769, %v1843
        %v1845 = vpop.f32.mrf.mxu0
        %1846 = vmatprep.mubr.f32.mxu0 0.0
        %1847 = vmatmul.mubr.f32.gmra.mxu0 %v1775
        %v1848 = vpop.f32.mrf.mxu0
        %v1849 = vadd.f32 %v1769, %v1848
        %v1850 = vpop.f32.mrf.mxu0
        %1851 = vdwg.mxu0
        %v1852 = vadd.f32 %v1844, %v773
        %v1853 = vadd.f32 %v1849, %v774
        %v1854 = vld [vmem:[%s11] sm:$0x1]
        %v1855 = vld [vmem:[%s12] sm:$0x1]
        %v1856 = vsel %vm777, %v1852, 0.0
        %1857 = vadd.xlane.f32.xlu0 %v1856
        %v1858 = vpop.xlane.xlu0 %1857
        %v1859 = vsel %vm781, %v1853, 0.0
        %1860 = vadd.xlane.f32.xlu0 %v1859
        %v1861 = vpop.xlane.xlu0 %1860
        %v1862 = vmul.f32 %v1858, %v785
        %v1863 = vmul.f32 %v1861, %v785
        %v1864 = vsub.f32 %v1852, %v1862
        %v1865 = vsub.f32 %v1853, %v1863
        %v1866 = vmul.f32 %v1864, %v1864
        %v1867 = vmul.f32 %v1865, %v1865
        %v1868 = vsel %vm777, %v1866, 0.0
        %1869 = vadd.xlane.f32.xlu0 %v1868
        %v1870 = vpop.xlane.xlu0 %1869
        %v1871 = vsel %vm781, %v1867, 0.0
        %1872 = vadd.xlane.f32.xlu0 %v1871
        %v1873 = vpop.xlane.xlu0 %1872
        %v1874 = vmul.f32 %v1870, %v785
        %v1875 = vmul.f32 %v1873, %v785
        %v1876 = vadd.f32 %v1874, 1e-06
        %v1877 = vadd.f32 %v1875, 1e-06
        %v1878 = vrsqrt.pop %v1876
        %v1879 = vrsqrt.pop %v1877
        %v1880 = vmul.f32 %v1864, %v1878
        %v1881 = vmul.f32 %v1865, %v1879
        %v1883 = vlaneseq
        %v1884 = vshrl.u32 %v1883, 7
        %v1885 = vsub.s32 0, %v1884
        %v1886 = vrot.slane %v1854, %v1885
        %v1888 = vmul.f32 %v1880, %v1886
        %v1889 = vmul.f32 %v1881, %v1886
        %v1891 = vlaneseq
        %v1892 = vshrl.u32 %v1891, 7
        %v1893 = vsub.s32 0, %v1892
        %v1894 = vrot.slane %v1855, %v1893
        %v1896 = vadd.f32 %v1888, %v1894
        %v1897 = vadd.f32 %v1889, %v1894
        %v1898 = vld [vmem:[%s13] sm:$0xff]
        %v1899 = vld [vmem:[%s13 + $0x8] sm:$0xff]
        %v1900 = vld [vmem:[%s13 + $0x10] sm:$0xff]
        %v1901 = vld [vmem:[%s13 + $0x18] sm:$0xff]
        %v1902 = vld [vmem:[%s14] sm:$0x1]
        %v1904 = vlaneseq
        %v1905 = vshrl.u32 %v1904, 7
        %v1906 = vsub.s32 0, %v1905
        %v1907 = vrot.slane %v1902, %v1906
        %v1910 = vsel %vm777, %v1896, 0
        %v1913 = vsel %vm777, %v1897, 0
        %1915 = vmatprep.subr.mxu0 0.0
        %1916 = vmatpush1.msra.mxu0 0.0
        %1917 = vmatprep.subr.mxu0 0.0
        %1918 = vmatpush1.msra.mxu0 0.0
        %1919 = vmatprep.subr.mxu0 0.0
        %1920 = vmatpush1.msra.mxu0 0.0
        %1921 = vmatprep.subr.mxu0 0.0
        %1922 = vmatpush1.msra.mxu0 0.0
        %1923 = vmatprep.subr.mxu0 0.0
        %1924 = vmatpush1.msra.mxu0 0.0
        %1925 = vmatprep.subr.mxu0 0.0
        %1926 = vmatpush1.msra.mxu0 0.0
        %1927 = vmatprep.subr.mxu0 0.0
        %1928 = vmatpush1.msra.mxu0 0.0
        %1929 = vmatprep.subr.mxu0 0.0
        %1930 = vmatpush1.msra.mxu0 0.0
        %1931 = vmatprep.subr.mxu0 0.0
        %1932 = vmatpush1.msra.mxu0 0.0
        %1933 = vmatprep.subr.mxu0 0.0
        %1934 = vmatpush1.msra.mxu0 0.0
        %1935 = vmatprep.subr.mxu0 0.0
        %1936 = vmatpush1.msra.mxu0 0.0
        %1937 = vmatprep.subr.mxu0 0.0
        %1938 = vmatpush1.msra.mxu0 0.0
        %1939 = vmatprep.subr.mxu0 0.0
        %1940 = vmatpush1.msra.mxu0 %v1901
        %1941 = vmatprep.subr.mxu0 0.0
        %1942 = vmatpush1.msra.mxu0 %v1900
        %1943 = vmatprep.subr.mxu0 0.0
        %1944 = vmatpush1.msra.mxu0 %v1899
        %1945 = vmatprep.subr.mxu0 0.0
        %1946 = vmatpush1.msra.mxu0 %v1898
        %1947 = vmatprep.subr.mxu0 0.0
        %1948 = vmatpush2.msra.mxu0 0.0
        %1949 = vmatprep.subr.mxu0 0.0
        %1950 = vmatpush2.msra.mxu0 0.0
        %1951 = vmatprep.subr.mxu0 0.0
        %1952 = vmatpush2.msra.mxu0 0.0
        %1953 = vmatprep.subr.mxu0 0.0
        %1954 = vmatpush2.msra.mxu0 0.0
        %1955 = vmatprep.subr.mxu0 0.0
        %1956 = vmatpush2.msra.mxu0 0.0
        %1957 = vmatprep.subr.mxu0 0.0
        %1958 = vmatpush2.msra.mxu0 0.0
        %1959 = vmatprep.subr.mxu0 0.0
        %1960 = vmatpush2.msra.mxu0 0.0
        %1961 = vmatprep.subr.mxu0 0.0
        %1962 = vmatpush2.msra.mxu0 0.0
        %1963 = vmatprep.subr.mxu0 0.0
        %1964 = vmatpush2.msra.mxu0 0.0
        %1965 = vmatprep.subr.mxu0 0.0
        %1966 = vmatpush2.msra.mxu0 0.0
        %1967 = vmatprep.subr.mxu0 0.0
        %1968 = vmatpush2.msra.mxu0 0.0
        %1969 = vmatprep.subr.mxu0 0.0
        %1970 = vmatpush2.msra.mxu0 0.0
        %1971 = vmatprep.subr.mxu0 0.0
        %1972 = vmatpush2.msra.mxu0 0.0
        %1973 = vmatprep.subr.mxu0 0.0
        %1974 = vmatpush2.msra.mxu0 0.0
        %1975 = vmatprep.subr.mxu0 0.0
        %1976 = vmatpush2.msra.mxu0 0.0
        %1977 = vmatprep.subr.mxu0 0.0
        %1978 = vmatpush2.msra.mxu0 0.0
        %1979 = vmatprep.mubr.f32.mxu0 0.0
        %1980 = vmatmul.mubr.f32.gmra.mxu0 %v1910
        %v1981 = vpop.f32.mrf.mxu0
        %v1982 = vadd.f32 %v1907, %v1981
        %v1983 = vpop.f32.mrf.mxu0
        %1984 = vmatprep.mubr.f32.mxu0 0.0
        %1985 = vmatmul.mubr.f32.gmra.mxu0 %v1913
        %v1986 = vpop.f32.mrf.mxu0
        %v1987 = vadd.f32 %v1907, %v1986
        %v1988 = vpop.f32.mrf.mxu0
        %1989 = vdwg.mxu0
        %v1990 = vmul.f32 %v1982, 0.5
        %v1991 = vmul.f32 %v1987, 0.5
        %v1992 = vmul.f32 %v1982, 0.044715
        %v1993 = vmul.f32 %v1987, 0.044715
        %v1994 = vmul.f32 %v1992, %v1982
        %v1995 = vmul.f32 %v1993, %v1987
        %v1996 = vmul.f32 %v1994, %v1982
        %v1997 = vmul.f32 %v1995, %v1987
        %v1998 = vadd.f32 %v1982, %v1996
        %v1999 = vadd.f32 %v1987, %v1997
        %v2000 = vmul.f32 %v1998, 0.7978846
        %v2001 = vmul.f32 %v1999, 0.7978846
        %v2002 = vtanh.pop %v2000
        %v2003 = vtanh.pop %v2001
        %v2004 = vadd.f32 %v2002, 1.0
        %v2005 = vadd.f32 %v2003, 1.0
        %v2006 = vmul.f32 %v1990, %v2004
        %v2007 = vmul.f32 %v1991, %v2005
        %v2008 = vld [vmem:[%s15] sm:$0xff]
        %v2009 = vld [vmem:[%s15 + $0x8] sm:$0xff]
        %v2010 = vld [vmem:[%s15 + $0x10] sm:$0xff]
        %v2011 = vld [vmem:[%s15 + $0x18] sm:$0xff]
        %v2012 = vld [vmem:[%s15 + $0x20] sm:$0xff]
        %v2013 = vld [vmem:[%s15 + $0x28] sm:$0xff]
        %v2014 = vld [vmem:[%s15 + $0x30] sm:$0xff]
        %v2015 = vld [vmem:[%s15 + $0x38] sm:$0xff]
        %v2016 = vld [vmem:[%s16] sm:$0x1]
        %v2018 = vlaneseq
        %v2019 = vshrl.u32 %v2018, 7
        %v2020 = vsub.s32 0, %v2019
        %v2021 = vrot.slane %v2016, %v2020
        %vm2023 = vcmask 523264
        %v2025 = vsel %vm2023, %v2006, 0
        %v2028 = vsel %vm2023, %v2007, 0
        %2030 = vmatprep.subr.mxu0 0.0
        %2031 = vmatpush1.msra.mxu0 0.0
        %2032 = vmatprep.subr.mxu0 0.0
        %2033 = vmatpush1.msra.mxu0 0.0
        %2034 = vmatprep.subr.mxu0 0.0
        %2035 = vmatpush1.msra.mxu0 0.0
        %2036 = vmatprep.subr.mxu0 0.0
        %2037 = vmatpush1.msra.mxu0 0.0
        %2038 = vmatprep.subr.mxu0 0.0
        %2039 = vmatpush1.msra.mxu0 0.0
        %2040 = vmatprep.subr.mxu0 0.0
        %2041 = vmatpush1.msra.mxu0 0.0
        %2042 = vmatprep.subr.mxu0 0.0
        %2043 = vmatpush1.msra.mxu0 0.0
        %2044 = vmatprep.subr.mxu0 0.0
        %2045 = vmatpush1.msra.mxu0 0.0
        %2046 = vmatprep.subr.mxu0 0.0
        %2047 = vmatpush1.msra.mxu0 %v2015
        %2048 = vmatprep.subr.mxu0 0.0
        %2049 = vmatpush1.msra.mxu0 %v2014
        %2050 = vmatprep.subr.mxu0 0.0
        %2051 = vmatpush1.msra.mxu0 %v2013
        %2052 = vmatprep.subr.mxu0 0.0
        %2053 = vmatpush1.msra.mxu0 %v2012
        %2054 = vmatprep.subr.mxu0 0.0
        %2055 = vmatpush1.msra.mxu0 %v2011
        %2056 = vmatprep.subr.mxu0 0.0
        %2057 = vmatpush1.msra.mxu0 %v2010
        %2058 = vmatprep.subr.mxu0 0.0
        %2059 = vmatpush1.msra.mxu0 %v2009
        %2060 = vmatprep.subr.mxu0 0.0
        %2061 = vmatpush1.msra.mxu0 %v2008
        %2062 = vmatprep.subr.mxu0 0.0
        %2063 = vmatpush2.msra.mxu0 0.0
        %2064 = vmatprep.subr.mxu0 0.0
        %2065 = vmatpush2.msra.mxu0 0.0
        %2066 = vmatprep.subr.mxu0 0.0
        %2067 = vmatpush2.msra.mxu0 0.0
        %2068 = vmatprep.subr.mxu0 0.0
        %2069 = vmatpush2.msra.mxu0 0.0
        %2070 = vmatprep.subr.mxu0 0.0
        %2071 = vmatpush2.msra.mxu0 0.0
        %2072 = vmatprep.subr.mxu0 0.0
        %2073 = vmatpush2.msra.mxu0 0.0
        %2074 = vmatprep.subr.mxu0 0.0
        %2075 = vmatpush2.msra.mxu0 0.0
        %2076 = vmatprep.subr.mxu0 0.0
        %2077 = vmatpush2.msra.mxu0 0.0
        %2078 = vmatprep.subr.mxu0 0.0
        %2079 = vmatpush2.msra.mxu0 0.0
        %2080 = vmatprep.subr.mxu0 0.0
        %2081 = vmatpush2.msra.mxu0 0.0
        %2082 = vmatprep.subr.mxu0 0.0
        %2083 = vmatpush2.msra.mxu0 0.0
        %2084 = vmatprep.subr.mxu0 0.0
        %2085 = vmatpush2.msra.mxu0 0.0
        %2086 = vmatprep.subr.mxu0 0.0
        %2087 = vmatpush2.msra.mxu0 0.0
        %2088 = vmatprep.subr.mxu0 0.0
        %2089 = vmatpush2.msra.mxu0 0.0
        %2090 = vmatprep.subr.mxu0 0.0
        %2091 = vmatpush2.msra.mxu0 0.0
        %2092 = vmatprep.subr.mxu0 0.0
        %2093 = vmatpush2.msra.mxu0 0.0
        %2094 = vmatprep.mubr.f32.mxu0 0.0
        %2095 = vmatmul.mubr.f32.gmra.mxu0 %v2025
        %v2096 = vpop.f32.mrf.mxu0
        %v2097 = vadd.f32 %v2021, %v2096
        %v2098 = vpop.f32.mrf.mxu0
        %2099 = vmatprep.mubr.f32.mxu0 0.0
        %2100 = vmatmul.mubr.f32.gmra.mxu0 %v2028
        %v2101 = vpop.f32.mrf.mxu0
        %v2102 = vadd.f32 %v2021, %v2101
        %v2103 = vpop.f32.mrf.mxu0
        %2104 = vdwg.mxu0
        %v2105 = vadd.f32 %v2097, %v1852
        %v2106 = vadd.f32 %v2102, %v1853
        %s2107 = scalar_lea.vmem %s5, 1
        %v2108 = vld [vmem:[%s2107] sm:$0x1]
        %s2109 = scalar_lea.vmem %s6, 1
        %v2110 = vld [vmem:[%s2109] sm:$0x1]
        %v2111 = vsel %vm777, %v2105, 0.0
        %2112 = vadd.xlane.f32.xlu0 %v2111
        %v2113 = vpop.xlane.xlu0 %2112
        %v2114 = vsel %vm781, %v2106, 0.0
        %2115 = vadd.xlane.f32.xlu0 %v2114
        %v2116 = vpop.xlane.xlu0 %2115
        %v2117 = vmul.f32 %v2113, %v785
        %v2118 = vmul.f32 %v2116, %v785
        %v2119 = vsub.f32 %v2105, %v2117
        %v2120 = vsub.f32 %v2106, %v2118
        %v2121 = vmul.f32 %v2119, %v2119
        %v2122 = vmul.f32 %v2120, %v2120
        %v2123 = vsel %vm777, %v2121, 0.0
        %2124 = vadd.xlane.f32.xlu0 %v2123
        %v2125 = vpop.xlane.xlu0 %2124
        %v2126 = vsel %vm781, %v2122, 0.0
        %2127 = vadd.xlane.f32.xlu0 %v2126
        %v2128 = vpop.xlane.xlu0 %2127
        %v2129 = vmul.f32 %v2125, %v785
        %v2130 = vmul.f32 %v2128, %v785
        %v2131 = vadd.f32 %v2129, 1e-06
        %v2132 = vadd.f32 %v2130, 1e-06
        %v2133 = vrsqrt.pop %v2131
        %v2134 = vrsqrt.pop %v2132
        %v2135 = vmul.f32 %v2119, %v2133
        %v2136 = vmul.f32 %v2120, %v2134
        %v2138 = vlaneseq
        %v2139 = vshrl.u32 %v2138, 7
        %v2140 = vsub.s32 0, %v2139
        %v2141 = vrot.slane %v2108, %v2140
        %v2143 = vmul.f32 %v2135, %v2141
        %v2144 = vmul.f32 %v2136, %v2141
        %v2146 = vlaneseq
        %v2147 = vshrl.u32 %v2146, 7
        %v2148 = vsub.s32 0, %v2147
        %v2149 = vrot.slane %v2110, %v2148
        %v2151 = vadd.f32 %v2143, %v2149
        %v2152 = vadd.f32 %v2144, %v2149
        %s2153 = scalar_lea.vmem %s7, 32
        %v2154 = vld [vmem:[%s2153] sm:$0xff]
        %v2155 = vld [vmem:[%s2153 + $0x8] sm:$0xff]
        %v2156 = vld [vmem:[%s2153 + $0x10] sm:$0xff]
        %v2157 = vld [vmem:[%s2153 + $0x18] sm:$0xff]
        %s2158 = scalar_lea.vmem %s8, 1
        %v2159 = vld [vmem:[%s2158] sm:$0x1]
        %v2161 = vlaneseq
        %v2162 = vshrl.u32 %v2161, 7
        %v2163 = vsub.s32 0, %v2162
        %v2164 = vrot.slane %v2159, %v2163
        %v2167 = vsel %vm777, %v2151, 0
        %v2170 = vsel %vm777, %v2152, 0
        %2172 = vmatprep.subr.mxu0 0.0
        %2173 = vmatpush1.msra.mxu0 0.0
        %2174 = vmatprep.subr.mxu0 0.0
        %2175 = vmatpush1.msra.mxu0 0.0
        %2176 = vmatprep.subr.mxu0 0.0
        %2177 = vmatpush1.msra.mxu0 0.0
        %2178 = vmatprep.subr.mxu0 0.0
        %2179 = vmatpush1.msra.mxu0 0.0
        %2180 = vmatprep.subr.mxu0 0.0
        %2181 = vmatpush1.msra.mxu0 0.0
        %2182 = vmatprep.subr.mxu0 0.0
        %2183 = vmatpush1.msra.mxu0 0.0
        %2184 = vmatprep.subr.mxu0 0.0
        %2185 = vmatpush1.msra.mxu0 0.0
        %2186 = vmatprep.subr.mxu0 0.0
        %2187 = vmatpush1.msra.mxu0 0.0
        %2188 = vmatprep.subr.mxu0 0.0
        %2189 = vmatpush1.msra.mxu0 0.0
        %2190 = vmatprep.subr.mxu0 0.0
        %2191 = vmatpush1.msra.mxu0 0.0
        %2192 = vmatprep.subr.mxu0 0.0
        %2193 = vmatpush1.msra.mxu0 0.0
        %2194 = vmatprep.subr.mxu0 0.0
        %2195 = vmatpush1.msra.mxu0 0.0
        %2196 = vmatprep.subr.mxu0 0.0
        %2197 = vmatpush1.msra.mxu0 %v2157
        %2198 = vmatprep.subr.mxu0 0.0
        %2199 = vmatpush1.msra.mxu0 %v2156
        %2200 = vmatprep.subr.mxu0 0.0
        %2201 = vmatpush1.msra.mxu0 %v2155
        %2202 = vmatprep.subr.mxu0 0.0
        %2203 = vmatpush1.msra.mxu0 %v2154
        %2204 = vmatprep.subr.mxu0 0.0
        %2205 = vmatpush2.msra.mxu0 0.0
        %2206 = vmatprep.subr.mxu0 0.0
        %2207 = vmatpush2.msra.mxu0 0.0
        %2208 = vmatprep.subr.mxu0 0.0
        %2209 = vmatpush2.msra.mxu0 0.0
        %2210 = vmatprep.subr.mxu0 0.0
        %2211 = vmatpush2.msra.mxu0 0.0
        %2212 = vmatprep.subr.mxu0 0.0
        %2213 = vmatpush2.msra.mxu0 0.0
        %2214 = vmatprep.subr.mxu0 0.0
        %2215 = vmatpush2.msra.mxu0 0.0
        %2216 = vmatprep.subr.mxu0 0.0
        %2217 = vmatpush2.msra.mxu0 0.0
        %2218 = vmatprep.subr.mxu0 0.0
        %2219 = vmatpush2.msra.mxu0 0.0
        %2220 = vmatprep.subr.mxu0 0.0
        %2221 = vmatpush2.msra.mxu0 0.0
        %2222 = vmatprep.subr.mxu0 0.0
        %2223 = vmatpush2.msra.mxu0 0.0
        %2224 = vmatprep.subr.mxu0 0.0
        %2225 = vmatpush2.msra.mxu0 0.0
        %2226 = vmatprep.subr.mxu0 0.0
        %2227 = vmatpush2.msra.mxu0 0.0
        %2228 = vmatprep.subr.mxu0 0.0
        %2229 = vmatpush2.msra.mxu0 0.0
        %2230 = vmatprep.subr.mxu0 0.0
        %2231 = vmatpush2.msra.mxu0 0.0
        %2232 = vmatprep.subr.mxu0 0.0
        %2233 = vmatpush2.msra.mxu0 0.0
        %2234 = vmatprep.subr.mxu0 0.0
        %2235 = vmatpush2.msra.mxu0 0.0
        %2236 = vmatprep.mubr.f32.mxu0 0.0
        %2237 = vmatmul.mubr.f32.gmra.mxu0 %v2167
        %v2238 = vpop.f32.mrf.mxu0
        %v2239 = vadd.f32 %v2164, %v2238
        %v2240 = vpop.f32.mrf.mxu0
        %2241 = vmatprep.mubr.f32.mxu0 0.0
        %2242 = vmatmul.mubr.f32.gmra.mxu0 %v2170
        %v2243 = vpop.f32.mrf.mxu0
        %v2244 = vadd.f32 %v2164, %v2243
        %v2245 = vpop.f32.mrf.mxu0
        %2246 = vdwg.mxu0
        %2249 = vrot.lane.b32.xlu0 %v2239, 96
        %v2250 = vpop.permute.xlu0 %2249
        %2251 = vrot.lane.b32.xlu0 %v2244, 96
        %v2252 = vpop.permute.xlu0 %2251
        %v2253 = vsel %vm920, %v2239, 0
        %v2255 = vsel %vm920, %v2244, 0
        %v2257 = vsel %vm920, %v2250, 0
        %v2259 = vsel %vm920, %v2252, 0
        %2261 = vmatprep.subr.mxu0 0.0
        %2262 = vmatpush1.xpose.msra.mxu0 0.0
        %2263 = vmatprep.subr.mxu0 0.0
        %2264 = vmatpush1.xpose.msra.mxu0 0.0
        %2265 = vmatprep.subr.mxu0 0.0
        %2266 = vmatpush1.xpose.msra.mxu0 0.0
        %2267 = vmatprep.subr.mxu0 0.0
        %2268 = vmatpush1.xpose.msra.mxu0 0.0
        %2269 = vmatprep.subr.mxu0 0.0
        %2270 = vmatpush1.xpose.msra.mxu0 0.0
        %2271 = vmatprep.subr.mxu0 0.0
        %2272 = vmatpush1.xpose.msra.mxu0 0.0
        %2273 = vmatprep.subr.mxu0 0.0
        %2274 = vmatpush1.xpose.msra.mxu0 0.0
        %2275 = vmatprep.subr.mxu0 0.0
        %2276 = vmatpush1.xpose.msra.mxu0 0.0
        %2277 = vmatprep.subr.mxu0 0.0
        %2278 = vmatpush1.xpose.msra.mxu0 0.0
        %2279 = vmatprep.subr.mxu0 0.0
        %2280 = vmatpush1.xpose.msra.mxu0 0.0
        %2281 = vmatprep.subr.mxu0 0.0
        %2282 = vmatpush1.xpose.msra.mxu0 0.0
        %2283 = vmatprep.subr.mxu0 0.0
        %2284 = vmatpush1.xpose.msra.mxu0 0.0
        %2285 = vmatprep.subr.mxu0 0.0
        %2286 = vmatpush1.xpose.msra.mxu0 0.0
        %2287 = vmatprep.subr.mxu0 0.0
        %2288 = vmatpush1.xpose.msra.mxu0 0.0
        %2289 = vmatprep.subr.mxu0 0.0
        %2290 = vmatpush1.xpose.msra.mxu0 %v2259
        %2291 = vmatprep.subr.mxu0 0.0
        %2292 = vmatpush1.xpose.msra.mxu0 %v2257
        %2293 = vmatprep.subr.mxu0 0.0
        %2294 = vmatpush2.xpose.msra.mxu0 0.0
        %2295 = vmatprep.subr.mxu0 0.0
        %2296 = vmatpush2.xpose.msra.mxu0 0.0
        %2297 = vmatprep.subr.mxu0 0.0
        %2298 = vmatpush2.xpose.msra.mxu0 0.0
        %2299 = vmatprep.subr.mxu0 0.0
        %2300 = vmatpush2.xpose.msra.mxu0 0.0
        %2301 = vmatprep.subr.mxu0 0.0
        %2302 = vmatpush2.xpose.msra.mxu0 0.0
        %2303 = vmatprep.subr.mxu0 0.0
        %2304 = vmatpush2.xpose.msra.mxu0 0.0
        %2305 = vmatprep.subr.mxu0 0.0
        %2306 = vmatpush2.xpose.msra.mxu0 0.0
        %2307 = vmatprep.subr.mxu0 0.0
        %2308 = vmatpush2.xpose.msra.mxu0 0.0
        %2309 = vmatprep.subr.mxu0 0.0
        %2310 = vmatpush2.xpose.msra.mxu0 0.0
        %2311 = vmatprep.subr.mxu0 0.0
        %2312 = vmatpush2.xpose.msra.mxu0 0.0
        %2313 = vmatprep.subr.mxu0 0.0
        %2314 = vmatpush2.xpose.msra.mxu0 0.0
        %2315 = vmatprep.subr.mxu0 0.0
        %2316 = vmatpush2.xpose.msra.mxu0 0.0
        %2317 = vmatprep.subr.mxu0 0.0
        %2318 = vmatpush2.xpose.msra.mxu0 0.0
        %2319 = vmatprep.subr.mxu0 0.0
        %2320 = vmatpush2.xpose.msra.mxu0 0.0
        %2321 = vmatprep.subr.mxu0 0.0
        %2322 = vmatpush2.xpose.msra.mxu0 0.0
        %2323 = vmatprep.subr.mxu0 0.0
        %2324 = vmatpush2.xpose.msra.mxu0 0.0
        %2325 = vmatprep.mubr.f32.mxu0 0.0
        %2326 = vmatmul.mubr.f32.gmra.mxu0 %v2253
        %v2327 = vpop.f32.mrf.mxu0
        %v2328 = vadd.f32 0.0, %v2327
        %v2329 = vpop.f32.mrf.mxu0
        %2330 = vmatprep.mubr.f32.mxu0 0.0
        %2331 = vmatmul.mubr.f32.gmra.mxu0 %v2255
        %v2332 = vpop.f32.mrf.mxu0
        %v2333 = vadd.f32 0.0, %v2332
        %v2334 = vpop.f32.mrf.mxu0
        %2335 = vdwg.mxu0
        %v2336 = vmul.f32 %v2328, 0.35355338
        %v2337 = vmul.f32 %v2333, 0.35355338
        %v2338 = vsel %vm1006, %v2336, -inf
        %2339 = vmax.xlane.f32.xlu0 %v2338
        %v2340 = vpop.xlane.xlu0 %2339
        %v2341 = vsel %vm1010, %v2337, -inf
        %2342 = vmax.xlane.f32.xlu0 %v2341
        %v2343 = vpop.xlane.xlu0 %2342
        %v2344 = vsub.f32 %v2336, %v2340
        %v2345 = vsub.f32 %v2337, %v2343
        %v2346 = vmul.f32 %v2344, 1.442695
        %v2347 = vpow.pop %v2346
        %v2348 = vmul.f32 %v2345, 1.442695
        %v2349 = vpow.pop %v2348
        %v2350 = vsel %vm1006, %v2347, 0.0
        %2351 = vadd.xlane.f32.xlu0 %v2350
        %v2352 = vpop.xlane.xlu0 %2351
        %v2353 = vsel %vm1010, %v2349, 0.0
        %2354 = vadd.xlane.f32.xlu0 %v2353
        %v2355 = vpop.xlane.xlu0 %2354
        %v2356 = vrcp.pop %v2352
        %v2357 = vrcp.pop %v2355
        %v2358 = vmul.f32 %v2347, %v2356
        %v2359 = vmul.f32 %v2349, %v2357
        %2360 = vrot.lane.b32.xlu0 %v2239, 64
        %v2361 = vpop.permute.xlu0 %2360
        %2362 = vrot.lane.b32.xlu0 %v2244, 64
        %v2363 = vpop.permute.xlu0 %2362
        %v2366 = vsel %vm1006, %v2358, 0
        %v2369 = vsel %vm1006, %v2359, 0
        %v2371 = vsel %vm1041, %v2363, 0
        %2373 = vmatprep.subr.mxu0 0.0
        %2374 = vmatpush1.msra.mxu0 0.0
        %2375 = vmatprep.subr.mxu0 0.0
        %2376 = vmatpush1.msra.mxu0 0.0
        %2377 = vmatprep.subr.mxu0 0.0
        %2378 = vmatpush1.msra.mxu0 0.0
        %2379 = vmatprep.subr.mxu0 0.0
        %2380 = vmatpush1.msra.mxu0 0.0
        %2381 = vmatprep.subr.mxu0 0.0
        %2382 = vmatpush1.msra.mxu0 0.0
        %2383 = vmatprep.subr.mxu0 0.0
        %2384 = vmatpush1.msra.mxu0 0.0
        %2385 = vmatprep.subr.mxu0 0.0
        %2386 = vmatpush1.msra.mxu0 0.0
        %2387 = vmatprep.subr.mxu0 0.0
        %2388 = vmatpush1.msra.mxu0 0.0
        %2389 = vmatprep.subr.mxu0 0.0
        %2390 = vmatpush1.msra.mxu0 0.0
        %2391 = vmatprep.subr.mxu0 0.0
        %2392 = vmatpush1.msra.mxu0 0.0
        %2393 = vmatprep.subr.mxu0 0.0
        %2394 = vmatpush1.msra.mxu0 0.0
        %2395 = vmatprep.subr.mxu0 0.0
        %2396 = vmatpush1.msra.mxu0 0.0
        %2397 = vmatprep.subr.mxu0 0.0
        %2398 = vmatpush1.msra.mxu0 0.0
        %2399 = vmatprep.subr.mxu0 0.0
        %2400 = vmatpush1.msra.mxu0 0.0
        %2401 = vmatprep.subr.mxu0 0.0
        %2402 = vmatpush1.msra.mxu0 %v2371
        %2403 = vmatprep.subr.mxu0 0.0
        %2404 = vmatpush1.msra.mxu0 %v2361
        %2405 = vmatprep.subr.mxu0 0.0
        %2406 = vmatpush2.msra.mxu0 0.0
        %2407 = vmatprep.subr.mxu0 0.0
        %2408 = vmatpush2.msra.mxu0 0.0
        %2409 = vmatprep.subr.mxu0 0.0
        %2410 = vmatpush2.msra.mxu0 0.0
        %2411 = vmatprep.subr.mxu0 0.0
        %2412 = vmatpush2.msra.mxu0 0.0
        %2413 = vmatprep.subr.mxu0 0.0
        %2414 = vmatpush2.msra.mxu0 0.0
        %2415 = vmatprep.subr.mxu0 0.0
        %2416 = vmatpush2.msra.mxu0 0.0
        %2417 = vmatprep.subr.mxu0 0.0
        %2418 = vmatpush2.msra.mxu0 0.0
        %2419 = vmatprep.subr.mxu0 0.0
        %2420 = vmatpush2.msra.mxu0 0.0
        %2421 = vmatprep.subr.mxu0 0.0
        %2422 = vmatpush2.msra.mxu0 0.0
        %2423 = vmatprep.subr.mxu0 0.0
        %2424 = vmatpush2.msra.mxu0 0.0
        %2425 = vmatprep.subr.mxu0 0.0
        %2426 = vmatpush2.msra.mxu0 0.0
        %2427 = vmatprep.subr.mxu0 0.0
        %2428 = vmatpush2.msra.mxu0 0.0
        %2429 = vmatprep.subr.mxu0 0.0
        %2430 = vmatpush2.msra.mxu0 0.0
        %2431 = vmatprep.subr.mxu0 0.0
        %2432 = vmatpush2.msra.mxu0 0.0
        %2433 = vmatprep.subr.mxu0 0.0
        %2434 = vmatpush2.msra.mxu0 0.0
        %2435 = vmatprep.subr.mxu0 0.0
        %2436 = vmatpush2.msra.mxu0 0.0
        %2437 = vmatprep.mubr.f32.mxu0 0.0
        %2438 = vmatmul.mubr.f32.gmra.mxu0 %v2366
        %v2439 = vpop.f32.mrf.mxu0
        %v2440 = vadd.f32 0.0, %v2439
        %v2441 = vpop.f32.mrf.mxu0
        %2442 = vmatprep.mubr.f32.mxu0 0.0
        %2443 = vmatmul.mubr.f32.gmra.mxu0 %v2369
        %v2444 = vpop.f32.mrf.mxu0
        %v2445 = vadd.f32 0.0, %v2444
        %v2446 = vpop.f32.mrf.mxu0
        %2447 = vdwg.mxu0
        %2448 = vrot.lane.b32.xlu0 %v2239, 120
        %v2449 = vpop.permute.xlu0 %2448
        %2450 = vrot.lane.b32.xlu0 %v2244, 120
        %v2451 = vpop.permute.xlu0 %2450
        %2452 = vrot.lane.b32.xlu0 %v2239, 88
        %v2453 = vpop.permute.xlu0 %2452
        %2454 = vrot.lane.b32.xlu0 %v2244, 88
        %v2455 = vpop.permute.xlu0 %2454
        %v2456 = vsel %vm920, %v2449, 0
        %v2458 = vsel %vm920, %v2451, 0
        %v2460 = vsel %vm920, %v2453, 0
        %v2462 = vsel %vm920, %v2455, 0
        %2464 = vmatprep.subr.mxu0 0.0
        %2465 = vmatpush1.xpose.msra.mxu0 0.0
        %2466 = vmatprep.subr.mxu0 0.0
        %2467 = vmatpush1.xpose.msra.mxu0 0.0
        %2468 = vmatprep.subr.mxu0 0.0
        %2469 = vmatpush1.xpose.msra.mxu0 0.0
        %2470 = vmatprep.subr.mxu0 0.0
        %2471 = vmatpush1.xpose.msra.mxu0 0.0
        %2472 = vmatprep.subr.mxu0 0.0
        %2473 = vmatpush1.xpose.msra.mxu0 0.0
        %2474 = vmatprep.subr.mxu0 0.0
        %2475 = vmatpush1.xpose.msra.mxu0 0.0
        %2476 = vmatprep.subr.mxu0 0.0
        %2477 = vmatpush1.xpose.msra.mxu0 0.0
        %2478 = vmatprep.subr.mxu0 0.0
        %2479 = vmatpush1.xpose.msra.mxu0 0.0
        %2480 = vmatprep.subr.mxu0 0.0
        %2481 = vmatpush1.xpose.msra.mxu0 0.0
        %2482 = vmatprep.subr.mxu0 0.0
        %2483 = vmatpush1.xpose.msra.mxu0 0.0
        %2484 = vmatprep.subr.mxu0 0.0
        %2485 = vmatpush1.xpose.msra.mxu0 0.0
        %2486 = vmatprep.subr.mxu0 0.0
        %2487 = vmatpush1.xpose.msra.mxu0 0.0
        %2488 = vmatprep.subr.mxu0 0.0
        %2489 = vmatpush1.xpose.msra.mxu0 0.0
        %2490 = vmatprep.subr.mxu0 0.0
        %2491 = vmatpush1.xpose.msra.mxu0 0.0
        %2492 = vmatprep.subr.mxu0 0.0
        %2493 = vmatpush1.xpose.msra.mxu0 %v2462
        %2494 = vmatprep.subr.mxu0 0.0
        %2495 = vmatpush1.xpose.msra.mxu0 %v2460
        %2496 = vmatprep.subr.mxu0 0.0
        %2497 = vmatpush2.xpose.msra.mxu0 0.0
        %2498 = vmatprep.subr.mxu0 0.0
        %2499 = vmatpush2.xpose.msra.mxu0 0.0
        %2500 = vmatprep.subr.mxu0 0.0
        %2501 = vmatpush2.xpose.msra.mxu0 0.0
        %2502 = vmatprep.subr.mxu0 0.0
        %2503 = vmatpush2.xpose.msra.mxu0 0.0
        %2504 = vmatprep.subr.mxu0 0.0
        %2505 = vmatpush2.xpose.msra.mxu0 0.0
        %2506 = vmatprep.subr.mxu0 0.0
        %2507 = vmatpush2.xpose.msra.mxu0 0.0
        %2508 = vmatprep.subr.mxu0 0.0
        %2509 = vmatpush2.xpose.msra.mxu0 0.0
        %2510 = vmatprep.subr.mxu0 0.0
        %2511 = vmatpush2.xpose.msra.mxu0 0.0
        %2512 = vmatprep.subr.mxu0 0.0
        %2513 = vmatpush2.xpose.msra.mxu0 0.0
        %2514 = vmatprep.subr.mxu0 0.0
        %2515 = vmatpush2.xpose.msra.mxu0 0.0
        %2516 = vmatprep.subr.mxu0 0.0
        %2517 = vmatpush2.xpose.msra.mxu0 0.0
        %2518 = vmatprep.subr.mxu0 0.0
        %2519 = vmatpush2.xpose.msra.mxu0 0.0
        %2520 = vmatprep.subr.mxu0 0.0
        %2521 = vmatpush2.xpose.msra.mxu0 0.0
        %2522 = vmatprep.subr.mxu0 0.0
        %2523 = vmatpush2.xpose.msra.mxu0 0.0
        %2524 = vmatprep.subr.mxu0 0.0
        %2525 = vmatpush2.xpose.msra.mxu0 0.0
        %2526 = vmatprep.subr.mxu0 0.0
        %2527 = vmatpush2.xpose.msra.mxu0 0.0
        %2528 = vmatprep.mubr.f32.mxu0 0.0
        %2529 = vmatmul.mubr.f32.gmra.mxu0 %v2456
        %v2530 = vpop.f32.mrf.mxu0
        %v2531 = vadd.f32 0.0, %v2530
        %v2532 = vpop.f32.mrf.mxu0
        %2533 = vmatprep.mubr.f32.mxu0 0.0
        %2534 = vmatmul.mubr.f32.gmra.mxu0 %v2458
        %v2535 = vpop.f32.mrf.mxu0
        %v2536 = vadd.f32 0.0, %v2535
        %v2537 = vpop.f32.mrf.mxu0
        %2538 = vdwg.mxu0
        %v2539 = vmul.f32 %v2531, 0.35355338
        %v2540 = vmul.f32 %v2536, 0.35355338
        %v2541 = vsel %vm1006, %v2539, -inf
        %2542 = vmax.xlane.f32.xlu0 %v2541
        %v2543 = vpop.xlane.xlu0 %2542
        %v2544 = vsel %vm1010, %v2540, -inf
        %2545 = vmax.xlane.f32.xlu0 %v2544
        %v2546 = vpop.xlane.xlu0 %2545
        %v2547 = vsub.f32 %v2539, %v2543
        %v2548 = vsub.f32 %v2540, %v2546
        %v2549 = vmul.f32 %v2547, 1.442695
        %v2550 = vpow.pop %v2549
        %v2551 = vmul.f32 %v2548, 1.442695
        %v2552 = vpow.pop %v2551
        %v2553 = vsel %vm1006, %v2550, 0.0
        %2554 = vadd.xlane.f32.xlu0 %v2553
        %v2555 = vpop.xlane.xlu0 %2554
        %v2556 = vsel %vm1010, %v2552, 0.0
        %2557 = vadd.xlane.f32.xlu0 %v2556
        %v2558 = vpop.xlane.xlu0 %2557
        %v2559 = vrcp.pop %v2555
        %v2560 = vrcp.pop %v2558
        %v2561 = vmul.f32 %v2550, %v2559
        %v2562 = vmul.f32 %v2552, %v2560
        %2563 = vrot.lane.b32.xlu0 %v2239, 56
        %v2564 = vpop.permute.xlu0 %2563
        %2565 = vrot.lane.b32.xlu0 %v2244, 56
        %v2566 = vpop.permute.xlu0 %2565
        %v2569 = vsel %vm1006, %v2561, 0
        %v2572 = vsel %vm1006, %v2562, 0
        %v2574 = vsel %vm1041, %v2566, 0
        %2576 = vmatprep.subr.mxu0 0.0
        %2577 = vmatpush1.msra.mxu0 0.0
        %2578 = vmatprep.subr.mxu0 0.0
        %2579 = vmatpush1.msra.mxu0 0.0
        %2580 = vmatprep.subr.mxu0 0.0
        %2581 = vmatpush1.msra.mxu0 0.0
        %2582 = vmatprep.subr.mxu0 0.0
        %2583 = vmatpush1.msra.mxu0 0.0
        %2584 = vmatprep.subr.mxu0 0.0
        %2585 = vmatpush1.msra.mxu0 0.0
        %2586 = vmatprep.subr.mxu0 0.0
        %2587 = vmatpush1.msra.mxu0 0.0
        %2588 = vmatprep.subr.mxu0 0.0
        %2589 = vmatpush1.msra.mxu0 0.0
        %2590 = vmatprep.subr.mxu0 0.0
        %2591 = vmatpush1.msra.mxu0 0.0
        %2592 = vmatprep.subr.mxu0 0.0
        %2593 = vmatpush1.msra.mxu0 0.0
        %2594 = vmatprep.subr.mxu0 0.0
        %2595 = vmatpush1.msra.mxu0 0.0
        %2596 = vmatprep.subr.mxu0 0.0
        %2597 = vmatpush1.msra.mxu0 0.0
        %2598 = vmatprep.subr.mxu0 0.0
        %2599 = vmatpush1.msra.mxu0 0.0
        %2600 = vmatprep.subr.mxu0 0.0
        %2601 = vmatpush1.msra.mxu0 0.0
        %2602 = vmatprep.subr.mxu0 0.0
        %2603 = vmatpush1.msra.mxu0 0.0
        %2604 = vmatprep.subr.mxu0 0.0
        %2605 = vmatpush1.msra.mxu0 %v2574
        %2606 = vmatprep.subr.mxu0 0.0
        %2607 = vmatpush1.msra.mxu0 %v2564
        %2608 = vmatprep.subr.mxu0 0.0
        %2609 = vmatpush2.msra.mxu0 0.0
        %2610 = vmatprep.subr.mxu0 0.0
        %2611 = vmatpush2.msra.mxu0 0.0
        %2612 = vmatprep.subr.mxu0 0.0
        %2613 = vmatpush2.msra.mxu0 0.0
        %2614 = vmatprep.subr.mxu0 0.0
        %2615 = vmatpush2.msra.mxu0 0.0
        %2616 = vmatprep.subr.mxu0 0.0
        %2617 = vmatpush2.msra.mxu0 0.0
        %2618 = vmatprep.subr.mxu0 0.0
        %2619 = vmatpush2.msra.mxu0 0.0
        %2620 = vmatprep.subr.mxu0 0.0
        %2621 = vmatpush2.msra.mxu0 0.0
        %2622 = vmatprep.subr.mxu0 0.0
        %2623 = vmatpush2.msra.mxu0 0.0
        %2624 = vmatprep.subr.mxu0 0.0
        %2625 = vmatpush2.msra.mxu0 0.0
        %2626 = vmatprep.subr.mxu0 0.0
        %2627 = vmatpush2.msra.mxu0 0.0
        %2628 = vmatprep.subr.mxu0 0.0
        %2629 = vmatpush2.msra.mxu0 0.0
        %2630 = vmatprep.subr.mxu0 0.0
        %2631 = vmatpush2.msra.mxu0 0.0
        %2632 = vmatprep.subr.mxu0 0.0
        %2633 = vmatpush2.msra.mxu0 0.0
        %2634 = vmatprep.subr.mxu0 0.0
        %2635 = vmatpush2.msra.mxu0 0.0
        %2636 = vmatprep.subr.mxu0 0.0
        %2637 = vmatpush2.msra.mxu0 0.0
        %2638 = vmatprep.subr.mxu0 0.0
        %2639 = vmatpush2.msra.mxu0 0.0
        %2640 = vmatprep.mubr.f32.mxu0 0.0
        %2641 = vmatmul.mubr.f32.gmra.mxu0 %v2569
        %v2642 = vpop.f32.mrf.mxu0
        %v2643 = vadd.f32 0.0, %v2642
        %v2644 = vpop.f32.mrf.mxu0
        %2645 = vmatprep.mubr.f32.mxu0 0.0
        %2646 = vmatmul.mubr.f32.gmra.mxu0 %v2572
        %v2647 = vpop.f32.mrf.mxu0
        %v2648 = vadd.f32 0.0, %v2647
        %v2649 = vpop.f32.mrf.mxu0
        %2650 = vdwg.mxu0
        %2651 = vrot.lane.b32.xlu0 %v2239, 112
        %v2652 = vpop.permute.xlu0 %2651
        %2653 = vrot.lane.b32.xlu0 %v2244, 112
        %v2654 = vpop.permute.xlu0 %2653
        %2655 = vrot.lane.b32.xlu0 %v2239, 80
        %v2656 = vpop.permute.xlu0 %2655
        %2657 = vrot.lane.b32.xlu0 %v2244, 80
        %v2658 = vpop.permute.xlu0 %2657
        %v2659 = vsel %vm920, %v2652, 0
        %v2661 = vsel %vm920, %v2654, 0
        %v2663 = vsel %vm920, %v2656, 0
        %v2665 = vsel %vm920, %v2658, 0
        %2667 = vmatprep.subr.mxu0 0.0
        %2668 = vmatpush1.xpose.msra.mxu0 0.0
        %2669 = vmatprep.subr.mxu0 0.0
        %2670 = vmatpush1.xpose.msra.mxu0 0.0
        %2671 = vmatprep.subr.mxu0 0.0
        %2672 = vmatpush1.xpose.msra.mxu0 0.0
        %2673 = vmatprep.subr.mxu0 0.0
        %2674 = vmatpush1.xpose.msra.mxu0 0.0
        %2675 = vmatprep.subr.mxu0 0.0
        %2676 = vmatpush1.xpose.msra.mxu0 0.0
        %2677 = vmatprep.subr.mxu0 0.0
        %2678 = vmatpush1.xpose.msra.mxu0 0.0
        %2679 = vmatprep.subr.mxu0 0.0
        %2680 = vmatpush1.xpose.msra.mxu0 0.0
        %2681 = vmatprep.subr.mxu0 0.0
        %2682 = vmatpush1.xpose.msra.mxu0 0.0
        %2683 = vmatprep.subr.mxu0 0.0
        %2684 = vmatpush1.xpose.msra.mxu0 0.0
        %2685 = vmatprep.subr.mxu0 0.0
        %2686 = vmatpush1.xpose.msra.mxu0 0.0
        %2687 = vmatprep.subr.mxu0 0.0
        %2688 = vmatpush1.xpose.msra.mxu0 0.0
        %2689 = vmatprep.subr.mxu0 0.0
        %2690 = vmatpush1.xpose.msra.mxu0 0.0
        %2691 = vmatprep.subr.mxu0 0.0
        %2692 = vmatpush1.xpose.msra.mxu0 0.0
        %2693 = vmatprep.subr.mxu0 0.0
        %2694 = vmatpush1.xpose.msra.mxu0 0.0
        %2695 = vmatprep.subr.mxu0 0.0
        %2696 = vmatpush1.xpose.msra.mxu0 %v2665
        %2697 = vmatprep.subr.mxu0 0.0
        %2698 = vmatpush1.xpose.msra.mxu0 %v2663
        %2699 = vmatprep.subr.mxu0 0.0
        %2700 = vmatpush2.xpose.msra.mxu0 0.0
        %2701 = vmatprep.subr.mxu0 0.0
        %2702 = vmatpush2.xpose.msra.mxu0 0.0
        %2703 = vmatprep.subr.mxu0 0.0
        %2704 = vmatpush2.xpose.msra.mxu0 0.0
        %2705 = vmatprep.subr.mxu0 0.0
        %2706 = vmatpush2.xpose.msra.mxu0 0.0
        %2707 = vmatprep.subr.mxu0 0.0
        %2708 = vmatpush2.xpose.msra.mxu0 0.0
        %2709 = vmatprep.subr.mxu0 0.0
        %2710 = vmatpush2.xpose.msra.mxu0 0.0
        %2711 = vmatprep.subr.mxu0 0.0
        %2712 = vmatpush2.xpose.msra.mxu0 0.0
        %2713 = vmatprep.subr.mxu0 0.0
        %2714 = vmatpush2.xpose.msra.mxu0 0.0
        %2715 = vmatprep.subr.mxu0 0.0
        %2716 = vmatpush2.xpose.msra.mxu0 0.0
        %2717 = vmatprep.subr.mxu0 0.0
        %2718 = vmatpush2.xpose.msra.mxu0 0.0
        %2719 = vmatprep.subr.mxu0 0.0
        %2720 = vmatpush2.xpose.msra.mxu0 0.0
        %2721 = vmatprep.subr.mxu0 0.0
        %2722 = vmatpush2.xpose.msra.mxu0 0.0
        %2723 = vmatprep.subr.mxu0 0.0
        %2724 = vmatpush2.xpose.msra.mxu0 0.0
        %2725 = vmatprep.subr.mxu0 0.0
        %2726 = vmatpush2.xpose.msra.mxu0 0.0
        %2727 = vmatprep.subr.mxu0 0.0
        %2728 = vmatpush2.xpose.msra.mxu0 0.0
        %2729 = vmatprep.subr.mxu0 0.0
        %2730 = vmatpush2.xpose.msra.mxu0 0.0
        %2731 = vmatprep.mubr.f32.mxu0 0.0
        %2732 = vmatmul.mubr.f32.gmra.mxu0 %v2659
        %v2733 = vpop.f32.mrf.mxu0
        %v2734 = vadd.f32 0.0, %v2733
        %v2735 = vpop.f32.mrf.mxu0
        %2736 = vmatprep.mubr.f32.mxu0 0.0
        %2737 = vmatmul.mubr.f32.gmra.mxu0 %v2661
        %v2738 = vpop.f32.mrf.mxu0
        %v2739 = vadd.f32 0.0, %v2738
        %v2740 = vpop.f32.mrf.mxu0
        %2741 = vdwg.mxu0
        %v2742 = vmul.f32 %v2734, 0.35355338
        %v2743 = vmul.f32 %v2739, 0.35355338
        %v2744 = vsel %vm1006, %v2742, -inf
        %2745 = vmax.xlane.f32.xlu0 %v2744
        %v2746 = vpop.xlane.xlu0 %2745
        %v2747 = vsel %vm1010, %v2743, -inf
        %2748 = vmax.xlane.f32.xlu0 %v2747
        %v2749 = vpop.xlane.xlu0 %2748
        %v2750 = vsub.f32 %v2742, %v2746
        %v2751 = vsub.f32 %v2743, %v2749
        %v2752 = vmul.f32 %v2750, 1.442695
        %v2753 = vpow.pop %v2752
        %v2754 = vmul.f32 %v2751, 1.442695
        %v2755 = vpow.pop %v2754
        %v2756 = vsel %vm1006, %v2753, 0.0
        %2757 = vadd.xlane.f32.xlu0 %v2756
        %v2758 = vpop.xlane.xlu0 %2757
        %v2759 = vsel %vm1010, %v2755, 0.0
        %2760 = vadd.xlane.f32.xlu0 %v2759
        %v2761 = vpop.xlane.xlu0 %2760
        %v2762 = vrcp.pop %v2758
        %v2763 = vrcp.pop %v2761
        %v2764 = vmul.f32 %v2753, %v2762
        %v2765 = vmul.f32 %v2755, %v2763
        %2766 = vrot.lane.b32.xlu0 %v2239, 48
        %v2767 = vpop.permute.xlu0 %2766
        %2768 = vrot.lane.b32.xlu0 %v2244, 48
        %v2769 = vpop.permute.xlu0 %2768
        %v2772 = vsel %vm1006, %v2764, 0
        %v2775 = vsel %vm1006, %v2765, 0
        %v2777 = vsel %vm1041, %v2769, 0
        %2779 = vmatprep.subr.mxu0 0.0
        %2780 = vmatpush1.msra.mxu0 0.0
        %2781 = vmatprep.subr.mxu0 0.0
        %2782 = vmatpush1.msra.mxu0 0.0
        %2783 = vmatprep.subr.mxu0 0.0
        %2784 = vmatpush1.msra.mxu0 0.0
        %2785 = vmatprep.subr.mxu0 0.0
        %2786 = vmatpush1.msra.mxu0 0.0
        %2787 = vmatprep.subr.mxu0 0.0
        %2788 = vmatpush1.msra.mxu0 0.0
        %2789 = vmatprep.subr.mxu0 0.0
        %2790 = vmatpush1.msra.mxu0 0.0
        %2791 = vmatprep.subr.mxu0 0.0
        %2792 = vmatpush1.msra.mxu0 0.0
        %2793 = vmatprep.subr.mxu0 0.0
        %2794 = vmatpush1.msra.mxu0 0.0
        %2795 = vmatprep.subr.mxu0 0.0
        %2796 = vmatpush1.msra.mxu0 0.0
        %2797 = vmatprep.subr.mxu0 0.0
        %2798 = vmatpush1.msra.mxu0 0.0
        %2799 = vmatprep.subr.mxu0 0.0
        %2800 = vmatpush1.msra.mxu0 0.0
        %2801 = vmatprep.subr.mxu0 0.0
        %2802 = vmatpush1.msra.mxu0 0.0
        %2803 = vmatprep.subr.mxu0 0.0
        %2804 = vmatpush1.msra.mxu0 0.0
        %2805 = vmatprep.subr.mxu0 0.0
        %2806 = vmatpush1.msra.mxu0 0.0
        %2807 = vmatprep.subr.mxu0 0.0
        %2808 = vmatpush1.msra.mxu0 %v2777
        %2809 = vmatprep.subr.mxu0 0.0
        %2810 = vmatpush1.msra.mxu0 %v2767
        %2811 = vmatprep.subr.mxu0 0.0
        %2812 = vmatpush2.msra.mxu0 0.0
        %2813 = vmatprep.subr.mxu0 0.0
        %2814 = vmatpush2.msra.mxu0 0.0
        %2815 = vmatprep.subr.mxu0 0.0
        %2816 = vmatpush2.msra.mxu0 0.0
        %2817 = vmatprep.subr.mxu0 0.0
        %2818 = vmatpush2.msra.mxu0 0.0
        %2819 = vmatprep.subr.mxu0 0.0
        %2820 = vmatpush2.msra.mxu0 0.0
        %2821 = vmatprep.subr.mxu0 0.0
        %2822 = vmatpush2.msra.mxu0 0.0
        %2823 = vmatprep.subr.mxu0 0.0
        %2824 = vmatpush2.msra.mxu0 0.0
        %2825 = vmatprep.subr.mxu0 0.0
        %2826 = vmatpush2.msra.mxu0 0.0
        %2827 = vmatprep.subr.mxu0 0.0
        %2828 = vmatpush2.msra.mxu0 0.0
        %2829 = vmatprep.subr.mxu0 0.0
        %2830 = vmatpush2.msra.mxu0 0.0
        %2831 = vmatprep.subr.mxu0 0.0
        %2832 = vmatpush2.msra.mxu0 0.0
        %2833 = vmatprep.subr.mxu0 0.0
        %2834 = vmatpush2.msra.mxu0 0.0
        %2835 = vmatprep.subr.mxu0 0.0
        %2836 = vmatpush2.msra.mxu0 0.0
        %2837 = vmatprep.subr.mxu0 0.0
        %2838 = vmatpush2.msra.mxu0 0.0
        %2839 = vmatprep.subr.mxu0 0.0
        %2840 = vmatpush2.msra.mxu0 0.0
        %2841 = vmatprep.subr.mxu0 0.0
        %2842 = vmatpush2.msra.mxu0 0.0
        %2843 = vmatprep.mubr.f32.mxu0 0.0
        %2844 = vmatmul.mubr.f32.gmra.mxu0 %v2772
        %v2845 = vpop.f32.mrf.mxu0
        %v2846 = vadd.f32 0.0, %v2845
        %v2847 = vpop.f32.mrf.mxu0
        %2848 = vmatprep.mubr.f32.mxu0 0.0
        %2849 = vmatmul.mubr.f32.gmra.mxu0 %v2775
        %v2850 = vpop.f32.mrf.mxu0
        %v2851 = vadd.f32 0.0, %v2850
        %v2852 = vpop.f32.mrf.mxu0
        %2853 = vdwg.mxu0
        %2854 = vrot.lane.b32.xlu0 %v2239, 104
        %v2855 = vpop.permute.xlu0 %2854
        %2856 = vrot.lane.b32.xlu0 %v2244, 104
        %v2857 = vpop.permute.xlu0 %2856
        %2858 = vrot.lane.b32.xlu0 %v2239, 72
        %v2859 = vpop.permute.xlu0 %2858
        %2860 = vrot.lane.b32.xlu0 %v2244, 72
        %v2861 = vpop.permute.xlu0 %2860
        %v2862 = vsel %vm920, %v2855, 0
        %v2864 = vsel %vm920, %v2857, 0
        %v2866 = vsel %vm920, %v2859, 0
        %v2868 = vsel %vm920, %v2861, 0
        %2870 = vmatprep.subr.mxu0 0.0
        %2871 = vmatpush1.xpose.msra.mxu0 0.0
        %2872 = vmatprep.subr.mxu0 0.0
        %2873 = vmatpush1.xpose.msra.mxu0 0.0
        %2874 = vmatprep.subr.mxu0 0.0
        %2875 = vmatpush1.xpose.msra.mxu0 0.0
        %2876 = vmatprep.subr.mxu0 0.0
        %2877 = vmatpush1.xpose.msra.mxu0 0.0
        %2878 = vmatprep.subr.mxu0 0.0
        %2879 = vmatpush1.xpose.msra.mxu0 0.0
        %2880 = vmatprep.subr.mxu0 0.0
        %2881 = vmatpush1.xpose.msra.mxu0 0.0
        %2882 = vmatprep.subr.mxu0 0.0
        %2883 = vmatpush1.xpose.msra.mxu0 0.0
        %2884 = vmatprep.subr.mxu0 0.0
        %2885 = vmatpush1.xpose.msra.mxu0 0.0
        %2886 = vmatprep.subr.mxu0 0.0
        %2887 = vmatpush1.xpose.msra.mxu0 0.0
        %2888 = vmatprep.subr.mxu0 0.0
        %2889 = vmatpush1.xpose.msra.mxu0 0.0
        %2890 = vmatprep.subr.mxu0 0.0
        %2891 = vmatpush1.xpose.msra.mxu0 0.0
        %2892 = vmatprep.subr.mxu0 0.0
        %2893 = vmatpush1.xpose.msra.mxu0 0.0
        %2894 = vmatprep.subr.mxu0 0.0
        %2895 = vmatpush1.xpose.msra.mxu0 0.0
        %2896 = vmatprep.subr.mxu0 0.0
        %2897 = vmatpush1.xpose.msra.mxu0 0.0
        %2898 = vmatprep.subr.mxu0 0.0
        %2899 = vmatpush1.xpose.msra.mxu0 %v2868
        %2900 = vmatprep.subr.mxu0 0.0
        %2901 = vmatpush1.xpose.msra.mxu0 %v2866
        %2902 = vmatprep.subr.mxu0 0.0
        %2903 = vmatpush2.xpose.msra.mxu0 0.0
        %2904 = vmatprep.subr.mxu0 0.0
        %2905 = vmatpush2.xpose.msra.mxu0 0.0
        %2906 = vmatprep.subr.mxu0 0.0
        %2907 = vmatpush2.xpose.msra.mxu0 0.0
        %2908 = vmatprep.subr.mxu0 0.0
        %2909 = vmatpush2.xpose.msra.mxu0 0.0
        %2910 = vmatprep.subr.mxu0 0.0
        %2911 = vmatpush2.xpose.msra.mxu0 0.0
        %2912 = vmatprep.subr.mxu0 0.0
        %2913 = vmatpush2.xpose.msra.mxu0 0.0
        %2914 = vmatprep.subr.mxu0 0.0
        %2915 = vmatpush2.xpose.msra.mxu0 0.0
        %2916 = vmatprep.subr.mxu0 0.0
        %2917 = vmatpush2.xpose.msra.mxu0 0.0
        %2918 = vmatprep.subr.mxu0 0.0
        %2919 = vmatpush2.xpose.msra.mxu0 0.0
        %2920 = vmatprep.subr.mxu0 0.0
        %2921 = vmatpush2.xpose.msra.mxu0 0.0
        %2922 = vmatprep.subr.mxu0 0.0
        %2923 = vmatpush2.xpose.msra.mxu0 0.0
        %2924 = vmatprep.subr.mxu0 0.0
        %2925 = vmatpush2.xpose.msra.mxu0 0.0
        %2926 = vmatprep.subr.mxu0 0.0
        %2927 = vmatpush2.xpose.msra.mxu0 0.0
        %2928 = vmatprep.subr.mxu0 0.0
        %2929 = vmatpush2.xpose.msra.mxu0 0.0
        %2930 = vmatprep.subr.mxu0 0.0
        %2931 = vmatpush2.xpose.msra.mxu0 0.0
        %2932 = vmatprep.subr.mxu0 0.0
        %2933 = vmatpush2.xpose.msra.mxu0 0.0
        %2934 = vmatprep.mubr.f32.mxu0 0.0
        %2935 = vmatmul.mubr.f32.gmra.mxu0 %v2862
        %v2936 = vpop.f32.mrf.mxu0
        %v2937 = vadd.f32 0.0, %v2936
        %v2938 = vpop.f32.mrf.mxu0
        %2939 = vmatprep.mubr.f32.mxu0 0.0
        %2940 = vmatmul.mubr.f32.gmra.mxu0 %v2864
        %v2941 = vpop.f32.mrf.mxu0
        %v2942 = vadd.f32 0.0, %v2941
        %v2943 = vpop.f32.mrf.mxu0
        %2944 = vdwg.mxu0
        %v2945 = vmul.f32 %v2937, 0.35355338
        %v2946 = vmul.f32 %v2942, 0.35355338
        %v2947 = vsel %vm1006, %v2945, -inf
        %2948 = vmax.xlane.f32.xlu0 %v2947
        %v2949 = vpop.xlane.xlu0 %2948
        %v2950 = vsel %vm1010, %v2946, -inf
        %2951 = vmax.xlane.f32.xlu0 %v2950
        %v2952 = vpop.xlane.xlu0 %2951
        %v2953 = vsub.f32 %v2945, %v2949
        %v2954 = vsub.f32 %v2946, %v2952
        %v2955 = vmul.f32 %v2953, 1.442695
        %v2956 = vpow.pop %v2955
        %v2957 = vmul.f32 %v2954, 1.442695
        %v2958 = vpow.pop %v2957
        %v2959 = vsel %vm1006, %v2956, 0.0
        %2960 = vadd.xlane.f32.xlu0 %v2959
        %v2961 = vpop.xlane.xlu0 %2960
        %v2962 = vsel %vm1010, %v2958, 0.0
        %2963 = vadd.xlane.f32.xlu0 %v2962
        %v2964 = vpop.xlane.xlu0 %2963
        %v2965 = vrcp.pop %v2961
        %v2966 = vrcp.pop %v2964
        %v2967 = vmul.f32 %v2956, %v2965
        %v2968 = vmul.f32 %v2958, %v2966
        %2969 = vrot.lane.b32.xlu0 %v2239, 40
        %v2970 = vpop.permute.xlu0 %2969
        %2971 = vrot.lane.b32.xlu0 %v2244, 40
        %v2972 = vpop.permute.xlu0 %2971
        %v2975 = vsel %vm1006, %v2967, 0
        %v2978 = vsel %vm1006, %v2968, 0
        %v2980 = vsel %vm1041, %v2972, 0
        %2982 = vmatprep.subr.mxu0 0.0
        %2983 = vmatpush1.msra.mxu0 0.0
        %2984 = vmatprep.subr.mxu0 0.0
        %2985 = vmatpush1.msra.mxu0 0.0
        %2986 = vmatprep.subr.mxu0 0.0
        %2987 = vmatpush1.msra.mxu0 0.0
        %2988 = vmatprep.subr.mxu0 0.0
        %2989 = vmatpush1.msra.mxu0 0.0
        %2990 = vmatprep.subr.mxu0 0.0
        %2991 = vmatpush1.msra.mxu0 0.0
        %2992 = vmatprep.subr.mxu0 0.0
        %2993 = vmatpush1.msra.mxu0 0.0
        %2994 = vmatprep.subr.mxu0 0.0
        %2995 = vmatpush1.msra.mxu0 0.0
        %2996 = vmatprep.subr.mxu0 0.0
        %2997 = vmatpush1.msra.mxu0 0.0
        %2998 = vmatprep.subr.mxu0 0.0
        %2999 = vmatpush1.msra.mxu0 0.0
        %3000 = vmatprep.subr.mxu0 0.0
        %3001 = vmatpush1.msra.mxu0 0.0
        %3002 = vmatprep.subr.mxu0 0.0
        %3003 = vmatpush1.msra.mxu0 0.0
        %3004 = vmatprep.subr.mxu0 0.0
        %3005 = vmatpush1.msra.mxu0 0.0
        %3006 = vmatprep.subr.mxu0 0.0
        %3007 = vmatpush1.msra.mxu0 0.0
        %3008 = vmatprep.subr.mxu0 0.0
        %3009 = vmatpush1.msra.mxu0 0.0
        %3010 = vmatprep.subr.mxu0 0.0
        %3011 = vmatpush1.msra.mxu0 %v2980
        %3012 = vmatprep.subr.mxu0 0.0
        %3013 = vmatpush1.msra.mxu0 %v2970
        %3014 = vmatprep.subr.mxu0 0.0
        %3015 = vmatpush2.msra.mxu0 0.0
        %3016 = vmatprep.subr.mxu0 0.0
        %3017 = vmatpush2.msra.mxu0 0.0
        %3018 = vmatprep.subr.mxu0 0.0
        %3019 = vmatpush2.msra.mxu0 0.0
        %3020 = vmatprep.subr.mxu0 0.0
        %3021 = vmatpush2.msra.mxu0 0.0
        %3022 = vmatprep.subr.mxu0 0.0
        %3023 = vmatpush2.msra.mxu0 0.0
        %3024 = vmatprep.subr.mxu0 0.0
        %3025 = vmatpush2.msra.mxu0 0.0
        %3026 = vmatprep.subr.mxu0 0.0
        %3027 = vmatpush2.msra.mxu0 0.0
        %3028 = vmatprep.subr.mxu0 0.0
        %3029 = vmatpush2.msra.mxu0 0.0
        %3030 = vmatprep.subr.mxu0 0.0
        %3031 = vmatpush2.msra.mxu0 0.0
        %3032 = vmatprep.subr.mxu0 0.0
        %3033 = vmatpush2.msra.mxu0 0.0
        %3034 = vmatprep.subr.mxu0 0.0
        %3035 = vmatpush2.msra.mxu0 0.0
        %3036 = vmatprep.subr.mxu0 0.0
        %3037 = vmatpush2.msra.mxu0 0.0
        %3038 = vmatprep.subr.mxu0 0.0
        %3039 = vmatpush2.msra.mxu0 0.0
        %3040 = vmatprep.subr.mxu0 0.0
        %3041 = vmatpush2.msra.mxu0 0.0
        %3042 = vmatprep.subr.mxu0 0.0
        %3043 = vmatpush2.msra.mxu0 0.0
        %3044 = vmatprep.subr.mxu0 0.0
        %3045 = vmatpush2.msra.mxu0 0.0
        %3046 = vmatprep.mubr.f32.mxu0 0.0
        %3047 = vmatmul.mubr.f32.gmra.mxu0 %v2975
        %v3048 = vpop.f32.mrf.mxu0
        %v3049 = vadd.f32 0.0, %v3048
        %v3050 = vpop.f32.mrf.mxu0
        %3051 = vmatprep.mubr.f32.mxu0 0.0
        %3052 = vmatmul.mubr.f32.gmra.mxu0 %v2978
        %v3053 = vpop.f32.mrf.mxu0
        %v3054 = vadd.f32 0.0, %v3053
        %v3055 = vpop.f32.mrf.mxu0
        %3056 = vdwg.mxu0
        %3059 = vrot.lane.b32.xlu0 %v2643, 8
        %v3060 = vpop.permute.xlu0 %3059
        %3061 = vrot.lane.b32.xlu0 %v2648, 8
        %v3062 = vpop.permute.xlu0 %3061
        %3067 = vrot.lane.b32.xlu0 %v2846, 16
        %v3068 = vpop.permute.xlu0 %3067
        %3069 = vrot.lane.b32.xlu0 %v2851, 16
        %v3070 = vpop.permute.xlu0 %3069
        %3075 = vrot.lane.b32.xlu0 %v3049, 24
        %v3076 = vpop.permute.xlu0 %3075
        %3077 = vrot.lane.b32.xlu0 %v3054, 24
        %v3078 = vpop.permute.xlu0 %3077
        %v3081 = vsel %vm920, %v2440, %v3060
        %v3082 = vsel %vm920, %v2445, %v3062
        %v3083 = vsel %vm1754, %v3081, %v3068
        %v3084 = vsel %vm1754, %v3082, %v3070
        %v3085 = vsel %vm1757, %v3083, %v3076
        %v3086 = vsel %vm1757, %v3084, %v3078
        %s3087 = scalar_lea.vmem %s9, 32
        %v3088 = vld [vmem:[%s3087] sm:$0xff]
        %v3089 = vld [vmem:[%s3087 + $0x8] sm:$0xff]
        %v3090 = vld [vmem:[%s3087 + $0x10] sm:$0xff]
        %v3091 = vld [vmem:[%s3087 + $0x18] sm:$0xff]
        %s3092 = scalar_lea.vmem %s10, 1
        %v3093 = vld [vmem:[%s3092] sm:$0x1]
        %v3095 = vlaneseq
        %v3096 = vshrl.u32 %v3095, 7
        %v3097 = vsub.s32 0, %v3096
        %v3098 = vrot.slane %v3093, %v3097
        %v3101 = vsel %vm777, %v3085, 0
        %v3104 = vsel %vm777, %v3086, 0
        %3106 = vmatprep.subr.mxu0 0.0
        %3107 = vmatpush1.msra.mxu0 0.0
        %3108 = vmatprep.subr.mxu0 0.0
        %3109 = vmatpush1.msra.mxu0 0.0
        %3110 = vmatprep.subr.mxu0 0.0
        %3111 = vmatpush1.msra.mxu0 0.0
        %3112 = vmatprep.subr.mxu0 0.0
        %3113 = vmatpush1.msra.mxu0 0.0
        %3114 = vmatprep.subr.mxu0 0.0
        %3115 = vmatpush1.msra.mxu0 0.0
        %3116 = vmatprep.subr.mxu0 0.0
        %3117 = vmatpush1.msra.mxu0 0.0
        %3118 = vmatprep.subr.mxu0 0.0
        %3119 = vmatpush1.msra.mxu0 0.0
        %3120 = vmatprep.subr.mxu0 0.0
        %3121 = vmatpush1.msra.mxu0 0.0
        %3122 = vmatprep.subr.mxu0 0.0
        %3123 = vmatpush1.msra.mxu0 0.0
        %3124 = vmatprep.subr.mxu0 0.0
        %3125 = vmatpush1.msra.mxu0 0.0
        %3126 = vmatprep.subr.mxu0 0.0
        %3127 = vmatpush1.msra.mxu0 0.0
        %3128 = vmatprep.subr.mxu0 0.0
        %3129 = vmatpush1.msra.mxu0 0.0
        %3130 = vmatprep.subr.mxu0 0.0
        %3131 = vmatpush1.msra.mxu0 %v3091
        %3132 = vmatprep.subr.mxu0 0.0
        %3133 = vmatpush1.msra.mxu0 %v3090
        %3134 = vmatprep.subr.mxu0 0.0
        %3135 = vmatpush1.msra.mxu0 %v3089
        %3136 = vmatprep.subr.mxu0 0.0
        %3137 = vmatpush1.msra.mxu0 %v3088
        %3138 = vmatprep.subr.mxu0 0.0
        %3139 = vmatpush2.msra.mxu0 0.0
        %3140 = vmatprep.subr.mxu0 0.0
        %3141 = vmatpush2.msra.mxu0 0.0
        %3142 = vmatprep.subr.mxu0 0.0
        %3143 = vmatpush2.msra.mxu0 0.0
        %3144 = vmatprep.subr.mxu0 0.0
        %3145 = vmatpush2.msra.mxu0 0.0
        %3146 = vmatprep.subr.mxu0 0.0
        %3147 = vmatpush2.msra.mxu0 0.0
        %3148 = vmatprep.subr.mxu0 0.0
        %3149 = vmatpush2.msra.mxu0 0.0
        %3150 = vmatprep.subr.mxu0 0.0
        %3151 = vmatpush2.msra.mxu0 0.0
        %3152 = vmatprep.subr.mxu0 0.0
        %3153 = vmatpush2.msra.mxu0 0.0
        %3154 = vmatprep.subr.mxu0 0.0
        %3155 = vmatpush2.msra.mxu0 0.0
        %3156 = vmatprep.subr.mxu0 0.0
        %3157 = vmatpush2.msra.mxu0 0.0
        %3158 = vmatprep.subr.mxu0 0.0
        %3159 = vmatpush2.msra.mxu0 0.0
        %3160 = vmatprep.subr.mxu0 0.0
        %3161 = vmatpush2.msra.mxu0 0.0
        %3162 = vmatprep.subr.mxu0 0.0
        %3163 = vmatpush2.msra.mxu0 0.0
        %3164 = vmatprep.subr.mxu0 0.0
        %3165 = vmatpush2.msra.mxu0 0.0
        %3166 = vmatprep.subr.mxu0 0.0
        %3167 = vmatpush2.msra.mxu0 0.0
        %3168 = vmatprep.subr.mxu0 0.0
        %3169 = vmatpush2.msra.mxu0 0.0
        %3170 = vmatprep.mubr.f32.mxu0 0.0
        %3171 = vmatmul.mubr.f32.gmra.mxu0 %v3101
        %v3172 = vpop.f32.mrf.mxu0
        %v3173 = vadd.f32 %v3098, %v3172
        %v3174 = vpop.f32.mrf.mxu0
        %3175 = vmatprep.mubr.f32.mxu0 0.0
        %3176 = vmatmul.mubr.f32.gmra.mxu0 %v3104
        %v3177 = vpop.f32.mrf.mxu0
        %v3178 = vadd.f32 %v3098, %v3177
        %v3179 = vpop.f32.mrf.mxu0
        %3180 = vdwg.mxu0
        %v3181 = vadd.f32 %v3173, %v2105
        %v3182 = vadd.f32 %v3178, %v2106
        %s3183 = scalar_lea.vmem %s11, 1
        %v3184 = vld [vmem:[%s3183] sm:$0x1]
        %s3185 = scalar_lea.vmem %s12, 1
        %v3186 = vld [vmem:[%s3185] sm:$0x1]
        %v3187 = vsel %vm777, %v3181, 0.0
        %3188 = vadd.xlane.f32.xlu0 %v3187
        %v3189 = vpop.xlane.xlu0 %3188
        %v3190 = vsel %vm781, %v3182, 0.0
        %3191 = vadd.xlane.f32.xlu0 %v3190
        %v3192 = vpop.xlane.xlu0 %3191
        %v3193 = vmul.f32 %v3189, %v785
        %v3194 = vmul.f32 %v3192, %v785
        %v3195 = vsub.f32 %v3181, %v3193
        %v3196 = vsub.f32 %v3182, %v3194
        %v3197 = vmul.f32 %v3195, %v3195
        %v3198 = vmul.f32 %v3196, %v3196
        %v3199 = vsel %vm777, %v3197, 0.0
        %3200 = vadd.xlane.f32.xlu0 %v3199
        %v3201 = vpop.xlane.xlu0 %3200
        %v3202 = vsel %vm781, %v3198, 0.0
        %3203 = vadd.xlane.f32.xlu0 %v3202
        %v3204 = vpop.xlane.xlu0 %3203
        %v3205 = vmul.f32 %v3201, %v785
        %v3206 = vmul.f32 %v3204, %v785
        %v3207 = vadd.f32 %v3205, 1e-06
        %v3208 = vadd.f32 %v3206, 1e-06
        %v3209 = vrsqrt.pop %v3207
        %v3210 = vrsqrt.pop %v3208
        %v3211 = vmul.f32 %v3195, %v3209
        %v3212 = vmul.f32 %v3196, %v3210
        %v3214 = vlaneseq
        %v3215 = vshrl.u32 %v3214, 7
        %v3216 = vsub.s32 0, %v3215
        %v3217 = vrot.slane %v3184, %v3216
        %v3219 = vmul.f32 %v3211, %v3217
        %v3220 = vmul.f32 %v3212, %v3217
        %v3222 = vlaneseq
        %v3223 = vshrl.u32 %v3222, 7
        %v3224 = vsub.s32 0, %v3223
        %v3225 = vrot.slane %v3186, %v3224
        %v3227 = vadd.f32 %v3219, %v3225
        %v3228 = vadd.f32 %v3220, %v3225
        %s3229 = scalar_lea.vmem %s13, 32
        %v3230 = vld [vmem:[%s3229] sm:$0xff]
        %v3231 = vld [vmem:[%s3229 + $0x8] sm:$0xff]
        %v3232 = vld [vmem:[%s3229 + $0x10] sm:$0xff]
        %v3233 = vld [vmem:[%s3229 + $0x18] sm:$0xff]
        %s3234 = scalar_lea.vmem %s14, 1
        %v3235 = vld [vmem:[%s3234] sm:$0x1]
        %v3237 = vlaneseq
        %v3238 = vshrl.u32 %v3237, 7
        %v3239 = vsub.s32 0, %v3238
        %v3240 = vrot.slane %v3235, %v3239
        %v3243 = vsel %vm777, %v3227, 0
        %v3246 = vsel %vm777, %v3228, 0
        %3248 = vmatprep.subr.mxu0 0.0
        %3249 = vmatpush1.msra.mxu0 0.0
        %3250 = vmatprep.subr.mxu0 0.0
        %3251 = vmatpush1.msra.mxu0 0.0
        %3252 = vmatprep.subr.mxu0 0.0
        %3253 = vmatpush1.msra.mxu0 0.0
        %3254 = vmatprep.subr.mxu0 0.0
        %3255 = vmatpush1.msra.mxu0 0.0
        %3256 = vmatprep.subr.mxu0 0.0
        %3257 = vmatpush1.msra.mxu0 0.0
        %3258 = vmatprep.subr.mxu0 0.0
        %3259 = vmatpush1.msra.mxu0 0.0
        %3260 = vmatprep.subr.mxu0 0.0
        %3261 = vmatpush1.msra.mxu0 0.0
        %3262 = vmatprep.subr.mxu0 0.0
        %3263 = vmatpush1.msra.mxu0 0.0
        %3264 = vmatprep.subr.mxu0 0.0
        %3265 = vmatpush1.msra.mxu0 0.0
        %3266 = vmatprep.subr.mxu0 0.0
        %3267 = vmatpush1.msra.mxu0 0.0
        %3268 = vmatprep.subr.mxu0 0.0
        %3269 = vmatpush1.msra.mxu0 0.0
        %3270 = vmatprep.subr.mxu0 0.0
        %3271 = vmatpush1.msra.mxu0 0.0
        %3272 = vmatprep.subr.mxu0 0.0
        %3273 = vmatpush1.msra.mxu0 %v3233
        %3274 = vmatprep.subr.mxu0 0.0
        %3275 = vmatpush1.msra.mxu0 %v3232
        %3276 = vmatprep.subr.mxu0 0.0
        %3277 = vmatpush1.msra.mxu0 %v3231
        %3278 = vmatprep.subr.mxu0 0.0
        %3279 = vmatpush1.msra.mxu0 %v3230
        %3280 = vmatprep.subr.mxu0 0.0
        %3281 = vmatpush2.msra.mxu0 0.0
        %3282 = vmatprep.subr.mxu0 0.0
        %3283 = vmatpush2.msra.mxu0 0.0
        %3284 = vmatprep.subr.mxu0 0.0
        %3285 = vmatpush2.msra.mxu0 0.0
        %3286 = vmatprep.subr.mxu0 0.0
        %3287 = vmatpush2.msra.mxu0 0.0
        %3288 = vmatprep.subr.mxu0 0.0
        %3289 = vmatpush2.msra.mxu0 0.0
        %3290 = vmatprep.subr.mxu0 0.0
        %3291 = vmatpush2.msra.mxu0 0.0
        %3292 = vmatprep.subr.mxu0 0.0
        %3293 = vmatpush2.msra.mxu0 0.0
        %3294 = vmatprep.subr.mxu0 0.0
        %3295 = vmatpush2.msra.mxu0 0.0
        %3296 = vmatprep.subr.mxu0 0.0
        %3297 = vmatpush2.msra.mxu0 0.0
        %3298 = vmatprep.subr.mxu0 0.0
        %3299 = vmatpush2.msra.mxu0 0.0
        %3300 = vmatprep.subr.mxu0 0.0
        %3301 = vmatpush2.msra.mxu0 0.0
        %3302 = vmatprep.subr.mxu0 0.0
        %3303 = vmatpush2.msra.mxu0 0.0
        %3304 = vmatprep.subr.mxu0 0.0
        %3305 = vmatpush2.msra.mxu0 0.0
        %3306 = vmatprep.subr.mxu0 0.0
        %3307 = vmatpush2.msra.mxu0 0.0
        %3308 = vmatprep.subr.mxu0 0.0
        %3309 = vmatpush2.msra.mxu0 0.0
        %3310 = vmatprep.subr.mxu0 0.0
        %3311 = vmatpush2.msra.mxu0 0.0
        %3312 = vmatprep.mubr.f32.mxu0 0.0
        %3313 = vmatmul.mubr.f32.gmra.mxu0 %v3243
        %v3314 = vpop.f32.mrf.mxu0
        %v3315 = vadd.f32 %v3240, %v3314
        %v3316 = vpop.f32.mrf.mxu0
        %3317 = vmatprep.mubr.f32.mxu0 0.0
        %3318 = vmatmul.mubr.f32.gmra.mxu0 %v3246
        %v3319 = vpop.f32.mrf.mxu0
        %v3320 = vadd.f32 %v3240, %v3319
        %v3321 = vpop.f32.mrf.mxu0
        %3322 = vdwg.mxu0
        %v3323 = vmul.f32 %v3315, 0.5
        %v3324 = vmul.f32 %v3320, 0.5
        %v3325 = vmul.f32 %v3315, 0.044715
        %v3326 = vmul.f32 %v3320, 0.044715
        %v3327 = vmul.f32 %v3325, %v3315
        %v3328 = vmul.f32 %v3326, %v3320
        %v3329 = vmul.f32 %v3327, %v3315
        %v3330 = vmul.f32 %v3328, %v3320
        %v3331 = vadd.f32 %v3315, %v3329
        %v3332 = vadd.f32 %v3320, %v3330
        %v3333 = vmul.f32 %v3331, 0.7978846
        %v3334 = vmul.f32 %v3332, 0.7978846
        %v3335 = vtanh.pop %v3333
        %v3336 = vtanh.pop %v3334
        %v3337 = vadd.f32 %v3335, 1.0
        %v3338 = vadd.f32 %v3336, 1.0
        %v3339 = vmul.f32 %v3323, %v3337
        %v3340 = vmul.f32 %v3324, %v3338
        %s3341 = scalar_lea.vmem %s15, 64
        %v3342 = vld [vmem:[%s3341] sm:$0xff]
        %v3343 = vld [vmem:[%s3341 + $0x8] sm:$0xff]
        %v3344 = vld [vmem:[%s3341 + $0x10] sm:$0xff]
        %v3345 = vld [vmem:[%s3341 + $0x18] sm:$0xff]
        %v3346 = vld [vmem:[%s3341 + $0x20] sm:$0xff]
        %v3347 = vld [vmem:[%s3341 + $0x28] sm:$0xff]
        %v3348 = vld [vmem:[%s3341 + $0x30] sm:$0xff]
        %v3349 = vld [vmem:[%s3341 + $0x38] sm:$0xff]
        %s3350 = scalar_lea.vmem %s16, 1
        %v3351 = vld [vmem:[%s3350] sm:$0x1]
        %v3353 = vlaneseq
        %v3354 = vshrl.u32 %v3353, 7
        %v3355 = vsub.s32 0, %v3354
        %v3356 = vrot.slane %v3351, %v3355
        %v3359 = vsel %vm2023, %v3339, 0
        %v3362 = vsel %vm2023, %v3340, 0
        %3364 = vmatprep.subr.mxu0 0.0
        %3365 = vmatpush1.msra.mxu0 0.0
        %3366 = vmatprep.subr.mxu0 0.0
        %3367 = vmatpush1.msra.mxu0 0.0
        %3368 = vmatprep.subr.mxu0 0.0
        %3369 = vmatpush1.msra.mxu0 0.0
        %3370 = vmatprep.subr.mxu0 0.0
        %3371 = vmatpush1.msra.mxu0 0.0
        %3372 = vmatprep.subr.mxu0 0.0
        %3373 = vmatpush1.msra.mxu0 0.0
        %3374 = vmatprep.subr.mxu0 0.0
        %3375 = vmatpush1.msra.mxu0 0.0
        %3376 = vmatprep.subr.mxu0 0.0
        %3377 = vmatpush1.msra.mxu0 0.0
        %3378 = vmatprep.subr.mxu0 0.0
        %3379 = vmatpush1.msra.mxu0 0.0
        %3380 = vmatprep.subr.mxu0 0.0
        %3381 = vmatpush1.msra.mxu0 %v3349
        %3382 = vmatprep.subr.mxu0 0.0
        %3383 = vmatpush1.msra.mxu0 %v3348
        %3384 = vmatprep.subr.mxu0 0.0
        %3385 = vmatpush1.msra.mxu0 %v3347
        %3386 = vmatprep.subr.mxu0 0.0
        %3387 = vmatpush1.msra.mxu0 %v3346
        %3388 = vmatprep.subr.mxu0 0.0
        %3389 = vmatpush1.msra.mxu0 %v3345
        %3390 = vmatprep.subr.mxu0 0.0
        %3391 = vmatpush1.msra.mxu0 %v3344
        %3392 = vmatprep.subr.mxu0 0.0
        %3393 = vmatpush1.msra.mxu0 %v3343
        %3394 = vmatprep.subr.mxu0 0.0
        %3395 = vmatpush1.msra.mxu0 %v3342
        %3396 = vmatprep.subr.mxu0 0.0
        %3397 = vmatpush2.msra.mxu0 0.0
        %3398 = vmatprep.subr.mxu0 0.0
        %3399 = vmatpush2.msra.mxu0 0.0
        %3400 = vmatprep.subr.mxu0 0.0
        %3401 = vmatpush2.msra.mxu0 0.0
        %3402 = vmatprep.subr.mxu0 0.0
        %3403 = vmatpush2.msra.mxu0 0.0
        %3404 = vmatprep.subr.mxu0 0.0
        %3405 = vmatpush2.msra.mxu0 0.0
        %3406 = vmatprep.subr.mxu0 0.0
        %3407 = vmatpush2.msra.mxu0 0.0
        %3408 = vmatprep.subr.mxu0 0.0
        %3409 = vmatpush2.msra.mxu0 0.0
        %3410 = vmatprep.subr.mxu0 0.0
        %3411 = vmatpush2.msra.mxu0 0.0
        %3412 = vmatprep.subr.mxu0 0.0
        %3413 = vmatpush2.msra.mxu0 0.0
        %3414 = vmatprep.subr.mxu0 0.0
        %3415 = vmatpush2.msra.mxu0 0.0
        %3416 = vmatprep.subr.mxu0 0.0
        %3417 = vmatpush2.msra.mxu0 0.0
        %3418 = vmatprep.subr.mxu0 0.0
        %3419 = vmatpush2.msra.mxu0 0.0
        %3420 = vmatprep.subr.mxu0 0.0
        %3421 = vmatpush2.msra.mxu0 0.0
        %3422 = vmatprep.subr.mxu0 0.0
        %3423 = vmatpush2.msra.mxu0 0.0
        %3424 = vmatprep.subr.mxu0 0.0
        %3425 = vmatpush2.msra.mxu0 0.0
        %3426 = vmatprep.subr.mxu0 0.0
        %3427 = vmatpush2.msra.mxu0 0.0
        %3428 = vmatprep.mubr.f32.mxu0 0.0
        %3429 = vmatmul.mubr.f32.gmra.mxu0 %v3359
        %v3430 = vpop.f32.mrf.mxu0
        %v3431 = vadd.f32 %v3356, %v3430
        %v3432 = vpop.f32.mrf.mxu0
        %3433 = vmatprep.mubr.f32.mxu0 0.0
        %3434 = vmatmul.mubr.f32.gmra.mxu0 %v3362
        %v3435 = vpop.f32.mrf.mxu0
        %v3436 = vpop.f32.mrf.mxu0
        %3437 = vdwg.mxu0
        %v3438 = vadd.f32 %v3431, %v3181
        %v3439 = vld [vmem:[%s17] sm:$0x1]
        %v3440 = vld [vmem:[%s18] sm:$0x1]
        %v3441 = vsel %vm777, %v3438, 0.0
        %3442 = vadd.xlane.f32.xlu0 %v3441
        %v3443 = vpop.xlane.xlu0 %3442
        %v3444 = vmul.f32 %v3443, %v785
        %v3445 = vsub.f32 %v3438, %v3444
        %v3446 = vmul.f32 %v3445, %v3445
        %v3447 = vsel %vm777, %v3446, 0.0
        %3448 = vadd.xlane.f32.xlu0 %v3447
        %v3449 = vpop.xlane.xlu0 %3448
        %v3450 = vmul.f32 %v3449, %v785
        %v3451 = vadd.f32 %v3450, 1e-06
        %v3452 = vrsqrt.pop %v3451
        %v3453 = vmul.f32 %v3445, %v3452
        %v3455 = vlaneseq
        %v3456 = vshrl.u32 %v3455, 7
        %v3457 = vsub.s32 0, %v3456
        %v3458 = vrot.slane %v3439, %v3457
        %v3460 = vmul.f32 %v3453, %v3458
        %v3462 = vlaneseq
        %v3463 = vshrl.u32 %v3462, 7
        %v3464 = vsub.s32 0, %v3463
        %v3465 = vrot.slane %v3440, %v3464
        %v3467 = vadd.f32 %v3460, %v3465
        %v3468 = vld [vmem:[%s19] sm:$0xff]
        %v3469 = vld [vmem:[%s19 + $0x8] sm:$0xff]
        %v3470 = vld [vmem:[%s19 + $0x10] sm:$0xff]
        %v3471 = vld [vmem:[%s19 + $0x18] sm:$0xff]
        %v3472 = vld [vmem:[%s20] sm:$0x1]
        %v3474 = vsel %vm777, %v3467, 0
        %3476 = vmatprep.subr.mxu0 0.0
        %3477 = vmatpush1.msra.mxu0 0.0
        %3478 = vmatprep.subr.mxu0 0.0
        %3479 = vmatpush1.msra.mxu0 0.0
        %3480 = vmatprep.subr.mxu0 0.0
        %3481 = vmatpush1.msra.mxu0 0.0
        %3482 = vmatprep.subr.mxu0 0.0
        %3483 = vmatpush1.msra.mxu0 0.0
        %3484 = vmatprep.subr.mxu0 0.0
        %3485 = vmatpush1.msra.mxu0 0.0
        %3486 = vmatprep.subr.mxu0 0.0
        %3487 = vmatpush1.msra.mxu0 0.0
        %3488 = vmatprep.subr.mxu0 0.0
        %3489 = vmatpush1.msra.mxu0 0.0
        %3490 = vmatprep.subr.mxu0 0.0
        %3491 = vmatpush1.msra.mxu0 0.0
        %3492 = vmatprep.subr.mxu0 0.0
        %3493 = vmatpush1.msra.mxu0 0.0
        %3494 = vmatprep.subr.mxu0 0.0
        %3495 = vmatpush1.msra.mxu0 0.0
        %3496 = vmatprep.subr.mxu0 0.0
        %3497 = vmatpush1.msra.mxu0 0.0
        %3498 = vmatprep.subr.mxu0 0.0
        %3499 = vmatpush1.msra.mxu0 0.0
        %3500 = vmatprep.subr.mxu0 0.0
        %3501 = vmatpush1.msra.mxu0 %v3471
        %3502 = vmatprep.subr.mxu0 0.0
        %3503 = vmatpush1.msra.mxu0 %v3470
        %3504 = vmatprep.subr.mxu0 0.0
        %3505 = vmatpush1.msra.mxu0 %v3469
        %3506 = vmatprep.subr.mxu0 0.0
        %3507 = vmatpush1.msra.mxu0 %v3468
        %3508 = vmatprep.subr.mxu0 0.0
        %3509 = vmatpush2.msra.mxu0 0.0
        %3510 = vmatprep.subr.mxu0 0.0
        %3511 = vmatpush2.msra.mxu0 0.0
        %3512 = vmatprep.subr.mxu0 0.0
        %3513 = vmatpush2.msra.mxu0 0.0
        %3514 = vmatprep.subr.mxu0 0.0
        %3515 = vmatpush2.msra.mxu0 0.0
        %3516 = vmatprep.subr.mxu0 0.0
        %3517 = vmatpush2.msra.mxu0 0.0
        %3518 = vmatprep.subr.mxu0 0.0
        %3519 = vmatpush2.msra.mxu0 0.0
        %3520 = vmatprep.subr.mxu0 0.0
        %3521 = vmatpush2.msra.mxu0 0.0
        %3522 = vmatprep.subr.mxu0 0.0
        %3523 = vmatpush2.msra.mxu0 0.0
        %3524 = vmatprep.subr.mxu0 0.0
        %3525 = vmatpush2.msra.mxu0 0.0
        %3526 = vmatprep.subr.mxu0 0.0
        %3527 = vmatpush2.msra.mxu0 0.0
        %3528 = vmatprep.subr.mxu0 0.0
        %3529 = vmatpush2.msra.mxu0 0.0
        %3530 = vmatprep.subr.mxu0 0.0
        %3531 = vmatpush2.msra.mxu0 0.0
        %3532 = vmatprep.subr.mxu0 0.0
        %3533 = vmatpush2.msra.mxu0 0.0
        %3534 = vmatprep.subr.mxu0 0.0
        %3535 = vmatpush2.msra.mxu0 0.0
        %3536 = vmatprep.subr.mxu0 0.0
        %3537 = vmatpush2.msra.mxu0 0.0
        %3538 = vmatprep.subr.mxu0 0.0
        %3539 = vmatpush2.msra.mxu0 0.0
        %3540 = vmatprep.mubr.f32.mxu0 0.0
        %3541 = vmatmul.mubr.f32.gmra.mxu0 %v3474
        %v3542 = vpop.f32.mrf.mxu0
        %v3543 = vadd.f32 %v3472, %v3542
        %v3544 = vpop.f32.mrf.mxu0
        %3545 = vdwg.mxu0
        %vm3546 = vcmask 32768
        %3547 = vst.msk [vmem:[%s648] sm:$0x1] %vm3546, %v3543
        %s3548 = sand.u32 %s489, 1
        %s3549 = scalar_lea.sflag [#allocation3], %s3548
        %s3550 = sand.u32 %s489, 1
        %s3551 = scalar_lea.vmem [#allocation2], %s3550
        // Predicated region
        $region105: #{vivit_forward.1} parent=103 // pred_check
          %p3552 = pneg %p499
        $region106: #{vivit_forward.1} parent=103 // pred_check_branch
          %3554 = sbr.rel (%p3552) target = $region108
        $region107: #{vivit_forward.1} parent=103 // pred_region
          %s3556 = ssub.s32 16, 16
          %3557 = vsyncadd %s3549, %s3556
          %s3558 = smul.addr %s35, 16
          %s3559 = scalar_lea.hbm %s21, %s3558
          %s3561 = sshll.u32 %s3551, 4
          %s3562 = int_to_ptr.vmem [resolvable:$true] %s3561
          %3564 = dma.vmem_to_hbm [thread:$0]  %s3562, 16, %s3559, %s3549
        $region108: #{vivit_forward.1} parent=103 // pred_fallthru
          _
      $region104: #{vivit_forward.1} parent=5 // pred_fallthru
        _
      %p3565 = scmp.le.s32.totalorder 2, %s30
      // Predicated region
      $region109: #{vivit_forward.1} parent=5 // pred_check
        %p3566 = pneg %p3565
      $region110: #{vivit_forward.1} parent=5 // pred_check_branch
        %3568 = sbr.rel (%p3566) target = $region112
      $region111: #{vivit_forward.1} parent=5 // pred_region
        %s3569 = ssub.s32 %s30, 2
        // Predicated region
        $region113: #{vivit_forward.1} parent=111 // pred_check
          %p3570 = pneg %p505
        $region114: #{vivit_forward.1} parent=111 // pred_check_branch
          %3572 = sbr.rel (%p3570) target = $region116
        $region115: #{vivit_forward.1} parent=111 // pred_region
          %s3573 = sand.u32 %s490, 1
          %s3574 = scalar_lea.sflag [#allocation3], %s3573
          %s3575 = sand.u32 %s490, 1
          %s3576 = scalar_lea.vmem [#allocation2], %s3575
          %3577 = dma.done %s3574, 16
        $region116: #{vivit_forward.1} parent=111 // pred_fallthru
          _
      $region112: #{vivit_forward.1} parent=5 // pred_fallthru
        _
    $region6: #{vivit_forward.1} parent=1 // loop_footer
      %s34 = sadd.s32 1, %s30
    $region7: #{vivit_forward.1} parent=1 // loop_footer_branch
      %29 = sbr.rel target = $region3
    $region8: #{vivit_forward.1} parent=1 // loop_exit
      _
    %3578 = vsyncpa [#allocation3], 1
    %s3579 = scalar_lea.sflag [#allocation3], 1
    %3580 = vsyncpa %s3579, 1

</llo_original>
